<compile_context>
chip_gen: v5e
topology: v5e:2x2
jax: 0.10.0
libtpu: 0.0.40
codegen_flags: <defaults>
</compile_context>

<pallas_src>
import functools

import jax
import jax.numpy as jnp
from jax.experimental import pallas as pl
from jax.experimental.pallas import tpu as pltpu


def _sigmoid(v):
    # Stable sigmoid: 0.5 * (tanh(v/2) + 1); tanh lowers to the EUP slot.
    return 0.5 * (jnp.tanh(0.5 * v) + 1.0)


def cbam_kernel(w_sp_ref, x_ref, w1t_ref, w2t_ref, colid_ref, o_ref, *,
                C, H, W, K, BT, HW, HWp):
    pad = (K - 1) // 2

    x_nat = x_ref[...]                                    # [BT, C, HWp] input dtype
    xf = x_nat.astype(jnp.float32)

    # ---------------- channel attention: pool -> shared MLP on the MXU ------
    avg = jnp.sum(xf, axis=2) * (1.0 / HW)                # [BT, C]
    if HWp != HW:                                          # mask the zero tail for max
        valid3 = jax.lax.broadcasted_iota(jnp.int32, (1, 1, HWp), 2) < HW
        mx = jnp.max(jnp.where(valid3, xf, -jnp.inf), axis=2)
    else:
        mx = jnp.max(xf, axis=2)                           # [BT, C]

    w1t = w1t_ref[...].astype(jnp.float32)                 # [C, Cr]
    w2t = w2t_ref[...].astype(jnp.float32)                 # [Cr, C]
    v = jnp.concatenate([avg, mx], axis=0)                 # [2*BT, C]
    h = jnp.maximum(
        jnp.dot(v, w1t, preferred_element_type=jnp.float32), 0.0)   # [2*BT, Cr]
    mlp = jnp.dot(h, w2t, preferred_element_type=jnp.float32)       # [2*BT, C]
    ca = _sigmoid(mlp[:BT] + mlp[BT:])                     # [BT, C]

    # Elementwise epilogue in the input dtype (bf16 stays bf16 on v6e/v7x).
    y_nat = x_nat * ca[:, :, None].astype(x_nat.dtype)     # [BT, C, HWp]
    yf = y_nat.astype(jnp.float32)

    # ---------------- spatial attention: flat-HW KxK conv via XLU rolls -----
    avg_sp = jnp.sum(yf, axis=1) * (1.0 / C)               # [BT, HWp]  mean over C
    max_sp = jnp.max(yf, axis=1)                           # [BT, HWp]  max  over C

    # Hoisted boundary masks: K distinct row masks + K distinct column masks
    # (trivial ones skipped statically).  col index table comes from the
    # wrapper (avoids in-kernel integer mod); flat index via iota.
    flat_idx = jax.lax.broadcasted_iota(jnp.int32, (1, HWp), 1)
    col_idx = colid_ref[...]                               # [1, HWp] int32
    row_masks, col_masks = {}, {}
    for d in range(-pad, pad + 1):
        if d == 0:
            row_masks[d] = None
            col_masks[d] = None
        else:
            row_masks[d] = (flat_idx >= max(0, -d) * W) & (flat_idx < min(H, H - d) * W)
            col_masks[d] = (col_idx >= max(0, -d)) & (col_idx < min(W, W - d))

    # Hoist the 2*K*K SMEM conv-weight scalar reads out of the vector tap loop.
    w_avg = [w_sp_ref[t] for t in range(K * K)]
    w_max = [w_sp_ref[K * K + t] for t in range(K * K)]

    # Two independent accumulators break the serial VPU add chain while
    # keeping vreg pressure low.
    accs = [jnp.zeros((BT, HWp), jnp.float32) for _ in range(2)]
    for kh in range(K):
        dh = kh - pad
        rmask = row_masks[dh]
        for kw in range(K):
            dw = kw - pad
            t = kh * K + kw
            # Roll so lane p reads flat position p + dh*W + dw (row-major HW).
            shift = (-(dh * W + dw)) % HWp
            if shift:
                tap_a = pltpu.roll(avg_sp, shift=shift, axis=1)
                tap_m = pltpu.roll(max_sp, shift=shift, axis=1)
            else:
                tap_a, tap_m = avg_sp, max_sp
            contrib = w_avg[t] * tap_a + w_max[t] * tap_m   # [BT, HWp]
            cmask = col_masks[dw]
            if rmask is not None and cmask is not None:
                mask = rmask & cmask
            else:
                mask = rmask if rmask is not None else cmask
            if mask is not None:
                contrib = jnp.where(mask, contrib, 0.0)
            accs[t % 2] = accs[t % 2] + contrib
    conv = accs[0] + accs[1]                                # [BT, HWp]
    sa = _sigmoid(conv)                                     # [BT, HWp]

    o_ref[...] = (y_nat * sa[:, None, :].astype(y_nat.dtype)).astype(o_ref.dtype)


def _vmem_capacity_bytes():
    """Per-core VMEM capacity; conservative fallback if the query is unavailable."""
    try:
        info = pltpu.get_tpu_info()
        for name in ("vmem_capacity_bytes", "vmem_bytes", "vmem_size_bytes"):
            val = getattr(info, name, None)
            if val:
                return int(val)
    except Exception:
        pass
    return 64 << 20   # v7x per-TensorCore VMEM (smallest current generation)


def cbam_pallas(x, w1, w2, w_sp_flat, kernel_size=7):
    B, C, H, W = x.shape
    Cr = w1.shape[0]
    K = kernel_size
    HW = H * W
    HWp = ((HW + 127) // 128) * 128      # lane-pad so loads/stores stay unmasked

    # Wrapper-side relayout: lane-dense [B, C, HWp] blocks, pre-transposed MLP
    # weights, and a tiny flat->column index table for the conv boundary masks.
    x3 = x.reshape(B, C, HW)
    if HWp != HW:
        x3 = jnp.pad(x3, ((0, 0), (0, 0), (0, HWp - HW)))
    w1t = jnp.transpose(w1)              # [C, Cr]
    w2t = jnp.transpose(w2)              # [Cr, C]
    col_ids = (jnp.arange(HWp, dtype=jnp.int32) % W).reshape(1, HWp)

    # Generation-aware block budget: ~8 MiB on 128-MiB-VMEM parts (v5e/v6e),
    # ~4 MiB on 64-MiB parts (v7x).
    vmem_total = _vmem_capacity_bytes()
    max_block_bytes = (4 << 20) if vmem_total <= (64 << 20) else (8 << 20)

    itemsize = x.dtype.itemsize
    sample_block_bytes = C * HWp * itemsize
    fits = [d for d in range(1, B + 1)
            if B % d == 0 and d * sample_block_bytes <= max_block_bytes]
    if not fits:
        fits = [1]
    # Prefer an even number of grid steps (v7x megacore balance), then >= 2
    # steps, then the largest block that fits.  (B == 1 necessarily runs as a
    # single step: both pooling reductions need the whole sample resident.)
    even = [d for d in fits if (B // d) >= 2 and (B // d) % 2 == 0]
    multi = [d for d in fits if (B // d) >= 2]
    BT = max(even) if even else (max(multi) if multi else max(fits))

    # Resident-VMEM estimate: double-buffered in/out blocks (input dtype) plus
    # the in-kernel f32 temps (xf, y, spatial maps, conv accumulators).
    block_bytes = BT * sample_block_bytes
    block_f32 = BT * C * HWp * 4
    est_resident = 4 * block_bytes + 4 * block_f32 + 16 * BT * HWp * 4 + (1 << 20)
    assert est_resident <= vmem_total, (
        f"CBAM kernel keeps the full C x H*W extent per block "
        f"(~{est_resident >> 20} MiB resident) but only {vmem_total >> 20} MiB "
        f"VMEM is available; reduce C or H*W.")
    vmem_limit = int(min(max(est_resident, 32 << 20), vmem_total))

    kern = functools.partial(cbam_kernel, C=C, H=H, W=W, K=K, BT=BT,
                             HW=HW, HWp=HWp)
    out3 = pl.pallas_call(
        kern,
        out_shape=jax.ShapeDtypeStruct((B, C, HWp), x.dtype),
        grid=(B // BT,),
        in_specs=[
            pl.BlockSpec(memory_space=pltpu.MemorySpace.SMEM),   # conv7x7 weights (flat scalars)
            pl.BlockSpec((BT, C, HWp), lambda b: (b, 0, 0)),     # x, lane-dense blocks
            pl.BlockSpec((C, Cr), lambda b: (0, 0)),             # MLP w1^T
            pl.BlockSpec((Cr, C), lambda b: (0, 0)),             # MLP w2^T
            pl.BlockSpec((1, HWp), lambda b: (0, 0)),            # column-index table
        ],
        out_specs=pl.BlockSpec((BT, C, HWp), lambda b: (b, 0, 0)),
        compiler_params=pltpu.CompilerParams(
            dimension_semantics=("parallel",),
            vmem_limit_bytes=vmem_limit),
    )(w_sp_flat, x3, w1t, w2t, col_ids)

    if HWp != HW:
        out3 = out3[..., :HW]
    return out3.reshape(B, C, H, W)


def cbam_ref(x, w1, w2, w_sp_flat, kernel_size=7):
    """Pure-JAX reference matching the PyTorch module (f32-accurate matmuls)."""
    K = kernel_size
    hp = jax.lax.Precision.HIGHEST
    avg = x.mean(axis=(2, 3))                    # [B, C]
    mx = x.max(axis=(2, 3))                      # [B, C]

    def mlp(v):
        h = jnp.maximum(jnp.dot(v, w1.T, precision=hp), 0.0)
        return jnp.dot(h, w2.T, precision=hp)

    ca = jax.nn.sigmoid(mlp(avg) + mlp(mx))[:, :, None, None]
    y = x * ca
    stk = jnp.concatenate([y.mean(axis=1, keepdims=True),
                           y.max(axis=1, keepdims=True)], axis=1)   # [B,2,H,W]
    w_sp = w_sp_flat.reshape(1, 2, K, K)
    pad = (K - 1) // 2
    conv = jax.lax.conv_general_dilated(
        stk, w_sp, window_strides=(1, 1), padding=[(pad, pad), (pad, pad)],
        dimension_numbers=("NCHW", "OIHW", "NCHW"), precision=hp)
    sa = jax.nn.sigmoid(conv)
    return y * sa


if __name__ == "__main__":
    B, C, H, W = 2, 32, 16, 16
    reduction, ksize = 16, 7
    Cr = C // reduction

    key = jax.random.PRNGKey(0)
    kx, k1, k2, k3 = jax.random.split(key, 4)

    x = jax.random.normal(kx, (B, C, H, W), dtype=jnp.float32)
    # Deterministic synthetic weights (shapes from the module __init__):
    w1 = 0.1 * jax.random.normal(k1, (Cr, C), dtype=jnp.float32)      # Conv2d(C, C//r, 1)
    w2 = 0.1 * jax.random.normal(k2, (C, Cr), dtype=jnp.float32)      # Conv2d(C//r, C, 1)
    w_sp = 0.1 * jax.random.normal(k3, (2 * ksize * ksize,), dtype=jnp.float32)  # Conv2d(2,1,7)

    out = cbam_pallas(x, w1, w2, w_sp, kernel_size=ksize)
    out = jax.block_until_ready(out)

    ref = cbam_ref(x, w1, w2, w_sp, kernel_size=ksize)
    assert out.shape == (B, C, H, W)
    # Tolerance covers TPU MXU default-precision (bf16-pass) rounding of the
    # kernel's small f32 matmuls vs the HIGHEST-precision XLA reference.
    assert jnp.allclose(out, ref, atol=5e-3, rtol=5e-3), "mismatch vs JAX reference"
    print("KERNEL_OK")
</pallas_src>

<mosaic_0001>
module attributes {stable_mosaic.version = 11 : i64} {
  func.func @cbam_kernel(%arg0: i32, %arg1: memref<98xf32, #tpu.memory_space<smem>>, %arg2: memref<1x32x256xf32, #tpu.memory_space<vmem>>, %arg3: memref<32x2xf32, #tpu.memory_space<vmem>>, %arg4: memref<2x32xf32, #tpu.memory_space<vmem>>, %arg5: memref<1x256xi32, #tpu.memory_space<vmem>>, %arg6: memref<1x32x256xf32, #tpu.memory_space<vmem>>) attributes {dimension_semantics = [#tpu.dimension_semantics<parallel>], iteration_bounds = array<i64: 2>, scalar_prefetch = 0 : i64, scratch_operands = 0 : i64, tpu.core_type = #tpu.core_type<tc>, window_params = [{transform_indices = @transform_0, window_bounds = array<i64: 98>}, {transform_indices = @transform_1, window_bounds = array<i64: 1, 32, 256>}, {pipeline_mode = #tpu.pipeline_mode<synchronous>, transform_indices = @transform_2, window_bounds = array<i64: 32, 2>}, {pipeline_mode = #tpu.pipeline_mode<synchronous>, transform_indices = @transform_3, window_bounds = array<i64: 2, 32>}, {pipeline_mode = #tpu.pipeline_mode<synchronous>, transform_indices = @transform_4, window_bounds = array<i64: 1, 256>}, {transform_indices = @transform_5, window_bounds = array<i64: 1, 32, 256>}]} {
    %c0 = arith.constant 0 : index
    %c0_0 = arith.constant 0 : index
    %c0_1 = arith.constant 0 : index
    %0 = vector.load %arg2[%c0, %c0_0, %c0_1] : memref<1x32x256xf32, #tpu.memory_space<vmem>>, vector<1x32x256xf32>
    %cst = arith.constant dense<0.000000e+00> : vector<1x32xf32>
    %1 = vector.multi_reduction <add>, %0, %cst [2] : vector<1x32x256xf32> to vector<1x32xf32>
    %cst_2 = arith.constant 3.906250e-03 : f32
    %2 = vector.broadcast %cst_2 : f32 to vector<1x32xf32>
    %3 = arith.mulf %1, %2 : vector<1x32xf32>
    %cst_3 = arith.constant dense<0xFF800000> : vector<1x32xf32>
    %4 = vector.multi_reduction <maximumf>, %0, %cst_3 [2] : vector<1x32x256xf32> to vector<1x32xf32>
    %c0_4 = arith.constant 0 : index
    %c0_5 = arith.constant 0 : index
    %5 = vector.load %arg3[%c0_4, %c0_5] : memref<32x2xf32, #tpu.memory_space<vmem>>, vector<32x2xf32>
    %c0_6 = arith.constant 0 : index
    %c0_7 = arith.constant 0 : index
    %6 = vector.load %arg4[%c0_6, %c0_7] : memref<2x32xf32, #tpu.memory_space<vmem>>, vector<2x32xf32>
    %7 = tpu.concatenate %3, %4 in 0 : vector<1x32xf32>, vector<1x32xf32> -> vector<2x32xf32>
    %cst_8 = arith.constant dense<0.000000e+00> : vector<2x2xf32>
    %8 = tpu.matmul %7, %5, %cst_8 {dimension_numbers = #tpu.dot_dimension_numbers<[1], [0], [0], [1], [0, 0, 1, 1], [], []>} : vector<2x32xf32>, vector<32x2xf32>, vector<2x2xf32> -> vector<2x2xf32>
    %cst_9 = arith.constant 0.000000e+00 : f32
    %9 = vector.broadcast %cst_9 : f32 to vector<2x2xf32>
    %10 = arith.maximumf %8, %9 : vector<2x2xf32>
    %cst_10 = arith.constant dense<0.000000e+00> : vector<2x32xf32>
    %11 = tpu.matmul %10, %6, %cst_10 {dimension_numbers = #tpu.dot_dimension_numbers<[1], [0], [0], [1], [0, 0, 1, 1], [], []>} : vector<2x2xf32>, vector<2x32xf32>, vector<2x32xf32> -> vector<2x32xf32>
    %12 = vector.extract_strided_slice %11 {offsets = [0, 0], sizes = [1, 32], strides = [1, 1]} : vector<2x32xf32> to vector<1x32xf32>
    %13 = vector.extract_strided_slice %11 {offsets = [1, 0], sizes = [1, 32], strides = [1, 1]} : vector<2x32xf32> to vector<1x32xf32>
    %14 = arith.addf %12, %13 : vector<1x32xf32>
    %cst_11 = arith.constant 5.000000e-01 : f32
    %15 = vector.broadcast %cst_11 : f32 to vector<1x32xf32>
    %16 = arith.mulf %15, %14 : vector<1x32xf32>
    %17 = math.tanh %16 : vector<1x32xf32>
    %cst_12 = arith.constant 1.000000e+00 : f32
    %18 = vector.broadcast %cst_12 : f32 to vector<1x32xf32>
    %19 = arith.addf %17, %18 : vector<1x32xf32>
    %cst_13 = arith.constant 5.000000e-01 : f32
    %20 = vector.broadcast %cst_13 : f32 to vector<1x32xf32>
    %21 = arith.mulf %20, %19 : vector<1x32xf32>
    %22 = vector.shape_cast %21 : vector<1x32xf32> to vector<1x32x1xf32>
    %23 = vector.broadcast %22 : vector<1x32x1xf32> to vector<1x32x256xf32>
    %24 = arith.mulf %0, %23 : vector<1x32x256xf32>
    %cst_14 = arith.constant dense<0.000000e+00> : vector<1x256xf32>
    %25 = vector.multi_reduction <add>, %24, %cst_14 [1] : vector<1x32x256xf32> to vector<1x256xf32>
    %cst_15 = arith.constant 3.125000e-02 : f32
    %26 = vector.broadcast %cst_15 : f32 to vector<1x256xf32>
    %27 = arith.mulf %25, %26 : vector<1x256xf32>
    %cst_16 = arith.constant dense<0xFF800000> : vector<1x256xf32>
    %28 = vector.multi_reduction <maximumf>, %24, %cst_16 [1] : vector<1x32x256xf32> to vector<1x256xf32>
    %29 = tpu.iota {dimensions = array<i32: 1>} : vector<1x256xi32>
    %c0_17 = arith.constant 0 : index
    %c0_18 = arith.constant 0 : index
    %30 = vector.load %arg5[%c0_17, %c0_18] : memref<1x256xi32, #tpu.memory_space<vmem>>, vector<1x256xi32>
    %c48_i32 = arith.constant 48 : i32
    %31 = vector.broadcast %c48_i32 : i32 to vector<1x256xi32>
    %32 = arith.cmpi sge, %29, %31 : vector<1x256xi32>
    %c256_i32 = arith.constant 256 : i32
    %33 = vector.broadcast %c256_i32 : i32 to vector<1x256xi32>
    %34 = arith.cmpi slt, %29, %33 : vector<1x256xi32>
    %35 = arith.andi %32, %34 : vector<1x256xi1>
    %c3_i32 = arith.constant 3 : i32
    %36 = vector.broadcast %c3_i32 : i32 to vector<1x256xi32>
    %37 = arith.cmpi sge, %30, %36 : vector<1x256xi32>
    %c16_i32 = arith.constant 16 : i32
    %38 = vector.broadcast %c16_i32 : i32 to vector<1x256xi32>
    %39 = arith.cmpi slt, %30, %38 : vector<1x256xi32>
    %40 = arith.andi %37, %39 : vector<1x256xi1>
    %c32_i32 = arith.constant 32 : i32
    %41 = vector.broadcast %c32_i32 : i32 to vector<1x256xi32>
    %42 = arith.cmpi sge, %29, %41 : vector<1x256xi32>
    %c256_i32_19 = arith.constant 256 : i32
    %43 = vector.broadcast %c256_i32_19 : i32 to vector<1x256xi32>
    %44 = arith.cmpi slt, %29, %43 : vector<1x256xi32>
    %45 = arith.andi %42, %44 : vector<1x256xi1>
    %c2_i32 = arith.constant 2 : i32
    %46 = vector.broadcast %c2_i32 : i32 to vector<1x256xi32>
    %47 = arith.cmpi sge, %30, %46 : vector<1x256xi32>
    %c16_i32_20 = arith.constant 16 : i32
    %48 = vector.broadcast %c16_i32_20 : i32 to vector<1x256xi32>
    %49 = arith.cmpi slt, %30, %48 : vector<1x256xi32>
    %50 = arith.andi %47, %49 : vector<1x256xi1>
    %c16_i32_21 = arith.constant 16 : i32
    %51 = vector.broadcast %c16_i32_21 : i32 to vector<1x256xi32>
    %52 = arith.cmpi sge, %29, %51 : vector<1x256xi32>
    %c256_i32_22 = arith.constant 256 : i32
    %53 = vector.broadcast %c256_i32_22 : i32 to vector<1x256xi32>
    %54 = arith.cmpi slt, %29, %53 : vector<1x256xi32>
    %55 = arith.andi %52, %54 : vector<1x256xi1>
    %c1_i32 = arith.constant 1 : i32
    %56 = vector.broadcast %c1_i32 : i32 to vector<1x256xi32>
    %57 = arith.cmpi sge, %30, %56 : vector<1x256xi32>
    %c16_i32_23 = arith.constant 16 : i32
    %58 = vector.broadcast %c16_i32_23 : i32 to vector<1x256xi32>
    %59 = arith.cmpi slt, %30, %58 : vector<1x256xi32>
    %60 = arith.andi %57, %59 : vector<1x256xi1>
    %c0_i32 = arith.constant 0 : i32
    %61 = vector.broadcast %c0_i32 : i32 to vector<1x256xi32>
    %62 = arith.cmpi sge, %29, %61 : vector<1x256xi32>
    %c240_i32 = arith.constant 240 : i32
    %63 = vector.broadcast %c240_i32 : i32 to vector<1x256xi32>
    %64 = arith.cmpi slt, %29, %63 : vector<1x256xi32>
    %65 = arith.andi %62, %64 : vector<1x256xi1>
    %c0_i32_24 = arith.constant 0 : i32
    %66 = vector.broadcast %c0_i32_24 : i32 to vector<1x256xi32>
    %67 = arith.cmpi sge, %30, %66 : vector<1x256xi32>
    %c15_i32 = arith.constant 15 : i32
    %68 = vector.broadcast %c15_i32 : i32 to vector<1x256xi32>
    %69 = arith.cmpi slt, %30, %68 : vector<1x256xi32>
    %70 = arith.andi %67, %69 : vector<1x256xi1>
    %c0_i32_25 = arith.constant 0 : i32
    %71 = vector.broadcast %c0_i32_25 : i32 to vector<1x256xi32>
    %72 = arith.cmpi sge, %29, %71 : vector<1x256xi32>
    %c224_i32 = arith.constant 224 : i32
    %73 = vector.broadcast %c224_i32 : i32 to vector<1x256xi32>
    %74 = arith.cmpi slt, %29, %73 : vector<1x256xi32>
    %75 = arith.andi %72, %74 : vector<1x256xi1>
    %c0_i32_26 = arith.constant 0 : i32
    %76 = vector.broadcast %c0_i32_26 : i32 to vector<1x256xi32>
    %77 = arith.cmpi sge, %30, %76 : vector<1x256xi32>
    %c14_i32 = arith.constant 14 : i32
    %78 = vector.broadcast %c14_i32 : i32 to vector<1x256xi32>
    %79 = arith.cmpi slt, %30, %78 : vector<1x256xi32>
    %80 = arith.andi %77, %79 : vector<1x256xi1>
    %c0_i32_27 = arith.constant 0 : i32
    %81 = vector.broadcast %c0_i32_27 : i32 to vector<1x256xi32>
    %82 = arith.cmpi sge, %29, %81 : vector<1x256xi32>
    %c208_i32 = arith.constant 208 : i32
    %83 = vector.broadcast %c208_i32 : i32 to vector<1x256xi32>
    %84 = arith.cmpi slt, %29, %83 : vector<1x256xi32>
    %85 = arith.andi %82, %84 : vector<1x256xi1>
    %c0_i32_28 = arith.constant 0 : i32
    %86 = vector.broadcast %c0_i32_28 : i32 to vector<1x256xi32>
    %87 = arith.cmpi sge, %30, %86 : vector<1x256xi32>
    %c13_i32 = arith.constant 13 : i32
    %88 = vector.broadcast %c13_i32 : i32 to vector<1x256xi32>
    %89 = arith.cmpi slt, %30, %88 : vector<1x256xi32>
    %90 = arith.andi %87, %89 : vector<1x256xi1>
    %c0_29 = arith.constant 0 : index
    %91 = memref.load %arg1[%c0_29] : memref<98xf32, #tpu.memory_space<smem>>
    %c1 = arith.constant 1 : index
    %92 = memref.load %arg1[%c1] : memref<98xf32, #tpu.memory_space<smem>>
    %c2 = arith.constant 2 : index
    %93 = memref.load %arg1[%c2] : memref<98xf32, #tpu.memory_space<smem>>
    %c3 = arith.constant 3 : index
    %94 = memref.load %arg1[%c3] : memref<98xf32, #tpu.memory_space<smem>>
    %c4 = arith.constant 4 : index
    %95 = memref.load %arg1[%c4] : memref<98xf32, #tpu.memory_space<smem>>
    %c5 = arith.constant 5 : index
    %96 = memref.load %arg1[%c5] : memref<98xf32, #tpu.memory_space<smem>>
    %c6 = arith.constant 6 : index
    %97 = memref.load %arg1[%c6] : memref<98xf32, #tpu.memory_space<smem>>
    %c7 = arith.constant 7 : index
    %98 = memref.load %arg1[%c7] : memref<98xf32, #tpu.memory_space<smem>>
    %c8 = arith.constant 8 : index
    %99 = memref.load %arg1[%c8] : memref<98xf32, #tpu.memory_space<smem>>
    %c9 = arith.constant 9 : index
    %100 = memref.load %arg1[%c9] : memref<98xf32, #tpu.memory_space<smem>>
    %c10 = arith.constant 10 : index
    %101 = memref.load %arg1[%c10] : memref<98xf32, #tpu.memory_space<smem>>
    %c11 = arith.constant 11 : index
    %102 = memref.load %arg1[%c11] : memref<98xf32, #tpu.memory_space<smem>>
    %c12 = arith.constant 12 : index
    %103 = memref.load %arg1[%c12] : memref<98xf32, #tpu.memory_space<smem>>
    %c13 = arith.constant 13 : index
    %104 = memref.load %arg1[%c13] : memref<98xf32, #tpu.memory_space<smem>>
    %c14 = arith.constant 14 : index
    %105 = memref.load %arg1[%c14] : memref<98xf32, #tpu.memory_space<smem>>
    %c15 = arith.constant 15 : index
    %106 = memref.load %arg1[%c15] : memref<98xf32, #tpu.memory_space<smem>>
    %c16 = arith.constant 16 : index
    %107 = memref.load %arg1[%c16] : memref<98xf32, #tpu.memory_space<smem>>
    %c17 = arith.constant 17 : index
    %108 = memref.load %arg1[%c17] : memref<98xf32, #tpu.memory_space<smem>>
    %c18 = arith.constant 18 : index
    %109 = memref.load %arg1[%c18] : memref<98xf32, #tpu.memory_space<smem>>
    %c19 = arith.constant 19 : index
    %110 = memref.load %arg1[%c19] : memref<98xf32, #tpu.memory_space<smem>>
    %c20 = arith.constant 20 : index
    %111 = memref.load %arg1[%c20] : memref<98xf32, #tpu.memory_space<smem>>
    %c21 = arith.constant 21 : index
    %112 = memref.load %arg1[%c21] : memref<98xf32, #tpu.memory_space<smem>>
    %c22 = arith.constant 22 : index
    %113 = memref.load %arg1[%c22] : memref<98xf32, #tpu.memory_space<smem>>
    %c23 = arith.constant 23 : index
    %114 = memref.load %arg1[%c23] : memref<98xf32, #tpu.memory_space<smem>>
    %c24 = arith.constant 24 : index
    %115 = memref.load %arg1[%c24] : memref<98xf32, #tpu.memory_space<smem>>
    %c25 = arith.constant 25 : index
    %116 = memref.load %arg1[%c25] : memref<98xf32, #tpu.memory_space<smem>>
    %c26 = arith.constant 26 : index
    %117 = memref.load %arg1[%c26] : memref<98xf32, #tpu.memory_space<smem>>
    %c27 = arith.constant 27 : index
    %118 = memref.load %arg1[%c27] : memref<98xf32, #tpu.memory_space<smem>>
    %c28 = arith.constant 28 : index
    %119 = memref.load %arg1[%c28] : memref<98xf32, #tpu.memory_space<smem>>
    %c29 = arith.constant 29 : index
    %120 = memref.load %arg1[%c29] : memref<98xf32, #tpu.memory_space<smem>>
    %c30 = arith.constant 30 : index
    %121 = memref.load %arg1[%c30] : memref<98xf32, #tpu.memory_space<smem>>
    %c31 = arith.constant 31 : index
    %122 = memref.load %arg1[%c31] : memref<98xf32, #tpu.memory_space<smem>>
    %c32 = arith.constant 32 : index
    %123 = memref.load %arg1[%c32] : memref<98xf32, #tpu.memory_space<smem>>
    %c33 = arith.constant 33 : index
    %124 = memref.load %arg1[%c33] : memref<98xf32, #tpu.memory_space<smem>>
    %c34 = arith.constant 34 : index
    %125 = memref.load %arg1[%c34] : memref<98xf32, #tpu.memory_space<smem>>
    %c35 = arith.constant 35 : index
    %126 = memref.load %arg1[%c35] : memref<98xf32, #tpu.memory_space<smem>>
    %c36 = arith.constant 36 : index
    %127 = memref.load %arg1[%c36] : memref<98xf32, #tpu.memory_space<smem>>
    %c37 = arith.constant 37 : index
    %128 = memref.load %arg1[%c37] : memref<98xf32, #tpu.memory_space<smem>>
    %c38 = arith.constant 38 : index
    %129 = memref.load %arg1[%c38] : memref<98xf32, #tpu.memory_space<smem>>
    %c39 = arith.constant 39 : index
    %130 = memref.load %arg1[%c39] : memref<98xf32, #tpu.memory_space<smem>>
    %c40 = arith.constant 40 : index
    %131 = memref.load %arg1[%c40] : memref<98xf32, #tpu.memory_space<smem>>
    %c41 = arith.constant 41 : index
    %132 = memref.load %arg1[%c41] : memref<98xf32, #tpu.memory_space<smem>>
    %c42 = arith.constant 42 : index
    %133 = memref.load %arg1[%c42] : memref<98xf32, #tpu.memory_space<smem>>
    %c43 = arith.constant 43 : index
    %134 = memref.load %arg1[%c43] : memref<98xf32, #tpu.memory_space<smem>>
    %c44 = arith.constant 44 : index
    %135 = memref.load %arg1[%c44] : memref<98xf32, #tpu.memory_space<smem>>
    %c45 = arith.constant 45 : index
    %136 = memref.load %arg1[%c45] : memref<98xf32, #tpu.memory_space<smem>>
    %c46 = arith.constant 46 : index
    %137 = memref.load %arg1[%c46] : memref<98xf32, #tpu.memory_space<smem>>
    %c47 = arith.constant 47 : index
    %138 = memref.load %arg1[%c47] : memref<98xf32, #tpu.memory_space<smem>>
    %c48 = arith.constant 48 : index
    %139 = memref.load %arg1[%c48] : memref<98xf32, #tpu.memory_space<smem>>
    %c49 = arith.constant 49 : index
    %140 = memref.load %arg1[%c49] : memref<98xf32, #tpu.memory_space<smem>>
    %c50 = arith.constant 50 : index
    %141 = memref.load %arg1[%c50] : memref<98xf32, #tpu.memory_space<smem>>
    %c51 = arith.constant 51 : index
    %142 = memref.load %arg1[%c51] : memref<98xf32, #tpu.memory_space<smem>>
    %c52 = arith.constant 52 : index
    %143 = memref.load %arg1[%c52] : memref<98xf32, #tpu.memory_space<smem>>
    %c53 = arith.constant 53 : index
    %144 = memref.load %arg1[%c53] : memref<98xf32, #tpu.memory_space<smem>>
    %c54 = arith.constant 54 : index
    %145 = memref.load %arg1[%c54] : memref<98xf32, #tpu.memory_space<smem>>
    %c55 = arith.constant 55 : index
    %146 = memref.load %arg1[%c55] : memref<98xf32, #tpu.memory_space<smem>>
    %c56 = arith.constant 56 : index
    %147 = memref.load %arg1[%c56] : memref<98xf32, #tpu.memory_space<smem>>
    %c57 = arith.constant 57 : index
    %148 = memref.load %arg1[%c57] : memref<98xf32, #tpu.memory_space<smem>>
    %c58 = arith.constant 58 : index
    %149 = memref.load %arg1[%c58] : memref<98xf32, #tpu.memory_space<smem>>
    %c59 = arith.constant 59 : index
    %150 = memref.load %arg1[%c59] : memref<98xf32, #tpu.memory_space<smem>>
    %c60 = arith.constant 60 : index
    %151 = memref.load %arg1[%c60] : memref<98xf32, #tpu.memory_space<smem>>
    %c61 = arith.constant 61 : index
    %152 = memref.load %arg1[%c61] : memref<98xf32, #tpu.memory_space<smem>>
    %c62 = arith.constant 62 : index
    %153 = memref.load %arg1[%c62] : memref<98xf32, #tpu.memory_space<smem>>
    %c63 = arith.constant 63 : index
    %154 = memref.load %arg1[%c63] : memref<98xf32, #tpu.memory_space<smem>>
    %c64 = arith.constant 64 : index
    %155 = memref.load %arg1[%c64] : memref<98xf32, #tpu.memory_space<smem>>
    %c65 = arith.constant 65 : index
    %156 = memref.load %arg1[%c65] : memref<98xf32, #tpu.memory_space<smem>>
    %c66 = arith.constant 66 : index
    %157 = memref.load %arg1[%c66] : memref<98xf32, #tpu.memory_space<smem>>
    %c67 = arith.constant 67 : index
    %158 = memref.load %arg1[%c67] : memref<98xf32, #tpu.memory_space<smem>>
    %c68 = arith.constant 68 : index
    %159 = memref.load %arg1[%c68] : memref<98xf32, #tpu.memory_space<smem>>
    %c69 = arith.constant 69 : index
    %160 = memref.load %arg1[%c69] : memref<98xf32, #tpu.memory_space<smem>>
    %c70 = arith.constant 70 : index
    %161 = memref.load %arg1[%c70] : memref<98xf32, #tpu.memory_space<smem>>
    %c71 = arith.constant 71 : index
    %162 = memref.load %arg1[%c71] : memref<98xf32, #tpu.memory_space<smem>>
    %c72 = arith.constant 72 : index
    %163 = memref.load %arg1[%c72] : memref<98xf32, #tpu.memory_space<smem>>
    %c73 = arith.constant 73 : index
    %164 = memref.load %arg1[%c73] : memref<98xf32, #tpu.memory_space<smem>>
    %c74 = arith.constant 74 : index
    %165 = memref.load %arg1[%c74] : memref<98xf32, #tpu.memory_space<smem>>
    %c75 = arith.constant 75 : index
    %166 = memref.load %arg1[%c75] : memref<98xf32, #tpu.memory_space<smem>>
    %c76 = arith.constant 76 : index
    %167 = memref.load %arg1[%c76] : memref<98xf32, #tpu.memory_space<smem>>
    %c77 = arith.constant 77 : index
    %168 = memref.load %arg1[%c77] : memref<98xf32, #tpu.memory_space<smem>>
    %c78 = arith.constant 78 : index
    %169 = memref.load %arg1[%c78] : memref<98xf32, #tpu.memory_space<smem>>
    %c79 = arith.constant 79 : index
    %170 = memref.load %arg1[%c79] : memref<98xf32, #tpu.memory_space<smem>>
    %c80 = arith.constant 80 : index
    %171 = memref.load %arg1[%c80] : memref<98xf32, #tpu.memory_space<smem>>
    %c81 = arith.constant 81 : index
    %172 = memref.load %arg1[%c81] : memref<98xf32, #tpu.memory_space<smem>>
    %c82 = arith.constant 82 : index
    %173 = memref.load %arg1[%c82] : memref<98xf32, #tpu.memory_space<smem>>
    %c83 = arith.constant 83 : index
    %174 = memref.load %arg1[%c83] : memref<98xf32, #tpu.memory_space<smem>>
    %c84 = arith.constant 84 : index
    %175 = memref.load %arg1[%c84] : memref<98xf32, #tpu.memory_space<smem>>
    %c85 = arith.constant 85 : index
    %176 = memref.load %arg1[%c85] : memref<98xf32, #tpu.memory_space<smem>>
    %c86 = arith.constant 86 : index
    %177 = memref.load %arg1[%c86] : memref<98xf32, #tpu.memory_space<smem>>
    %c87 = arith.constant 87 : index
    %178 = memref.load %arg1[%c87] : memref<98xf32, #tpu.memory_space<smem>>
    %c88 = arith.constant 88 : index
    %179 = memref.load %arg1[%c88] : memref<98xf32, #tpu.memory_space<smem>>
    %c89 = arith.constant 89 : index
    %180 = memref.load %arg1[%c89] : memref<98xf32, #tpu.memory_space<smem>>
    %c90 = arith.constant 90 : index
    %181 = memref.load %arg1[%c90] : memref<98xf32, #tpu.memory_space<smem>>
    %c91 = arith.constant 91 : index
    %182 = memref.load %arg1[%c91] : memref<98xf32, #tpu.memory_space<smem>>
    %c92 = arith.constant 92 : index
    %183 = memref.load %arg1[%c92] : memref<98xf32, #tpu.memory_space<smem>>
    %c93 = arith.constant 93 : index
    %184 = memref.load %arg1[%c93] : memref<98xf32, #tpu.memory_space<smem>>
    %c94 = arith.constant 94 : index
    %185 = memref.load %arg1[%c94] : memref<98xf32, #tpu.memory_space<smem>>
    %c95 = arith.constant 95 : index
    %186 = memref.load %arg1[%c95] : memref<98xf32, #tpu.memory_space<smem>>
    %c96 = arith.constant 96 : index
    %187 = memref.load %arg1[%c96] : memref<98xf32, #tpu.memory_space<smem>>
    %c97 = arith.constant 97 : index
    %188 = memref.load %arg1[%c97] : memref<98xf32, #tpu.memory_space<smem>>
    %cst_30 = arith.constant 0.000000e+00 : f32
    %189 = vector.broadcast %cst_30 : f32 to vector<1x256xf32>
    %cst_31 = arith.constant 0.000000e+00 : f32
    %190 = vector.broadcast %cst_31 : f32 to vector<1x256xf32>
    %c51_i32 = arith.constant 51 : i32
    %191 = tpu.dynamic_rotate %27 by %c51_i32 dim 1 : vector<1x256xf32>, i32 -> vector<1x256xf32>
    %c51_i32_32 = arith.constant 51 : i32
    %192 = tpu.dynamic_rotate %28 by %c51_i32_32 dim 1 : vector<1x256xf32>, i32 -> vector<1x256xf32>
    %193 = vector.broadcast %91 : f32 to vector<1x256xf32>
    %194 = arith.mulf %193, %191 : vector<1x256xf32>
    %195 = vector.broadcast %140 : f32 to vector<1x256xf32>
    %196 = arith.mulf %195, %192 : vector<1x256xf32>
    %197 = arith.addf %194, %196 : vector<1x256xf32>
    %198 = arith.andi %35, %40 : vector<1x256xi1>
    %cst_33 = arith.constant 0.000000e+00 : f32
    %199 = vector.broadcast %cst_33 : f32 to vector<1x256xf32>
    %200 = arith.select %198, %197, %199 : vector<1x256xi1>, vector<1x256xf32>
    %201 = arith.addf %189, %200 : vector<1x256xf32>
    %c50_i32 = arith.constant 50 : i32
    %202 = tpu.dynamic_rotate %27 by %c50_i32 dim 1 : vector<1x256xf32>, i32 -> vector<1x256xf32>
    %c50_i32_34 = arith.constant 50 : i32
    %203 = tpu.dynamic_rotate %28 by %c50_i32_34 dim 1 : vector<1x256xf32>, i32 -> vector<1x256xf32>
    %204 = vector.broadcast %92 : f32 to vector<1x256xf32>
    %205 = arith.mulf %204, %202 : vector<1x256xf32>
    %206 = vector.broadcast %141 : f32 to vector<1x256xf32>
    %207 = arith.mulf %206, %203 : vector<1x256xf32>
    %208 = arith.addf %205, %207 : vector<1x256xf32>
    %209 = arith.andi %35, %50 : vector<1x256xi1>
    %cst_35 = arith.constant 0.000000e+00 : f32
    %210 = vector.broadcast %cst_35 : f32 to vector<1x256xf32>
    %211 = arith.select %209, %208, %210 : vector<1x256xi1>, vector<1x256xf32>
    %212 = arith.addf %190, %211 : vector<1x256xf32>
    %c49_i32 = arith.constant 49 : i32
    %213 = tpu.dynamic_rotate %27 by %c49_i32 dim 1 : vector<1x256xf32>, i32 -> vector<1x256xf32>
    %c49_i32_36 = arith.constant 49 : i32
    %214 = tpu.dynamic_rotate %28 by %c49_i32_36 dim 1 : vector<1x256xf32>, i32 -> vector<1x256xf32>
    %215 = vector.broadcast %93 : f32 to vector<1x256xf32>
    %216 = arith.mulf %215, %213 : vector<1x256xf32>
    %217 = vector.broadcast %142 : f32 to vector<1x256xf32>
    %218 = arith.mulf %217, %214 : vector<1x256xf32>
    %219 = arith.addf %216, %218 : vector<1x256xf32>
    %220 = arith.andi %35, %60 : vector<1x256xi1>
    %cst_37 = arith.constant 0.000000e+00 : f32
    %221 = vector.broadcast %cst_37 : f32 to vector<1x256xf32>
    %222 = arith.select %220, %219, %221 : vector<1x256xi1>, vector<1x256xf32>
    %223 = arith.addf %201, %222 : vector<1x256xf32>
    %c48_i32_38 = arith.constant 48 : i32
    %224 = tpu.dynamic_rotate %27 by %c48_i32_38 dim 1 : vector<1x256xf32>, i32 -> vector<1x256xf32>
    %c48_i32_39 = arith.constant 48 : i32
    %225 = tpu.dynamic_rotate %28 by %c48_i32_39 dim 1 : vector<1x256xf32>, i32 -> vector<1x256xf32>
    %226 = vector.broadcast %94 : f32 to vector<1x256xf32>
    %227 = arith.mulf %226, %224 : vector<1x256xf32>
    %228 = vector.broadcast %143 : f32 to vector<1x256xf32>
    %229 = arith.mulf %228, %225 : vector<1x256xf32>
    %230 = arith.addf %227, %229 : vector<1x256xf32>
    %cst_40 = arith.constant 0.000000e+00 : f32
    %231 = vector.broadcast %cst_40 : f32 to vector<1x256xf32>
    %232 = arith.select %35, %230, %231 : vector<1x256xi1>, vector<1x256xf32>
    %233 = arith.addf %212, %232 : vector<1x256xf32>
    %c47_i32 = arith.constant 47 : i32
    %234 = tpu.dynamic_rotate %27 by %c47_i32 dim 1 : vector<1x256xf32>, i32 -> vector<1x256xf32>
    %c47_i32_41 = arith.constant 47 : i32
    %235 = tpu.dynamic_rotate %28 by %c47_i32_41 dim 1 : vector<1x256xf32>, i32 -> vector<1x256xf32>
    %236 = vector.broadcast %95 : f32 to vector<1x256xf32>
    %237 = arith.mulf %236, %234 : vector<1x256xf32>
    %238 = vector.broadcast %144 : f32 to vector<1x256xf32>
    %239 = arith.mulf %238, %235 : vector<1x256xf32>
    %240 = arith.addf %237, %239 : vector<1x256xf32>
    %241 = arith.andi %35, %70 : vector<1x256xi1>
    %cst_42 = arith.constant 0.000000e+00 : f32
    %242 = vector.broadcast %cst_42 : f32 to vector<1x256xf32>
    %243 = arith.select %241, %240, %242 : vector<1x256xi1>, vector<1x256xf32>
    %244 = arith.addf %223, %243 : vector<1x256xf32>
    %c46_i32 = arith.constant 46 : i32
    %245 = tpu.dynamic_rotate %27 by %c46_i32 dim 1 : vector<1x256xf32>, i32 -> vector<1x256xf32>
    %c46_i32_43 = arith.constant 46 : i32
    %246 = tpu.dynamic_rotate %28 by %c46_i32_43 dim 1 : vector<1x256xf32>, i32 -> vector<1x256xf32>
    %247 = vector.broadcast %96 : f32 to vector<1x256xf32>
    %248 = arith.mulf %247, %245 : vector<1x256xf32>
    %249 = vector.broadcast %145 : f32 to vector<1x256xf32>
    %250 = arith.mulf %249, %246 : vector<1x256xf32>
    %251 = arith.addf %248, %250 : vector<1x256xf32>
    %252 = arith.andi %35, %80 : vector<1x256xi1>
    %cst_44 = arith.constant 0.000000e+00 : f32
    %253 = vector.broadcast %cst_44 : f32 to vector<1x256xf32>
    %254 = arith.select %252, %251, %253 : vector<1x256xi1>, vector<1x256xf32>
    %255 = arith.addf %233, %254 : vector<1x256xf32>
    %c45_i32 = arith.constant 45 : i32
    %256 = tpu.dynamic_rotate %27 by %c45_i32 dim 1 : vector<1x256xf32>, i32 -> vector<1x256xf32>
    %c45_i32_45 = arith.constant 45 : i32
    %257 = tpu.dynamic_rotate %28 by %c45_i32_45 dim 1 : vector<1x256xf32>, i32 -> vector<1x256xf32>
    %258 = vector.broadcast %97 : f32 to vector<1x256xf32>
    %259 = arith.mulf %258, %256 : vector<1x256xf32>
    %260 = vector.broadcast %146 : f32 to vector<1x256xf32>
    %261 = arith.mulf %260, %257 : vector<1x256xf32>
    %262 = arith.addf %259, %261 : vector<1x256xf32>
    %263 = arith.andi %35, %90 : vector<1x256xi1>
    %cst_46 = arith.constant 0.000000e+00 : f32
    %264 = vector.broadcast %cst_46 : f32 to vector<1x256xf32>
    %265 = arith.select %263, %262, %264 : vector<1x256xi1>, vector<1x256xf32>
    %266 = arith.addf %244, %265 : vector<1x256xf32>
    %c35_i32 = arith.constant 35 : i32
    %267 = tpu.dynamic_rotate %27 by %c35_i32 dim 1 : vector<1x256xf32>, i32 -> vector<1x256xf32>
    %c35_i32_47 = arith.constant 35 : i32
    %268 = tpu.dynamic_rotate %28 by %c35_i32_47 dim 1 : vector<1x256xf32>, i32 -> vector<1x256xf32>
    %269 = vector.broadcast %98 : f32 to vector<1x256xf32>
    %270 = arith.mulf %269, %267 : vector<1x256xf32>
    %271 = vector.broadcast %147 : f32 to vector<1x256xf32>
    %272 = arith.mulf %271, %268 : vector<1x256xf32>
    %273 = arith.addf %270, %272 : vector<1x256xf32>
    %274 = arith.andi %45, %40 : vector<1x256xi1>
    %cst_48 = arith.constant 0.000000e+00 : f32
    %275 = vector.broadcast %cst_48 : f32 to vector<1x256xf32>
    %276 = arith.select %274, %273, %275 : vector<1x256xi1>, vector<1x256xf32>
    %277 = arith.addf %255, %276 : vector<1x256xf32>
    %c34_i32 = arith.constant 34 : i32
    %278 = tpu.dynamic_rotate %27 by %c34_i32 dim 1 : vector<1x256xf32>, i32 -> vector<1x256xf32>
    %c34_i32_49 = arith.constant 34 : i32
    %279 = tpu.dynamic_rotate %28 by %c34_i32_49 dim 1 : vector<1x256xf32>, i32 -> vector<1x256xf32>
    %280 = vector.broadcast %99 : f32 to vector<1x256xf32>
    %281 = arith.mulf %280, %278 : vector<1x256xf32>
    %282 = vector.broadcast %148 : f32 to vector<1x256xf32>
    %283 = arith.mulf %282, %279 : vector<1x256xf32>
    %284 = arith.addf %281, %283 : vector<1x256xf32>
    %285 = arith.andi %45, %50 : vector<1x256xi1>
    %cst_50 = arith.constant 0.000000e+00 : f32
    %286 = vector.broadcast %cst_50 : f32 to vector<1x256xf32>
    %287 = arith.select %285, %284, %286 : vector<1x256xi1>, vector<1x256xf32>
    %288 = arith.addf %266, %287 : vector<1x256xf32>
    %c33_i32 = arith.constant 33 : i32
    %289 = tpu.dynamic_rotate %27 by %c33_i32 dim 1 : vector<1x256xf32>, i32 -> vector<1x256xf32>
    %c33_i32_51 = arith.constant 33 : i32
    %290 = tpu.dynamic_rotate %28 by %c33_i32_51 dim 1 : vector<1x256xf32>, i32 -> vector<1x256xf32>
    %291 = vector.broadcast %100 : f32 to vector<1x256xf32>
    %292 = arith.mulf %291, %289 : vector<1x256xf32>
    %293 = vector.broadcast %149 : f32 to vector<1x256xf32>
    %294 = arith.mulf %293, %290 : vector<1x256xf32>
    %295 = arith.addf %292, %294 : vector<1x256xf32>
    %296 = arith.andi %45, %60 : vector<1x256xi1>
    %cst_52 = arith.constant 0.000000e+00 : f32
    %297 = vector.broadcast %cst_52 : f32 to vector<1x256xf32>
    %298 = arith.select %296, %295, %297 : vector<1x256xi1>, vector<1x256xf32>
    %299 = arith.addf %277, %298 : vector<1x256xf32>
    %c32_i32_53 = arith.constant 32 : i32
    %300 = tpu.dynamic_rotate %27 by %c32_i32_53 dim 1 : vector<1x256xf32>, i32 -> vector<1x256xf32>
    %c32_i32_54 = arith.constant 32 : i32
    %301 = tpu.dynamic_rotate %28 by %c32_i32_54 dim 1 : vector<1x256xf32>, i32 -> vector<1x256xf32>
    %302 = vector.broadcast %101 : f32 to vector<1x256xf32>
    %303 = arith.mulf %302, %300 : vector<1x256xf32>
    %304 = vector.broadcast %150 : f32 to vector<1x256xf32>
    %305 = arith.mulf %304, %301 : vector<1x256xf32>
    %306 = arith.addf %303, %305 : vector<1x256xf32>
    %cst_55 = arith.constant 0.000000e+00 : f32
    %307 = vector.broadcast %cst_55 : f32 to vector<1x256xf32>
    %308 = arith.select %45, %306, %307 : vector<1x256xi1>, vector<1x256xf32>
    %309 = arith.addf %288, %308 : vector<1x256xf32>
    %c31_i32 = arith.constant 31 : i32
    %310 = tpu.dynamic_rotate %27 by %c31_i32 dim 1 : vector<1x256xf32>, i32 -> vector<1x256xf32>
    %c31_i32_56 = arith.constant 31 : i32
    %311 = tpu.dynamic_rotate %28 by %c31_i32_56 dim 1 : vector<1x256xf32>, i32 -> vector<1x256xf32>
    %312 = vector.broadcast %102 : f32 to vector<1x256xf32>
    %313 = arith.mulf %312, %310 : vector<1x256xf32>
    %314 = vector.broadcast %151 : f32 to vector<1x256xf32>
    %315 = arith.mulf %314, %311 : vector<1x256xf32>
    %316 = arith.addf %313, %315 : vector<1x256xf32>
    %317 = arith.andi %45, %70 : vector<1x256xi1>
    %cst_57 = arith.constant 0.000000e+00 : f32
    %318 = vector.broadcast %cst_57 : f32 to vector<1x256xf32>
    %319 = arith.select %317, %316, %318 : vector<1x256xi1>, vector<1x256xf32>
    %320 = arith.addf %299, %319 : vector<1x256xf32>
    %c30_i32 = arith.constant 30 : i32
    %321 = tpu.dynamic_rotate %27 by %c30_i32 dim 1 : vector<1x256xf32>, i32 -> vector<1x256xf32>
    %c30_i32_58 = arith.constant 30 : i32
    %322 = tpu.dynamic_rotate %28 by %c30_i32_58 dim 1 : vector<1x256xf32>, i32 -> vector<1x256xf32>
    %323 = vector.broadcast %103 : f32 to vector<1x256xf32>
    %324 = arith.mulf %323, %321 : vector<1x256xf32>
    %325 = vector.broadcast %152 : f32 to vector<1x256xf32>
    %326 = arith.mulf %325, %322 : vector<1x256xf32>
    %327 = arith.addf %324, %326 : vector<1x256xf32>
    %328 = arith.andi %45, %80 : vector<1x256xi1>
    %cst_59 = arith.constant 0.000000e+00 : f32
    %329 = vector.broadcast %cst_59 : f32 to vector<1x256xf32>
    %330 = arith.select %328, %327, %329 : vector<1x256xi1>, vector<1x256xf32>
    %331 = arith.addf %309, %330 : vector<1x256xf32>
    %c29_i32 = arith.constant 29 : i32
    %332 = tpu.dynamic_rotate %27 by %c29_i32 dim 1 : vector<1x256xf32>, i32 -> vector<1x256xf32>
    %c29_i32_60 = arith.constant 29 : i32
    %333 = tpu.dynamic_rotate %28 by %c29_i32_60 dim 1 : vector<1x256xf32>, i32 -> vector<1x256xf32>
    %334 = vector.broadcast %104 : f32 to vector<1x256xf32>
    %335 = arith.mulf %334, %332 : vector<1x256xf32>
    %336 = vector.broadcast %153 : f32 to vector<1x256xf32>
    %337 = arith.mulf %336, %333 : vector<1x256xf32>
    %338 = arith.addf %335, %337 : vector<1x256xf32>
    %339 = arith.andi %45, %90 : vector<1x256xi1>
    %cst_61 = arith.constant 0.000000e+00 : f32
    %340 = vector.broadcast %cst_61 : f32 to vector<1x256xf32>
    %341 = arith.select %339, %338, %340 : vector<1x256xi1>, vector<1x256xf32>
    %342 = arith.addf %320, %341 : vector<1x256xf32>
    %c19_i32 = arith.constant 19 : i32
    %343 = tpu.dynamic_rotate %27 by %c19_i32 dim 1 : vector<1x256xf32>, i32 -> vector<1x256xf32>
    %c19_i32_62 = arith.constant 19 : i32
    %344 = tpu.dynamic_rotate %28 by %c19_i32_62 dim 1 : vector<1x256xf32>, i32 -> vector<1x256xf32>
    %345 = vector.broadcast %105 : f32 to vector<1x256xf32>
    %346 = arith.mulf %345, %343 : vector<1x256xf32>
    %347 = vector.broadcast %154 : f32 to vector<1x256xf32>
    %348 = arith.mulf %347, %344 : vector<1x256xf32>
    %349 = arith.addf %346, %348 : vector<1x256xf32>
    %350 = arith.andi %55, %40 : vector<1x256xi1>
    %cst_63 = arith.constant 0.000000e+00 : f32
    %351 = vector.broadcast %cst_63 : f32 to vector<1x256xf32>
    %352 = arith.select %350, %349, %351 : vector<1x256xi1>, vector<1x256xf32>
    %353 = arith.addf %331, %352 : vector<1x256xf32>
    %c18_i32 = arith.constant 18 : i32
    %354 = tpu.dynamic_rotate %27 by %c18_i32 dim 1 : vector<1x256xf32>, i32 -> vector<1x256xf32>
    %c18_i32_64 = arith.constant 18 : i32
    %355 = tpu.dynamic_rotate %28 by %c18_i32_64 dim 1 : vector<1x256xf32>, i32 -> vector<1x256xf32>
    %356 = vector.broadcast %106 : f32 to vector<1x256xf32>
    %357 = arith.mulf %356, %354 : vector<1x256xf32>
    %358 = vector.broadcast %155 : f32 to vector<1x256xf32>
    %359 = arith.mulf %358, %355 : vector<1x256xf32>
    %360 = arith.addf %357, %359 : vector<1x256xf32>
    %361 = arith.andi %55, %50 : vector<1x256xi1>
    %cst_65 = arith.constant 0.000000e+00 : f32
    %362 = vector.broadcast %cst_65 : f32 to vector<1x256xf32>
    %363 = arith.select %361, %360, %362 : vector<1x256xi1>, vector<1x256xf32>
    %364 = arith.addf %342, %363 : vector<1x256xf32>
    %c17_i32 = arith.constant 17 : i32
    %365 = tpu.dynamic_rotate %27 by %c17_i32 dim 1 : vector<1x256xf32>, i32 -> vector<1x256xf32>
    %c17_i32_66 = arith.constant 17 : i32
    %366 = tpu.dynamic_rotate %28 by %c17_i32_66 dim 1 : vector<1x256xf32>, i32 -> vector<1x256xf32>
    %367 = vector.broadcast %107 : f32 to vector<1x256xf32>
    %368 = arith.mulf %367, %365 : vector<1x256xf32>
    %369 = vector.broadcast %156 : f32 to vector<1x256xf32>
    %370 = arith.mulf %369, %366 : vector<1x256xf32>
    %371 = arith.addf %368, %370 : vector<1x256xf32>
    %372 = arith.andi %55, %60 : vector<1x256xi1>
    %cst_67 = arith.constant 0.000000e+00 : f32
    %373 = vector.broadcast %cst_67 : f32 to vector<1x256xf32>
    %374 = arith.select %372, %371, %373 : vector<1x256xi1>, vector<1x256xf32>
    %375 = arith.addf %353, %374 : vector<1x256xf32>
    %c16_i32_68 = arith.constant 16 : i32
    %376 = tpu.dynamic_rotate %27 by %c16_i32_68 dim 1 : vector<1x256xf32>, i32 -> vector<1x256xf32>
    %c16_i32_69 = arith.constant 16 : i32
    %377 = tpu.dynamic_rotate %28 by %c16_i32_69 dim 1 : vector<1x256xf32>, i32 -> vector<1x256xf32>
    %378 = vector.broadcast %108 : f32 to vector<1x256xf32>
    %379 = arith.mulf %378, %376 : vector<1x256xf32>
    %380 = vector.broadcast %157 : f32 to vector<1x256xf32>
    %381 = arith.mulf %380, %377 : vector<1x256xf32>
    %382 = arith.addf %379, %381 : vector<1x256xf32>
    %cst_70 = arith.constant 0.000000e+00 : f32
    %383 = vector.broadcast %cst_70 : f32 to vector<1x256xf32>
    %384 = arith.select %55, %382, %383 : vector<1x256xi1>, vector<1x256xf32>
    %385 = arith.addf %364, %384 : vector<1x256xf32>
    %c15_i32_71 = arith.constant 15 : i32
    %386 = tpu.dynamic_rotate %27 by %c15_i32_71 dim 1 : vector<1x256xf32>, i32 -> vector<1x256xf32>
    %c15_i32_72 = arith.constant 15 : i32
    %387 = tpu.dynamic_rotate %28 by %c15_i32_72 dim 1 : vector<1x256xf32>, i32 -> vector<1x256xf32>
    %388 = vector.broadcast %109 : f32 to vector<1x256xf32>
    %389 = arith.mulf %388, %386 : vector<1x256xf32>
    %390 = vector.broadcast %158 : f32 to vector<1x256xf32>
    %391 = arith.mulf %390, %387 : vector<1x256xf32>
    %392 = arith.addf %389, %391 : vector<1x256xf32>
    %393 = arith.andi %55, %70 : vector<1x256xi1>
    %cst_73 = arith.constant 0.000000e+00 : f32
    %394 = vector.broadcast %cst_73 : f32 to vector<1x256xf32>
    %395 = arith.select %393, %392, %394 : vector<1x256xi1>, vector<1x256xf32>
    %396 = arith.addf %375, %395 : vector<1x256xf32>
    %c14_i32_74 = arith.constant 14 : i32
    %397 = tpu.dynamic_rotate %27 by %c14_i32_74 dim 1 : vector<1x256xf32>, i32 -> vector<1x256xf32>
    %c14_i32_75 = arith.constant 14 : i32
    %398 = tpu.dynamic_rotate %28 by %c14_i32_75 dim 1 : vector<1x256xf32>, i32 -> vector<1x256xf32>
    %399 = vector.broadcast %110 : f32 to vector<1x256xf32>
    %400 = arith.mulf %399, %397 : vector<1x256xf32>
    %401 = vector.broadcast %159 : f32 to vector<1x256xf32>
    %402 = arith.mulf %401, %398 : vector<1x256xf32>
    %403 = arith.addf %400, %402 : vector<1x256xf32>
    %404 = arith.andi %55, %80 : vector<1x256xi1>
    %cst_76 = arith.constant 0.000000e+00 : f32
    %405 = vector.broadcast %cst_76 : f32 to vector<1x256xf32>
    %406 = arith.select %404, %403, %405 : vector<1x256xi1>, vector<1x256xf32>
    %407 = arith.addf %385, %406 : vector<1x256xf32>
    %c13_i32_77 = arith.constant 13 : i32
    %408 = tpu.dynamic_rotate %27 by %c13_i32_77 dim 1 : vector<1x256xf32>, i32 -> vector<1x256xf32>
    %c13_i32_78 = arith.constant 13 : i32
    %409 = tpu.dynamic_rotate %28 by %c13_i32_78 dim 1 : vector<1x256xf32>, i32 -> vector<1x256xf32>
    %410 = vector.broadcast %111 : f32 to vector<1x256xf32>
    %411 = arith.mulf %410, %408 : vector<1x256xf32>
    %412 = vector.broadcast %160 : f32 to vector<1x256xf32>
    %413 = arith.mulf %412, %409 : vector<1x256xf32>
    %414 = arith.addf %411, %413 : vector<1x256xf32>
    %415 = arith.andi %55, %90 : vector<1x256xi1>
    %cst_79 = arith.constant 0.000000e+00 : f32
    %416 = vector.broadcast %cst_79 : f32 to vector<1x256xf32>
    %417 = arith.select %415, %414, %416 : vector<1x256xi1>, vector<1x256xf32>
    %418 = arith.addf %396, %417 : vector<1x256xf32>
    %c3_i32_80 = arith.constant 3 : i32
    %419 = tpu.dynamic_rotate %27 by %c3_i32_80 dim 1 : vector<1x256xf32>, i32 -> vector<1x256xf32>
    %c3_i32_81 = arith.constant 3 : i32
    %420 = tpu.dynamic_rotate %28 by %c3_i32_81 dim 1 : vector<1x256xf32>, i32 -> vector<1x256xf32>
    %421 = vector.broadcast %112 : f32 to vector<1x256xf32>
    %422 = arith.mulf %421, %419 : vector<1x256xf32>
    %423 = vector.broadcast %161 : f32 to vector<1x256xf32>
    %424 = arith.mulf %423, %420 : vector<1x256xf32>
    %425 = arith.addf %422, %424 : vector<1x256xf32>
    %cst_82 = arith.constant 0.000000e+00 : f32
    %426 = vector.broadcast %cst_82 : f32 to vector<1x256xf32>
    %427 = arith.select %40, %425, %426 : vector<1x256xi1>, vector<1x256xf32>
    %428 = arith.addf %407, %427 : vector<1x256xf32>
    %c2_i32_83 = arith.constant 2 : i32
    %429 = tpu.dynamic_rotate %27 by %c2_i32_83 dim 1 : vector<1x256xf32>, i32 -> vector<1x256xf32>
    %c2_i32_84 = arith.constant 2 : i32
    %430 = tpu.dynamic_rotate %28 by %c2_i32_84 dim 1 : vector<1x256xf32>, i32 -> vector<1x256xf32>
    %431 = vector.broadcast %113 : f32 to vector<1x256xf32>
    %432 = arith.mulf %431, %429 : vector<1x256xf32>
    %433 = vector.broadcast %162 : f32 to vector<1x256xf32>
    %434 = arith.mulf %433, %430 : vector<1x256xf32>
    %435 = arith.addf %432, %434 : vector<1x256xf32>
    %cst_85 = arith.constant 0.000000e+00 : f32
    %436 = vector.broadcast %cst_85 : f32 to vector<1x256xf32>
    %437 = arith.select %50, %435, %436 : vector<1x256xi1>, vector<1x256xf32>
    %438 = arith.addf %418, %437 : vector<1x256xf32>
    %c1_i32_86 = arith.constant 1 : i32
    %439 = tpu.dynamic_rotate %27 by %c1_i32_86 dim 1 : vector<1x256xf32>, i32 -> vector<1x256xf32>
    %c1_i32_87 = arith.constant 1 : i32
    %440 = tpu.dynamic_rotate %28 by %c1_i32_87 dim 1 : vector<1x256xf32>, i32 -> vector<1x256xf32>
    %441 = vector.broadcast %114 : f32 to vector<1x256xf32>
    %442 = arith.mulf %441, %439 : vector<1x256xf32>
    %443 = vector.broadcast %163 : f32 to vector<1x256xf32>
    %444 = arith.mulf %443, %440 : vector<1x256xf32>
    %445 = arith.addf %442, %444 : vector<1x256xf32>
    %cst_88 = arith.constant 0.000000e+00 : f32
    %446 = vector.broadcast %cst_88 : f32 to vector<1x256xf32>
    %447 = arith.select %60, %445, %446 : vector<1x256xi1>, vector<1x256xf32>
    %448 = arith.addf %428, %447 : vector<1x256xf32>
    %449 = vector.broadcast %115 : f32 to vector<1x256xf32>
    %450 = arith.mulf %449, %27 : vector<1x256xf32>
    %451 = vector.broadcast %164 : f32 to vector<1x256xf32>
    %452 = arith.mulf %451, %28 : vector<1x256xf32>
    %453 = arith.addf %450, %452 : vector<1x256xf32>
    %454 = arith.addf %438, %453 : vector<1x256xf32>
    %c255_i32 = arith.constant 255 : i32
    %455 = tpu.dynamic_rotate %27 by %c255_i32 dim 1 : vector<1x256xf32>, i32 -> vector<1x256xf32>
    %c255_i32_89 = arith.constant 255 : i32
    %456 = tpu.dynamic_rotate %28 by %c255_i32_89 dim 1 : vector<1x256xf32>, i32 -> vector<1x256xf32>
    %457 = vector.broadcast %116 : f32 to vector<1x256xf32>
    %458 = arith.mulf %457, %455 : vector<1x256xf32>
    %459 = vector.broadcast %165 : f32 to vector<1x256xf32>
    %460 = arith.mulf %459, %456 : vector<1x256xf32>
    %461 = arith.addf %458, %460 : vector<1x256xf32>
    %cst_90 = arith.constant 0.000000e+00 : f32
    %462 = vector.broadcast %cst_90 : f32 to vector<1x256xf32>
    %463 = arith.select %70, %461, %462 : vector<1x256xi1>, vector<1x256xf32>
    %464 = arith.addf %448, %463 : vector<1x256xf32>
    %c254_i32 = arith.constant 254 : i32
    %465 = tpu.dynamic_rotate %27 by %c254_i32 dim 1 : vector<1x256xf32>, i32 -> vector<1x256xf32>
    %c254_i32_91 = arith.constant 254 : i32
    %466 = tpu.dynamic_rotate %28 by %c254_i32_91 dim 1 : vector<1x256xf32>, i32 -> vector<1x256xf32>
    %467 = vector.broadcast %117 : f32 to vector<1x256xf32>
    %468 = arith.mulf %467, %465 : vector<1x256xf32>
    %469 = vector.broadcast %166 : f32 to vector<1x256xf32>
    %470 = arith.mulf %469, %466 : vector<1x256xf32>
    %471 = arith.addf %468, %470 : vector<1x256xf32>
    %cst_92 = arith.constant 0.000000e+00 : f32
    %472 = vector.broadcast %cst_92 : f32 to vector<1x256xf32>
    %473 = arith.select %80, %471, %472 : vector<1x256xi1>, vector<1x256xf32>
    %474 = arith.addf %454, %473 : vector<1x256xf32>
    %c253_i32 = arith.constant 253 : i32
    %475 = tpu.dynamic_rotate %27 by %c253_i32 dim 1 : vector<1x256xf32>, i32 -> vector<1x256xf32>
    %c253_i32_93 = arith.constant 253 : i32
    %476 = tpu.dynamic_rotate %28 by %c253_i32_93 dim 1 : vector<1x256xf32>, i32 -> vector<1x256xf32>
    %477 = vector.broadcast %118 : f32 to vector<1x256xf32>
    %478 = arith.mulf %477, %475 : vector<1x256xf32>
    %479 = vector.broadcast %167 : f32 to vector<1x256xf32>
    %480 = arith.mulf %479, %476 : vector<1x256xf32>
    %481 = arith.addf %478, %480 : vector<1x256xf32>
    %cst_94 = arith.constant 0.000000e+00 : f32
    %482 = vector.broadcast %cst_94 : f32 to vector<1x256xf32>
    %483 = arith.select %90, %481, %482 : vector<1x256xi1>, vector<1x256xf32>
    %484 = arith.addf %464, %483 : vector<1x256xf32>
    %c243_i32 = arith.constant 243 : i32
    %485 = tpu.dynamic_rotate %27 by %c243_i32 dim 1 : vector<1x256xf32>, i32 -> vector<1x256xf32>
    %c243_i32_95 = arith.constant 243 : i32
    %486 = tpu.dynamic_rotate %28 by %c243_i32_95 dim 1 : vector<1x256xf32>, i32 -> vector<1x256xf32>
    %487 = vector.broadcast %119 : f32 to vector<1x256xf32>
    %488 = arith.mulf %487, %485 : vector<1x256xf32>
    %489 = vector.broadcast %168 : f32 to vector<1x256xf32>
    %490 = arith.mulf %489, %486 : vector<1x256xf32>
    %491 = arith.addf %488, %490 : vector<1x256xf32>
    %492 = arith.andi %65, %40 : vector<1x256xi1>
    %cst_96 = arith.constant 0.000000e+00 : f32
    %493 = vector.broadcast %cst_96 : f32 to vector<1x256xf32>
    %494 = arith.select %492, %491, %493 : vector<1x256xi1>, vector<1x256xf32>
    %495 = arith.addf %474, %494 : vector<1x256xf32>
    %c242_i32 = arith.constant 242 : i32
    %496 = tpu.dynamic_rotate %27 by %c242_i32 dim 1 : vector<1x256xf32>, i32 -> vector<1x256xf32>
    %c242_i32_97 = arith.constant 242 : i32
    %497 = tpu.dynamic_rotate %28 by %c242_i32_97 dim 1 : vector<1x256xf32>, i32 -> vector<1x256xf32>
    %498 = vector.broadcast %120 : f32 to vector<1x256xf32>
    %499 = arith.mulf %498, %496 : vector<1x256xf32>
    %500 = vector.broadcast %169 : f32 to vector<1x256xf32>
    %501 = arith.mulf %500, %497 : vector<1x256xf32>
    %502 = arith.addf %499, %501 : vector<1x256xf32>
    %503 = arith.andi %65, %50 : vector<1x256xi1>
    %cst_98 = arith.constant 0.000000e+00 : f32
    %504 = vector.broadcast %cst_98 : f32 to vector<1x256xf32>
    %505 = arith.select %503, %502, %504 : vector<1x256xi1>, vector<1x256xf32>
    %506 = arith.addf %484, %505 : vector<1x256xf32>
    %c241_i32 = arith.constant 241 : i32
    %507 = tpu.dynamic_rotate %27 by %c241_i32 dim 1 : vector<1x256xf32>, i32 -> vector<1x256xf32>
    %c241_i32_99 = arith.constant 241 : i32
    %508 = tpu.dynamic_rotate %28 by %c241_i32_99 dim 1 : vector<1x256xf32>, i32 -> vector<1x256xf32>
    %509 = vector.broadcast %121 : f32 to vector<1x256xf32>
    %510 = arith.mulf %509, %507 : vector<1x256xf32>
    %511 = vector.broadcast %170 : f32 to vector<1x256xf32>
    %512 = arith.mulf %511, %508 : vector<1x256xf32>
    %513 = arith.addf %510, %512 : vector<1x256xf32>
    %514 = arith.andi %65, %60 : vector<1x256xi1>
    %cst_100 = arith.constant 0.000000e+00 : f32
    %515 = vector.broadcast %cst_100 : f32 to vector<1x256xf32>
    %516 = arith.select %514, %513, %515 : vector<1x256xi1>, vector<1x256xf32>
    %517 = arith.addf %495, %516 : vector<1x256xf32>
    %c240_i32_101 = arith.constant 240 : i32
    %518 = tpu.dynamic_rotate %27 by %c240_i32_101 dim 1 : vector<1x256xf32>, i32 -> vector<1x256xf32>
    %c240_i32_102 = arith.constant 240 : i32
    %519 = tpu.dynamic_rotate %28 by %c240_i32_102 dim 1 : vector<1x256xf32>, i32 -> vector<1x256xf32>
    %520 = vector.broadcast %122 : f32 to vector<1x256xf32>
    %521 = arith.mulf %520, %518 : vector<1x256xf32>
    %522 = vector.broadcast %171 : f32 to vector<1x256xf32>
    %523 = arith.mulf %522, %519 : vector<1x256xf32>
    %524 = arith.addf %521, %523 : vector<1x256xf32>
    %cst_103 = arith.constant 0.000000e+00 : f32
    %525 = vector.broadcast %cst_103 : f32 to vector<1x256xf32>
    %526 = arith.select %65, %524, %525 : vector<1x256xi1>, vector<1x256xf32>
    %527 = arith.addf %506, %526 : vector<1x256xf32>
    %c239_i32 = arith.constant 239 : i32
    %528 = tpu.dynamic_rotate %27 by %c239_i32 dim 1 : vector<1x256xf32>, i32 -> vector<1x256xf32>
    %c239_i32_104 = arith.constant 239 : i32
    %529 = tpu.dynamic_rotate %28 by %c239_i32_104 dim 1 : vector<1x256xf32>, i32 -> vector<1x256xf32>
    %530 = vector.broadcast %123 : f32 to vector<1x256xf32>
    %531 = arith.mulf %530, %528 : vector<1x256xf32>
    %532 = vector.broadcast %172 : f32 to vector<1x256xf32>
    %533 = arith.mulf %532, %529 : vector<1x256xf32>
    %534 = arith.addf %531, %533 : vector<1x256xf32>
    %535 = arith.andi %65, %70 : vector<1x256xi1>
    %cst_105 = arith.constant 0.000000e+00 : f32
    %536 = vector.broadcast %cst_105 : f32 to vector<1x256xf32>
    %537 = arith.select %535, %534, %536 : vector<1x256xi1>, vector<1x256xf32>
    %538 = arith.addf %517, %537 : vector<1x256xf32>
    %c238_i32 = arith.constant 238 : i32
    %539 = tpu.dynamic_rotate %27 by %c238_i32 dim 1 : vector<1x256xf32>, i32 -> vector<1x256xf32>
    %c238_i32_106 = arith.constant 238 : i32
    %540 = tpu.dynamic_rotate %28 by %c238_i32_106 dim 1 : vector<1x256xf32>, i32 -> vector<1x256xf32>
    %541 = vector.broadcast %124 : f32 to vector<1x256xf32>
    %542 = arith.mulf %541, %539 : vector<1x256xf32>
    %543 = vector.broadcast %173 : f32 to vector<1x256xf32>
    %544 = arith.mulf %543, %540 : vector<1x256xf32>
    %545 = arith.addf %542, %544 : vector<1x256xf32>
    %546 = arith.andi %65, %80 : vector<1x256xi1>
    %cst_107 = arith.constant 0.000000e+00 : f32
    %547 = vector.broadcast %cst_107 : f32 to vector<1x256xf32>
    %548 = arith.select %546, %545, %547 : vector<1x256xi1>, vector<1x256xf32>
    %549 = arith.addf %527, %548 : vector<1x256xf32>
    %c237_i32 = arith.constant 237 : i32
    %550 = tpu.dynamic_rotate %27 by %c237_i32 dim 1 : vector<1x256xf32>, i32 -> vector<1x256xf32>
    %c237_i32_108 = arith.constant 237 : i32
    %551 = tpu.dynamic_rotate %28 by %c237_i32_108 dim 1 : vector<1x256xf32>, i32 -> vector<1x256xf32>
    %552 = vector.broadcast %125 : f32 to vector<1x256xf32>
    %553 = arith.mulf %552, %550 : vector<1x256xf32>
    %554 = vector.broadcast %174 : f32 to vector<1x256xf32>
    %555 = arith.mulf %554, %551 : vector<1x256xf32>
    %556 = arith.addf %553, %555 : vector<1x256xf32>
    %557 = arith.andi %65, %90 : vector<1x256xi1>
    %cst_109 = arith.constant 0.000000e+00 : f32
    %558 = vector.broadcast %cst_109 : f32 to vector<1x256xf32>
    %559 = arith.select %557, %556, %558 : vector<1x256xi1>, vector<1x256xf32>
    %560 = arith.addf %538, %559 : vector<1x256xf32>
    %c227_i32 = arith.constant 227 : i32
    %561 = tpu.dynamic_rotate %27 by %c227_i32 dim 1 : vector<1x256xf32>, i32 -> vector<1x256xf32>
    %c227_i32_110 = arith.constant 227 : i32
    %562 = tpu.dynamic_rotate %28 by %c227_i32_110 dim 1 : vector<1x256xf32>, i32 -> vector<1x256xf32>
    %563 = vector.broadcast %126 : f32 to vector<1x256xf32>
    %564 = arith.mulf %563, %561 : vector<1x256xf32>
    %565 = vector.broadcast %175 : f32 to vector<1x256xf32>
    %566 = arith.mulf %565, %562 : vector<1x256xf32>
    %567 = arith.addf %564, %566 : vector<1x256xf32>
    %568 = arith.andi %75, %40 : vector<1x256xi1>
    %cst_111 = arith.constant 0.000000e+00 : f32
    %569 = vector.broadcast %cst_111 : f32 to vector<1x256xf32>
    %570 = arith.select %568, %567, %569 : vector<1x256xi1>, vector<1x256xf32>
    %571 = arith.addf %549, %570 : vector<1x256xf32>
    %c226_i32 = arith.constant 226 : i32
    %572 = tpu.dynamic_rotate %27 by %c226_i32 dim 1 : vector<1x256xf32>, i32 -> vector<1x256xf32>
    %c226_i32_112 = arith.constant 226 : i32
    %573 = tpu.dynamic_rotate %28 by %c226_i32_112 dim 1 : vector<1x256xf32>, i32 -> vector<1x256xf32>
    %574 = vector.broadcast %127 : f32 to vector<1x256xf32>
    %575 = arith.mulf %574, %572 : vector<1x256xf32>
    %576 = vector.broadcast %176 : f32 to vector<1x256xf32>
    %577 = arith.mulf %576, %573 : vector<1x256xf32>
    %578 = arith.addf %575, %577 : vector<1x256xf32>
    %579 = arith.andi %75, %50 : vector<1x256xi1>
    %cst_113 = arith.constant 0.000000e+00 : f32
    %580 = vector.broadcast %cst_113 : f32 to vector<1x256xf32>
    %581 = arith.select %579, %578, %580 : vector<1x256xi1>, vector<1x256xf32>
    %582 = arith.addf %560, %581 : vector<1x256xf32>
    %c225_i32 = arith.constant 225 : i32
    %583 = tpu.dynamic_rotate %27 by %c225_i32 dim 1 : vector<1x256xf32>, i32 -> vector<1x256xf32>
    %c225_i32_114 = arith.constant 225 : i32
    %584 = tpu.dynamic_rotate %28 by %c225_i32_114 dim 1 : vector<1x256xf32>, i32 -> vector<1x256xf32>
    %585 = vector.broadcast %128 : f32 to vector<1x256xf32>
    %586 = arith.mulf %585, %583 : vector<1x256xf32>
    %587 = vector.broadcast %177 : f32 to vector<1x256xf32>
    %588 = arith.mulf %587, %584 : vector<1x256xf32>
    %589 = arith.addf %586, %588 : vector<1x256xf32>
    %590 = arith.andi %75, %60 : vector<1x256xi1>
    %cst_115 = arith.constant 0.000000e+00 : f32
    %591 = vector.broadcast %cst_115 : f32 to vector<1x256xf32>
    %592 = arith.select %590, %589, %591 : vector<1x256xi1>, vector<1x256xf32>
    %593 = arith.addf %571, %592 : vector<1x256xf32>
    %c224_i32_116 = arith.constant 224 : i32
    %594 = tpu.dynamic_rotate %27 by %c224_i32_116 dim 1 : vector<1x256xf32>, i32 -> vector<1x256xf32>
    %c224_i32_117 = arith.constant 224 : i32
    %595 = tpu.dynamic_rotate %28 by %c224_i32_117 dim 1 : vector<1x256xf32>, i32 -> vector<1x256xf32>
    %596 = vector.broadcast %129 : f32 to vector<1x256xf32>
    %597 = arith.mulf %596, %594 : vector<1x256xf32>
    %598 = vector.broadcast %178 : f32 to vector<1x256xf32>
    %599 = arith.mulf %598, %595 : vector<1x256xf32>
    %600 = arith.addf %597, %599 : vector<1x256xf32>
    %cst_118 = arith.constant 0.000000e+00 : f32
    %601 = vector.broadcast %cst_118 : f32 to vector<1x256xf32>
    %602 = arith.select %75, %600, %601 : vector<1x256xi1>, vector<1x256xf32>
    %603 = arith.addf %582, %602 : vector<1x256xf32>
    %c223_i32 = arith.constant 223 : i32
    %604 = tpu.dynamic_rotate %27 by %c223_i32 dim 1 : vector<1x256xf32>, i32 -> vector<1x256xf32>
    %c223_i32_119 = arith.constant 223 : i32
    %605 = tpu.dynamic_rotate %28 by %c223_i32_119 dim 1 : vector<1x256xf32>, i32 -> vector<1x256xf32>
    %606 = vector.broadcast %130 : f32 to vector<1x256xf32>
    %607 = arith.mulf %606, %604 : vector<1x256xf32>
    %608 = vector.broadcast %179 : f32 to vector<1x256xf32>
    %609 = arith.mulf %608, %605 : vector<1x256xf32>
    %610 = arith.addf %607, %609 : vector<1x256xf32>
    %611 = arith.andi %75, %70 : vector<1x256xi1>
    %cst_120 = arith.constant 0.000000e+00 : f32
    %612 = vector.broadcast %cst_120 : f32 to vector<1x256xf32>
    %613 = arith.select %611, %610, %612 : vector<1x256xi1>, vector<1x256xf32>
    %614 = arith.addf %593, %613 : vector<1x256xf32>
    %c222_i32 = arith.constant 222 : i32
    %615 = tpu.dynamic_rotate %27 by %c222_i32 dim 1 : vector<1x256xf32>, i32 -> vector<1x256xf32>
    %c222_i32_121 = arith.constant 222 : i32
    %616 = tpu.dynamic_rotate %28 by %c222_i32_121 dim 1 : vector<1x256xf32>, i32 -> vector<1x256xf32>
    %617 = vector.broadcast %131 : f32 to vector<1x256xf32>
    %618 = arith.mulf %617, %615 : vector<1x256xf32>
    %619 = vector.broadcast %180 : f32 to vector<1x256xf32>
    %620 = arith.mulf %619, %616 : vector<1x256xf32>
    %621 = arith.addf %618, %620 : vector<1x256xf32>
    %622 = arith.andi %75, %80 : vector<1x256xi1>
    %cst_122 = arith.constant 0.000000e+00 : f32
    %623 = vector.broadcast %cst_122 : f32 to vector<1x256xf32>
    %624 = arith.select %622, %621, %623 : vector<1x256xi1>, vector<1x256xf32>
    %625 = arith.addf %603, %624 : vector<1x256xf32>
    %c221_i32 = arith.constant 221 : i32
    %626 = tpu.dynamic_rotate %27 by %c221_i32 dim 1 : vector<1x256xf32>, i32 -> vector<1x256xf32>
    %c221_i32_123 = arith.constant 221 : i32
    %627 = tpu.dynamic_rotate %28 by %c221_i32_123 dim 1 : vector<1x256xf32>, i32 -> vector<1x256xf32>
    %628 = vector.broadcast %132 : f32 to vector<1x256xf32>
    %629 = arith.mulf %628, %626 : vector<1x256xf32>
    %630 = vector.broadcast %181 : f32 to vector<1x256xf32>
    %631 = arith.mulf %630, %627 : vector<1x256xf32>
    %632 = arith.addf %629, %631 : vector<1x256xf32>
    %633 = arith.andi %75, %90 : vector<1x256xi1>
    %cst_124 = arith.constant 0.000000e+00 : f32
    %634 = vector.broadcast %cst_124 : f32 to vector<1x256xf32>
    %635 = arith.select %633, %632, %634 : vector<1x256xi1>, vector<1x256xf32>
    %636 = arith.addf %614, %635 : vector<1x256xf32>
    %c211_i32 = arith.constant 211 : i32
    %637 = tpu.dynamic_rotate %27 by %c211_i32 dim 1 : vector<1x256xf32>, i32 -> vector<1x256xf32>
    %c211_i32_125 = arith.constant 211 : i32
    %638 = tpu.dynamic_rotate %28 by %c211_i32_125 dim 1 : vector<1x256xf32>, i32 -> vector<1x256xf32>
    %639 = vector.broadcast %133 : f32 to vector<1x256xf32>
    %640 = arith.mulf %639, %637 : vector<1x256xf32>
    %641 = vector.broadcast %182 : f32 to vector<1x256xf32>
    %642 = arith.mulf %641, %638 : vector<1x256xf32>
    %643 = arith.addf %640, %642 : vector<1x256xf32>
    %644 = arith.andi %85, %40 : vector<1x256xi1>
    %cst_126 = arith.constant 0.000000e+00 : f32
    %645 = vector.broadcast %cst_126 : f32 to vector<1x256xf32>
    %646 = arith.select %644, %643, %645 : vector<1x256xi1>, vector<1x256xf32>
    %647 = arith.addf %625, %646 : vector<1x256xf32>
    %c210_i32 = arith.constant 210 : i32
    %648 = tpu.dynamic_rotate %27 by %c210_i32 dim 1 : vector<1x256xf32>, i32 -> vector<1x256xf32>
    %c210_i32_127 = arith.constant 210 : i32
    %649 = tpu.dynamic_rotate %28 by %c210_i32_127 dim 1 : vector<1x256xf32>, i32 -> vector<1x256xf32>
    %650 = vector.broadcast %134 : f32 to vector<1x256xf32>
    %651 = arith.mulf %650, %648 : vector<1x256xf32>
    %652 = vector.broadcast %183 : f32 to vector<1x256xf32>
    %653 = arith.mulf %652, %649 : vector<1x256xf32>
    %654 = arith.addf %651, %653 : vector<1x256xf32>
    %655 = arith.andi %85, %50 : vector<1x256xi1>
    %cst_128 = arith.constant 0.000000e+00 : f32
    %656 = vector.broadcast %cst_128 : f32 to vector<1x256xf32>
    %657 = arith.select %655, %654, %656 : vector<1x256xi1>, vector<1x256xf32>
    %658 = arith.addf %636, %657 : vector<1x256xf32>
    %c209_i32 = arith.constant 209 : i32
    %659 = tpu.dynamic_rotate %27 by %c209_i32 dim 1 : vector<1x256xf32>, i32 -> vector<1x256xf32>
    %c209_i32_129 = arith.constant 209 : i32
    %660 = tpu.dynamic_rotate %28 by %c209_i32_129 dim 1 : vector<1x256xf32>, i32 -> vector<1x256xf32>
    %661 = vector.broadcast %135 : f32 to vector<1x256xf32>
    %662 = arith.mulf %661, %659 : vector<1x256xf32>
    %663 = vector.broadcast %184 : f32 to vector<1x256xf32>
    %664 = arith.mulf %663, %660 : vector<1x256xf32>
    %665 = arith.addf %662, %664 : vector<1x256xf32>
    %666 = arith.andi %85, %60 : vector<1x256xi1>
    %cst_130 = arith.constant 0.000000e+00 : f32
    %667 = vector.broadcast %cst_130 : f32 to vector<1x256xf32>
    %668 = arith.select %666, %665, %667 : vector<1x256xi1>, vector<1x256xf32>
    %669 = arith.addf %647, %668 : vector<1x256xf32>
    %c208_i32_131 = arith.constant 208 : i32
    %670 = tpu.dynamic_rotate %27 by %c208_i32_131 dim 1 : vector<1x256xf32>, i32 -> vector<1x256xf32>
    %c208_i32_132 = arith.constant 208 : i32
    %671 = tpu.dynamic_rotate %28 by %c208_i32_132 dim 1 : vector<1x256xf32>, i32 -> vector<1x256xf32>
    %672 = vector.broadcast %136 : f32 to vector<1x256xf32>
    %673 = arith.mulf %672, %670 : vector<1x256xf32>
    %674 = vector.broadcast %185 : f32 to vector<1x256xf32>
    %675 = arith.mulf %674, %671 : vector<1x256xf32>
    %676 = arith.addf %673, %675 : vector<1x256xf32>
    %cst_133 = arith.constant 0.000000e+00 : f32
    %677 = vector.broadcast %cst_133 : f32 to vector<1x256xf32>
    %678 = arith.select %85, %676, %677 : vector<1x256xi1>, vector<1x256xf32>
    %679 = arith.addf %658, %678 : vector<1x256xf32>
    %c207_i32 = arith.constant 207 : i32
    %680 = tpu.dynamic_rotate %27 by %c207_i32 dim 1 : vector<1x256xf32>, i32 -> vector<1x256xf32>
    %c207_i32_134 = arith.constant 207 : i32
    %681 = tpu.dynamic_rotate %28 by %c207_i32_134 dim 1 : vector<1x256xf32>, i32 -> vector<1x256xf32>
    %682 = vector.broadcast %137 : f32 to vector<1x256xf32>
    %683 = arith.mulf %682, %680 : vector<1x256xf32>
    %684 = vector.broadcast %186 : f32 to vector<1x256xf32>
    %685 = arith.mulf %684, %681 : vector<1x256xf32>
    %686 = arith.addf %683, %685 : vector<1x256xf32>
    %687 = arith.andi %85, %70 : vector<1x256xi1>
    %cst_135 = arith.constant 0.000000e+00 : f32
    %688 = vector.broadcast %cst_135 : f32 to vector<1x256xf32>
    %689 = arith.select %687, %686, %688 : vector<1x256xi1>, vector<1x256xf32>
    %690 = arith.addf %669, %689 : vector<1x256xf32>
    %c206_i32 = arith.constant 206 : i32
    %691 = tpu.dynamic_rotate %27 by %c206_i32 dim 1 : vector<1x256xf32>, i32 -> vector<1x256xf32>
    %c206_i32_136 = arith.constant 206 : i32
    %692 = tpu.dynamic_rotate %28 by %c206_i32_136 dim 1 : vector<1x256xf32>, i32 -> vector<1x256xf32>
    %693 = vector.broadcast %138 : f32 to vector<1x256xf32>
    %694 = arith.mulf %693, %691 : vector<1x256xf32>
    %695 = vector.broadcast %187 : f32 to vector<1x256xf32>
    %696 = arith.mulf %695, %692 : vector<1x256xf32>
    %697 = arith.addf %694, %696 : vector<1x256xf32>
    %698 = arith.andi %85, %80 : vector<1x256xi1>
    %cst_137 = arith.constant 0.000000e+00 : f32
    %699 = vector.broadcast %cst_137 : f32 to vector<1x256xf32>
    %700 = arith.select %698, %697, %699 : vector<1x256xi1>, vector<1x256xf32>
    %701 = arith.addf %679, %700 : vector<1x256xf32>
    %c205_i32 = arith.constant 205 : i32
    %702 = tpu.dynamic_rotate %27 by %c205_i32 dim 1 : vector<1x256xf32>, i32 -> vector<1x256xf32>
    %c205_i32_138 = arith.constant 205 : i32
    %703 = tpu.dynamic_rotate %28 by %c205_i32_138 dim 1 : vector<1x256xf32>, i32 -> vector<1x256xf32>
    %704 = vector.broadcast %139 : f32 to vector<1x256xf32>
    %705 = arith.mulf %704, %702 : vector<1x256xf32>
    %706 = vector.broadcast %188 : f32 to vector<1x256xf32>
    %707 = arith.mulf %706, %703 : vector<1x256xf32>
    %708 = arith.addf %705, %707 : vector<1x256xf32>
    %709 = arith.andi %85, %90 : vector<1x256xi1>
    %cst_139 = arith.constant 0.000000e+00 : f32
    %710 = vector.broadcast %cst_139 : f32 to vector<1x256xf32>
    %711 = arith.select %709, %708, %710 : vector<1x256xi1>, vector<1x256xf32>
    %712 = arith.addf %690, %711 : vector<1x256xf32>
    %713 = arith.addf %712, %701 : vector<1x256xf32>
    %cst_140 = arith.constant 5.000000e-01 : f32
    %714 = vector.broadcast %cst_140 : f32 to vector<1x256xf32>
    %715 = arith.mulf %714, %713 : vector<1x256xf32>
    %716 = math.tanh %715 : vector<1x256xf32>
    %cst_141 = arith.constant 1.000000e+00 : f32
    %717 = vector.broadcast %cst_141 : f32 to vector<1x256xf32>
    %718 = arith.addf %716, %717 : vector<1x256xf32>
    %cst_142 = arith.constant 5.000000e-01 : f32
    %719 = vector.broadcast %cst_142 : f32 to vector<1x256xf32>
    %720 = arith.mulf %719, %718 : vector<1x256xf32>
    %721 = vector.shape_cast %720 : vector<1x256xf32> to vector<1x1x256xf32>
    %722 = vector.broadcast %721 : vector<1x1x256xf32> to vector<1x32x256xf32>
    %723 = arith.mulf %24, %722 : vector<1x32x256xf32>
    %c0_143 = arith.constant 0 : index
    %c0_144 = arith.constant 0 : index
    %c0_145 = arith.constant 0 : index
    %724 = vector.load %arg6[%c0_143, %c0_144, %c0_145] : memref<1x32x256xf32, #tpu.memory_space<vmem>>, vector<1x32x256xf32>
    tpu.vector_store %arg6[%c0_143, %c0_144, %c0_145], %723 {strides = array<i32>} : memref<1x32x256xf32, #tpu.memory_space<vmem>>, vector<1x32x256xf32>,
    return
  }
  func.func @transform_0(%arg0: i32) -> i32 {
    %c0_i32 = arith.constant 0 : i32
    %c0_i32_0 = arith.constant 0 : i32
    return %c0_i32 : i32
  }
  func.func @transform_1(%arg0: i32) -> (i32, i32, i32) {
    %c0_i32 = arith.constant 0 : i32
    %c0_i32_0 = arith.constant 0 : i32
    %c0_i32_1 = arith.constant 0 : i32
    return %arg0, %c0_i32, %c0_i32_0 : i32, i32, i32
  }
  func.func @transform_2(%arg0: i32) -> (i32, i32) {
    %c0_i32 = arith.constant 0 : i32
    %c0_i32_0 = arith.constant 0 : i32
    %c0_i32_1 = arith.constant 0 : i32
    return %c0_i32, %c0_i32_0 : i32, i32
  }
  func.func @transform_3(%arg0: i32) -> (i32, i32) {
    %c0_i32 = arith.constant 0 : i32
    %c0_i32_0 = arith.constant 0 : i32
    %c0_i32_1 = arith.constant 0 : i32
    return %c0_i32, %c0_i32_0 : i32, i32
  }
  func.func @transform_4(%arg0: i32) -> (i32, i32) {
    %c0_i32 = arith.constant 0 : i32
    %c0_i32_0 = arith.constant 0 : i32
    %c0_i32_1 = arith.constant 0 : i32
    return %c0_i32, %c0_i32_0 : i32, i32
  }
  func.func @transform_5(%arg0: i32) -> (i32, i32, i32) {
    %c0_i32 = arith.constant 0 : i32
    %c0_i32_0 = arith.constant 0 : i32
    %c0_i32_1 = arith.constant 0 : i32
    return %arg0, %c0_i32, %c0_i32_0 : i32, i32, i32
  }
}

</mosaic_0001>

<llo_original>
// kernel: tpu_custom_call.1
$region0: #{tpu_custom_call.1}
  #allocation0 [shape = 'u32[]', space=smem, size = 0x4, offset = 0x4, fixed_abs, tag = 'smem constant byte address 0x4 - core index']
  #allocation1 [shape = 'u32[72,128]{1,0:T(1,128)}', space=vmem, size = 0x9000, scoped, tag = 'internal scratch']
  %s0 = inlined_call_operand.vmem [shape: f32[98], index: 0, kind: input, shape index: {}]
  %s1 = inlined_call_operand.hbm [shape: f32[2,32,256], index: 1, kind: input, shape index: {}]
  %s2 = inlined_call_operand.vmem [shape: f32[32,2], index: 2, kind: input, shape index: {}]
  %s3 = inlined_call_operand.vmem [shape: f32[2,32], index: 3, kind: input, shape index: {}]
  %s4 = inlined_call_operand.vmem [shape: s32[1,256], index: 4, kind: input, shape index: {}]
  %s5 = inlined_call_operand.hbm [shape: f32[2,32,256], index: 5, kind: output, shape index: {}]
  %s6 = sld [smem:[#allocation0]]
  $region61: #{tpu_custom_call.1} parent=0
    _
  %s8 = ssub.s32 1, %s6
  %s9 = scalar_select 0, %s8, %s6
  $region1: #{tpu_custom_call.1} parent=0
    #allocation2 [shape = 'u8[512]{0}', space=smem, size = 0x200, scoped, tag = 'input window, operand 0, single buffered']
    #allocation3 [shape = 's32[2]{0}', space=sflag, size = 0x8, scoped, tag = 'scoped memory for tpu_custom_call.1']
    #allocation4 [shape = 's32[2]{0}', space=sflag, size = 0x8, scoped, tag = 'scoped memory for tpu_custom_call.1']
    #allocation5 [shape = 's32[2]{0}', space=sflag, size = 0x8, scoped, tag = 'scoped memory for tpu_custom_call.1']
    #allocation6 [shape = 'u8[65536]{0}', space=vmem, size = 0x10000, scoped, tag = 'input window, operand 1']
    #allocation7 [shape = 'u8[65536]{0}', space=vmem, size = 0x10000, scoped, tag = 'output window, operand 0']
    %10 = vsyncpa [#allocation5], 0
    %11 = vsyncpa [#allocation3], 0
    %s12 = scalar_lea.sflag [#allocation3], 1
    %13 = vsyncpa %s12, 0
    %14 = vsyncpa [#allocation4], 0
    %s15 = scalar_lea.sflag [#allocation4], 1
    %16 = vsyncpa %s15, 0
    loop: start=0, step=1, limit=4
    $region2: #{tpu_custom_call.1} parent=1 // loop_pre_header
      _
    $region3: #{tpu_custom_call.1} parent=1 // loop_header
      %s18 = sphi 0, %s22
      %p19 = scmp.ge.s32.totalorder %s18, 4
      %s26 = sphi 0, %s26
      %s28 = sphi 0, %s26
      %s29 = sphi 0, %s28
      %s43 = sphi 0, %s29
      %s49 = sphi 0, %s51
      %s52 = sphi 0, %s49
      %s53 = sphi 0, %s52
      %s69 = sphi 0, %s53
      %s73 = sphi 0, %s73
      %s75 = sphi 0, %s73
      %s76 = sphi 0, %s75
      %s90 = sphi 0, %s76
      %s94 = sphi 0, %s94
      %s96 = sphi 0, %s94
      %s97 = sphi 0, %s96
      %s111 = sphi 0, %s97
      %s115 = sphi 0, %s115
      %s117 = sphi 0, %s115
      %s118 = sphi 0, %s117
      %s132 = sphi 0, %s118
      %s138 = sphi 0, %s140
      %s141 = sphi 0, %s138
      %s142 = sphi 0, %s141
      %s158 = sphi 0, %s142
    $region4: #{tpu_custom_call.1} parent=1 // loop_header_branch
      %21 = sbr.rel (%p19) target = $region8
    $region5: #{tpu_custom_call.1} parent=1 // loop_body
      %s23 = ssub.s32 %s18, 1
      %s24 = ssub.s32 %s18, 2
      %s25 = sadd.s32 %s18, 1
      %s27 = sadd.s32 %s26, 1
      %p30 = scmp.eq.s32.totalorder %s18, 1
      %p31 = scmp.ne.s32.totalorder %s26, %s28
      %p32 = scmp.eq.s32.totalorder %s18, 0
      %p33 = por %p31, %p32
      %p34 = scmp.ne.s32.totalorder %s26, %s28
      %p35 = scmp.eq.s32.totalorder %s23, 1
      %p36 = por %p34, %p35
      %p37 = scmp.ne.s32.totalorder %s28, %s29
      %p38 = scmp.eq.s32.totalorder %s23, 0
      %p39 = por %p37, %p38
      %p40 = scmp.ne.s32.totalorder %s28, %s29
      %p41 = scmp.eq.s32.totalorder %s24, 1
      %p42 = por %p40, %p41
      %p44 = scmp.ne.s32.totalorder %s29, %s43
      %p45 = scmp.eq.s32.totalorder %s24, 0
      %p46 = por %p44, %p45
      %s47 = ssub.s32 %s18, %s25
      %p48 = scmp.eq.s32.totalorder %s47, 0
      %s50 = sadd.s32 %s49, 1
      %s51 = scalar_select %p48, %s49, %s50
      %p54 = pneg %p48
      %p55 = scmp.eq.s32.totalorder %s18, 1
      %p56 = por %p54, %p55
      %p57 = scmp.ne.s32.totalorder %s49, %s52
      %p58 = scmp.eq.s32.totalorder %s18, 0
      %p59 = por %p57, %p58
      %p60 = scmp.ne.s32.totalorder %s49, %s52
      %p61 = scmp.eq.s32.totalorder %s23, 1
      %p62 = por %p60, %p61
      %p63 = scmp.ne.s32.totalorder %s52, %s53
      %p64 = scmp.eq.s32.totalorder %s23, 0
      %p65 = por %p63, %p64
      %p66 = scmp.ne.s32.totalorder %s52, %s53
      %p67 = scmp.eq.s32.totalorder %s24, 1
      %p68 = por %p66, %p67
      %p70 = scmp.ne.s32.totalorder %s53, %s69
      %p71 = scmp.eq.s32.totalorder %s24, 0
      %p72 = por %p70, %p71
      %s74 = sadd.s32 %s73, 1
      %p77 = scmp.eq.s32.totalorder %s18, 1
      %p78 = scmp.ne.s32.totalorder %s73, %s75
      %p79 = scmp.eq.s32.totalorder %s18, 0
      %p80 = por %p78, %p79
      %p81 = scmp.ne.s32.totalorder %s73, %s75
      %p82 = scmp.eq.s32.totalorder %s23, 1
      %p83 = por %p81, %p82
      %p84 = scmp.ne.s32.totalorder %s75, %s76
      %p85 = scmp.eq.s32.totalorder %s23, 0
      %p86 = por %p84, %p85
      %p87 = scmp.ne.s32.totalorder %s75, %s76
      %p88 = scmp.eq.s32.totalorder %s24, 1
      %p89 = por %p87, %p88
      %p91 = scmp.ne.s32.totalorder %s76, %s90
      %p92 = scmp.eq.s32.totalorder %s24, 0
      %p93 = por %p91, %p92
      %s95 = sadd.s32 %s94, 1
      %p98 = scmp.eq.s32.totalorder %s18, 1
      %p99 = scmp.ne.s32.totalorder %s94, %s96
      %p100 = scmp.eq.s32.totalorder %s18, 0
      %p101 = por %p99, %p100
      %p102 = scmp.ne.s32.totalorder %s94, %s96
      %p103 = scmp.eq.s32.totalorder %s23, 1
      %p104 = por %p102, %p103
      %p105 = scmp.ne.s32.totalorder %s96, %s97
      %p106 = scmp.eq.s32.totalorder %s23, 0
      %p107 = por %p105, %p106
      %p108 = scmp.ne.s32.totalorder %s96, %s97
      %p109 = scmp.eq.s32.totalorder %s24, 1
      %p110 = por %p108, %p109
      %p112 = scmp.ne.s32.totalorder %s97, %s111
      %p113 = scmp.eq.s32.totalorder %s24, 0
      %p114 = por %p112, %p113
      %s116 = sadd.s32 %s115, 1
      %p119 = scmp.eq.s32.totalorder %s18, 1
      %p120 = scmp.ne.s32.totalorder %s115, %s117
      %p121 = scmp.eq.s32.totalorder %s18, 0
      %p122 = por %p120, %p121
      %p123 = scmp.ne.s32.totalorder %s115, %s117
      %p124 = scmp.eq.s32.totalorder %s23, 1
      %p125 = por %p123, %p124
      %p126 = scmp.ne.s32.totalorder %s117, %s118
      %p127 = scmp.eq.s32.totalorder %s23, 0
      %p128 = por %p126, %p127
      %p129 = scmp.ne.s32.totalorder %s117, %s118
      %p130 = scmp.eq.s32.totalorder %s24, 1
      %p131 = por %p129, %p130
      %p133 = scmp.ne.s32.totalorder %s118, %s132
      %p134 = scmp.eq.s32.totalorder %s24, 0
      %p135 = por %p133, %p134
      %s136 = ssub.s32 %s18, %s25
      %p137 = scmp.eq.s32.totalorder %s136, 0
      %s139 = sadd.s32 %s138, 1
      %s140 = scalar_select %p137, %s138, %s139
      %p143 = pneg %p137
      %p144 = scmp.eq.s32.totalorder %s18, 1
      %p145 = por %p143, %p144
      %p146 = scmp.ne.s32.totalorder %s138, %s141
      %p147 = scmp.eq.s32.totalorder %s18, 0
      %p148 = por %p146, %p147
      %p149 = scmp.ne.s32.totalorder %s138, %s141
      %p150 = scmp.eq.s32.totalorder %s23, 1
      %p151 = por %p149, %p150
      %p152 = scmp.ne.s32.totalorder %s141, %s142
      %p153 = scmp.eq.s32.totalorder %s23, 0
      %p154 = por %p152, %p153
      %p155 = scmp.ne.s32.totalorder %s141, %s142
      %p156 = scmp.eq.s32.totalorder %s24, 1
      %p157 = por %p155, %p156
      %p159 = scmp.ne.s32.totalorder %s142, %s158
      %p160 = scmp.eq.s32.totalorder %s24, 0
      %p161 = por %p159, %p160
      %p162 = scmp.le.s32.totalorder 1, %s18
      %p163 = scmp.lt.s32.totalorder %s18, 3
      %p164 = pnand %p162, %p163
      %p165 = pneg %p164
      // Predicated region
      $region9: #{tpu_custom_call.1} parent=5 // pred_check
        _
      $region10: #{tpu_custom_call.1} parent=5 // pred_check_branch
        %167 = sbr.rel (%p164) target = $region12
      $region11: #{tpu_custom_call.1} parent=5 // pred_region
        %s168 = ssub.s32 %s18, 1
        // Predicated region
        $region13: #{tpu_custom_call.1} parent=11 // pred_check
          %p169 = pneg %p39
        $region14: #{tpu_custom_call.1} parent=11 // pred_check_branch
          %171 = sbr.rel (%p169) target = $region16
        $region15: #{tpu_custom_call.1} parent=11 // pred_region
          %173 = vsyncadd [#allocation5], 0
          %s175 = sshll.u32 %s0, 4
          %s176 = int_to_ptr.vmem [resolvable:$true] %s175
          %178 = dma.vmem_to_smem %s176, 16, [#allocation2], [#allocation5]
        $region16: #{tpu_custom_call.1} parent=11 // pred_fallthru
          _
        // Predicated region
        $region17: #{tpu_custom_call.1} parent=11 // pred_check
          %p179 = pneg %p86
        $region18: #{tpu_custom_call.1} parent=11 // pred_check_branch
          %181 = sbr.rel (%p179) target = $region20
        $region19: #{tpu_custom_call.1} parent=11 // pred_region
          _
        $region20: #{tpu_custom_call.1} parent=11 // pred_fallthru
          _
        // Predicated region
        $region21: #{tpu_custom_call.1} parent=11 // pred_check
          %p182 = pneg %p107
        $region22: #{tpu_custom_call.1} parent=11 // pred_check_branch
          %184 = sbr.rel (%p182) target = $region24
        $region23: #{tpu_custom_call.1} parent=11 // pred_region
          _
        $region24: #{tpu_custom_call.1} parent=11 // pred_fallthru
          _
        // Predicated region
        $region25: #{tpu_custom_call.1} parent=11 // pred_check
          %p185 = pneg %p128
        $region26: #{tpu_custom_call.1} parent=11 // pred_check_branch
          %187 = sbr.rel (%p185) target = $region28
        $region27: #{tpu_custom_call.1} parent=11 // pred_region
          _
        $region28: #{tpu_custom_call.1} parent=11 // pred_fallthru
          _
      $region12: #{tpu_custom_call.1} parent=5 // pred_fallthru
        _
      %p188 = scmp.lt.s32.totalorder %s18, 2
      // Predicated region
      $region29: #{tpu_custom_call.1} parent=5 // pred_check
        %p189 = pneg %p188
      $region30: #{tpu_custom_call.1} parent=5 // pred_check_branch
        %191 = sbr.rel (%p189) target = $region32
      $region31: #{tpu_custom_call.1} parent=5 // pred_region
        // Predicated region
        $region33: #{tpu_custom_call.1} parent=31 // pred_check
          %p192 = pneg %p59
        $region34: #{tpu_custom_call.1} parent=31 // pred_check_branch
          %194 = sbr.rel (%p192) target = $region36
        $region35: #{tpu_custom_call.1} parent=31 // pred_region
          %s195 = sand.u32 %s49, 1
          %s196 = scalar_lea.sflag [#allocation3], %s195
          %s197 = sand.u32 %s49, 1
          %s198 = smul.addr %s197, 64
          %s199 = scalar_lea.vmem [#allocation6], %s198
          %201 = vsyncadd %s196, 0
          %s202 = smul.addr %s18, 8
          %s203 = smul.addr %s202, 8
          %s204 = scalar_lea.hbm %s1, %s203
          %s205 = sshll.u32 %s204, 4
          %s206 = int_to_ptr.hbm [resolvable:$true] %s205
          %s207 = sshll.u32 %s199, 4
          %s208 = int_to_ptr.vmem [resolvable:$true] %s207
          %213 = dma.hbm_to_vmem [thread:$0]  %s206, 1024, %s208, %s196, 256, 256, 16
        $region36: #{tpu_custom_call.1} parent=31 // pred_fallthru
          _
      $region32: #{tpu_custom_call.1} parent=5 // pred_fallthru
        _
      %p214 = scmp.le.s32.totalorder 1, %s18
      %p215 = scmp.lt.s32.totalorder %s18, 3
      %p216 = pnand %p214, %p215
      %p217 = pneg %p216
      // Predicated region
      $region37: #{tpu_custom_call.1} parent=5 // pred_check
        _
      $region38: #{tpu_custom_call.1} parent=5 // pred_check_branch
        %219 = sbr.rel (%p216) target = $region40
      $region39: #{tpu_custom_call.1} parent=5 // pred_region
        %s220 = ssub.s32 %s18, 1
        // Predicated region
        $region41: #{tpu_custom_call.1} parent=39 // pred_check
          %p221 = pneg %p39
        $region42: #{tpu_custom_call.1} parent=39 // pred_check_branch
          %223 = sbr.rel (%p221) target = $region44
        $region43: #{tpu_custom_call.1} parent=39 // pred_region
          %225 = dma.done [#allocation5], 16
        $region44: #{tpu_custom_call.1} parent=39 // pred_fallthru
          _
        %s226 = sand.u32 %s52, 1
        %s227 = scalar_lea.sflag [#allocation3], %s226
        %s228 = sand.u32 %s52, 1
        %s229 = smul.addr %s228, 64
        %s230 = scalar_lea.vmem [#allocation6], %s229
        // Predicated region
        $region45: #{tpu_custom_call.1} parent=39 // pred_check
          %p231 = pneg %p65
        $region46: #{tpu_custom_call.1} parent=39 // pred_check_branch
          %233 = sbr.rel (%p231) target = $region48
        $region47: #{tpu_custom_call.1} parent=39 // pred_region
          %235 = dma.done %s227, 1024
        $region48: #{tpu_custom_call.1} parent=39 // pred_fallthru
          _
        %236 = sfence
        %p237 = pneg %p39
        %p238 = pneg %p36
        %s239 = sand.u32 %s52, 1
        %s240 = scalar_lea.sflag [#allocation3], %s239
        %s241 = sand.u32 %s52, 1
        %s242 = smul.addr %s241, 64
        %s243 = scalar_lea.vmem [#allocation6], %s242
        %p244 = pneg %p65
        %p245 = pneg %p62
        %p246 = pneg %p86
        %p247 = pneg %p83
        %p248 = pneg %p107
        %p249 = pneg %p104
        %p250 = pneg %p128
        %p251 = pneg %p125
        %p252 = pneg %p154
        %p253 = pneg %p151
        %s254 = sand.u32 %s141, 1
        %s255 = scalar_lea.sflag [#allocation4], %s254
        %s256 = sand.u32 %s141, 1
        %s257 = smul.addr %s256, 64
        %s258 = scalar_lea.vmem [#allocation7], %s257
        %v259 = vld [vmem:[%s230] sm:$0xff]
        %v260 = vld [vmem:[%s230 + $0x8] sm:$0xff]
        %v261 = vld [vmem:[%s230 + $0x10] sm:$0xff]
        %v262 = vld [vmem:[%s230 + $0x18] sm:$0xff]
        %v263 = vld [vmem:[%s230 + $0x20] sm:$0xff]
        %v264 = vld [vmem:[%s230 + $0x28] sm:$0xff]
        %v265 = vld [vmem:[%s230 + $0x30] sm:$0xff]
        %v266 = vld [vmem:[%s230 + $0x38] sm:$0xff]
        %v267 = vadd.f32 %v259, %v260
        %268 = vadd.xlane.f32.xlu0 %v267
        %v269 = vpop.xlane.xlu0 %268
        %v270 = vadd.f32 %v261, %v262
        %271 = vadd.xlane.f32.xlu0 %v270
        %v272 = vpop.xlane.xlu0 %271
        %v273 = vadd.f32 %v263, %v264
        %274 = vadd.xlane.f32.xlu0 %v273
        %v275 = vpop.xlane.xlu0 %274
        %v276 = vadd.f32 %v265, %v266
        %277 = vadd.xlane.f32.xlu0 %v276
        %v278 = vpop.xlane.xlu0 %277
        %v279 = vmul.f32 %v269, 0.00390625
        %v280 = vmul.f32 %v272, 0.00390625
        %v281 = vmul.f32 %v275, 0.00390625
        %v282 = vmul.f32 %v278, 0.00390625
        %v283 = vmax.f32 %v259, %v260
        %284 = vmax.xlane.f32.xlu0 %v283
        %v285 = vpop.xlane.xlu0 %284
        %v286 = vmax.f32 %v261, %v262
        %287 = vmax.xlane.f32.xlu0 %v286
        %v288 = vpop.xlane.xlu0 %287
        %v289 = vmax.f32 %v263, %v264
        %290 = vmax.xlane.f32.xlu0 %v289
        %v291 = vpop.xlane.xlu0 %290
        %v292 = vmax.f32 %v265, %v266
        %293 = vmax.xlane.f32.xlu0 %v292
        %v294 = vpop.xlane.xlu0 %293
        %v295 = vld [vmem:[%s2] sm:$0xff]
        %v296 = vld [vmem:[%s2 + $0x8] sm:$0xff]
        %v297 = vld [vmem:[%s2 + $0x10] sm:$0xff]
        %v298 = vld [vmem:[%s2 + $0x18] sm:$0xff]
        %v299 = vld [vmem:[%s3] sm:$0x3]
        %v304 = vlaneseq
        %v305 = vand.u32 %v304, 127
        %v306 = vperm.slane %v279, %v305
        %v307 = vadd.s32 %v305, 4294967288
        %v308 = vperm.slane %v280, %v307
        %vm309 = vcmask 130112
        %v310 = vsel %vm309, %v308, %v306
        %v311 = vadd.s32 %v305, 4294967280
        %v312 = vperm.slane %v281, %v311
        %vm313 = vcmask 195712
        %v314 = vsel %vm313, %v312, %v310
        %v315 = vadd.s32 %v305, 4294967272
        %v316 = vperm.slane %v282, %v315
        %vm317 = vcmask 261312
        %v318 = vsel %vm317, %v316, %v314
        %v324 = vperm.slane %v285, %v305
        %v325 = vperm.slane %v288, %v307
        %v326 = vsel %vm309, %v325, %v324
        %v327 = vperm.slane %v291, %v311
        %v328 = vsel %vm313, %v327, %v326
        %v329 = vperm.slane %v294, %v315
        %v330 = vsel %vm317, %v329, %v328
        %vm332 = vcmask 1040384
        %v333 = vsel %vm332, %v318, %v330
        %vm334 = vcmask 261120
        %v336 = vsel %vm334, %v333, 0
        %338 = vmatpush.msra.mxu0 0.0
        %339 = vmatpush.msra.mxu0 0.0
        %340 = vmatpush.msra.mxu0 0.0
        %341 = vmatpush.msra.mxu0 0.0
        %342 = vmatpush.msra.mxu0 0.0
        %343 = vmatpush.msra.mxu0 0.0
        %344 = vmatpush.msra.mxu0 0.0
        %345 = vmatpush.msra.mxu0 0.0
        %346 = vmatpush.msra.mxu0 0.0
        %347 = vmatpush.msra.mxu0 0.0
        %348 = vmatpush.msra.mxu0 0.0
        %349 = vmatpush.msra.mxu0 0.0
        %350 = vmatpush.msra.mxu0 %v298
        %351 = vmatpush.msra.mxu0 %v297
        %352 = vmatpush.msra.mxu0 %v296
        %353 = vmatpush.msra.mxu0 %v295
        %354 = vmatmul.f32.gmra.mxu0 %v336
        %v355 = vpop.f32.mrf.mxu0
        %v356 = vadd.f32 0.0, %v355
        %357 = vdwg.mxu0
        %v358 = vmax.f32 %v356, 0.0
        %vm359 = vcmask 15360
        %v361 = vsel %vm359, %v358, 0
        %vm363 = vcmask 1041408
        %v365 = vsel %vm363, %v299, 0
        %367 = vmatpush.msra.mxu0 0.0
        %368 = vmatpush.msra.mxu0 0.0
        %369 = vmatpush.msra.mxu0 0.0
        %370 = vmatpush.msra.mxu0 0.0
        %371 = vmatpush.msra.mxu0 0.0
        %372 = vmatpush.msra.mxu0 0.0
        %373 = vmatpush.msra.mxu0 0.0
        %374 = vmatpush.msra.mxu0 0.0
        %375 = vmatpush.msra.mxu0 0.0
        %376 = vmatpush.msra.mxu0 0.0
        %377 = vmatpush.msra.mxu0 0.0
        %378 = vmatpush.msra.mxu0 0.0
        %379 = vmatpush.msra.mxu0 0.0
        %380 = vmatpush.msra.mxu0 0.0
        %381 = vmatpush.msra.mxu0 0.0
        %382 = vmatpush.msra.mxu0 %v365
        %383 = vmatmul.f32.gmra.mxu0 %v361
        %v384 = vpop.f32.mrf.mxu0
        %v385 = vadd.f32 0.0, %v384
        %386 = vdwg.mxu0
        %v388 = vrot.slane %v385, 1
        %v390 = vadd.f32 %v385, %v388
        %v391 = vmul.f32 %v390, 0.5
        %v392 = vtanh.pop %v391
        %v393 = vadd.f32 %v392, 1.0
        %v394 = vmul.f32 %v393, 0.5
        %v395 = vperm.slane %v394, 0
        %v396 = vlaneseq
        %v397 = vshrl.u32 %v396, 7
        %399 = vset.pattern.permute.xlu0 %v397
        %400 = vperm.xlu0 %399, %v395
        %v401 = vpop.permute.xlu0 %400
        %v402 = vlaneseq
        %v403 = vshrl.u32 %v402, 7
        %v404 = vadd.s32 %v403, 8
        %405 = vset.pattern.permute.xlu0 %v404
        %406 = vperm.xlu0 %405, %v395
        %v407 = vpop.permute.xlu0 %406
        %v408 = vlaneseq
        %v409 = vshrl.u32 %v408, 7
        %v410 = vadd.s32 %v409, 16
        %411 = vset.pattern.permute.xlu0 %v410
        %412 = vperm.xlu0 %411, %v395
        %v413 = vpop.permute.xlu0 %412
        %v414 = vlaneseq
        %v415 = vshrl.u32 %v414, 7
        %v416 = vadd.s32 %v415, 24
        %417 = vset.pattern.permute.xlu0 %v416
        %418 = vperm.xlu0 %417, %v395
        %v419 = vpop.permute.xlu0 %418
        %v420 = vmul.f32 %v259, %v401
        %v421 = vmul.f32 %v260, %v401
        %v422 = vmul.f32 %v261, %v407
        %v423 = vmul.f32 %v262, %v407
        %v424 = vmul.f32 %v263, %v413
        %v425 = vmul.f32 %v264, %v413
        %v426 = vmul.f32 %v265, %v419
        %v427 = vmul.f32 %v266, %v419
        %v428 = vadd.f32 %v420, %v422
        %v429 = vadd.f32 %v428, %v424
        %v430 = vadd.f32 %v429, %v426
        %v431 = vrot.slane %v430, 4
        %v432 = vadd.f32 %v430, %v431
        %v433 = vrot.slane %v432, 2
        %v434 = vadd.f32 %v432, %v433
        %v435 = vrot.slane %v434, 1
        %v436 = vadd.f32 %v434, %v435
        %v437 = vadd.f32 %v421, %v423
        %v438 = vadd.f32 %v437, %v425
        %v439 = vadd.f32 %v438, %v427
        %v440 = vrot.slane %v439, 4
        %v441 = vadd.f32 %v439, %v440
        %v442 = vrot.slane %v441, 2
        %v443 = vadd.f32 %v441, %v442
        %v444 = vrot.slane %v443, 1
        %v445 = vadd.f32 %v443, %v444
        %v446 = vmul.f32 %v436, 0.03125
        %v447 = vmul.f32 %v445, 0.03125
        %v448 = vmax.f32 %v420, %v424
        %v449 = vmax.f32 %v422, %v426
        %v450 = vmax.f32 %v448, %v449
        %v451 = vrot.slane %v450, 4
        %v452 = vmax.f32 %v450, %v451
        %v453 = vrot.slane %v452, 2
        %v454 = vmax.f32 %v452, %v453
        %v455 = vrot.slane %v454, 1
        %v456 = vmax.f32 %v454, %v455
        %v457 = vmax.f32 %v421, %v425
        %v458 = vmax.f32 %v423, %v427
        %v459 = vmax.f32 %v457, %v458
        %v460 = vrot.slane %v459, 4
        %v461 = vmax.f32 %v459, %v460
        %v462 = vrot.slane %v461, 2
        %v463 = vmax.f32 %v461, %v462
        %v464 = vrot.slane %v463, 1
        %v465 = vmax.f32 %v463, %v464
        %v466 = vadd.s32 %v305, 128
        %v467 = vld [vmem:[%s4] sm:$0x3]
        %vm468 = vcmp.ge.s32.totalorder %v305, 48
        %vm469 = vcmp.ge.s32.totalorder %v466, 48
        %vm470 = vcmp.lt.s32.totalorder %v305, 256
        %vm471 = vcmp.lt.s32.totalorder %v466, 256
        %vm472 = vmand %vm468, %vm470
        %vm473 = vmand %vm469, %vm471
        %vm474 = vcmp.ge.s32.totalorder %v467, 3
        %vm475 = vcmp.lt.s32.totalorder %v467, 16
        %vm476 = vmand %vm474, %vm475
        %vm477 = vcmp.ge.s32.totalorder %v305, 32
        %vm478 = vcmp.ge.s32.totalorder %v466, 32
        %vm479 = vmand %vm477, %vm470
        %vm480 = vmand %vm478, %vm471
        %vm481 = vcmp.ge.s32.totalorder %v467, 2
        %vm482 = vmand %vm481, %vm475
        %vm483 = vcmp.ge.s32.totalorder %v305, 16
        %vm484 = vcmp.ge.s32.totalorder %v466, 16
        %vm485 = vmand %vm483, %vm470
        %vm486 = vmand %vm484, %vm471
        %vm487 = vcmp.ge.s32.totalorder %v467, 1
        %vm488 = vmand %vm487, %vm475
        %vm489 = vcmp.ge.s32.totalorder %v305, 0
        %vm490 = vcmp.ge.s32.totalorder %v466, 0
        %vm491 = vcmp.lt.s32.totalorder %v305, 240
        %vm492 = vcmp.lt.s32.totalorder %v466, 240
        %vm493 = vmand %vm489, %vm491
        %vm494 = vmand %vm490, %vm492
        %vm495 = vcmp.ge.s32.totalorder %v467, 0
        %vm496 = vcmp.lt.s32.totalorder %v467, 15
        %vm497 = vmand %vm495, %vm496
        %vm498 = vcmp.lt.s32.totalorder %v305, 224
        %vm499 = vcmp.lt.s32.totalorder %v466, 224
        %vm500 = vmand %vm489, %vm498
        %vm501 = vmand %vm490, %vm499
        %vm502 = vcmp.lt.s32.totalorder %v467, 14
        %vm503 = vmand %vm495, %vm502
        %vm504 = vcmp.lt.s32.totalorder %v305, 208
        %vm505 = vcmp.lt.s32.totalorder %v466, 208
        %vm506 = vmand %vm489, %vm504
        %vm507 = vmand %vm490, %vm505
        %vm508 = vcmp.lt.s32.totalorder %v467, 13
        %vm509 = vmand %vm495, %vm508
        %s510 = sld [smem:[#allocation2]]
        %s511 = sld [smem:[#allocation2 + $0x1]]
        %s512 = sld [smem:[#allocation2 + $0x2]]
        %s513 = sld [smem:[#allocation2 + $0x3]]
        %s514 = sld [smem:[#allocation2 + $0x4]]
        %s515 = sld [smem:[#allocation2 + $0x5]]
        %s516 = sld [smem:[#allocation2 + $0x6]]
        %s517 = sld [smem:[#allocation2 + $0x7]]
        %s518 = sld [smem:[#allocation2 + $0x8]]
        %s519 = sld [smem:[#allocation2 + $0x9]]
        %s520 = sld [smem:[#allocation2 + $0xa]]
        %s521 = sld [smem:[#allocation2 + $0xb]]
        %s522 = sld [smem:[#allocation2 + $0xc]]
        %s523 = sld [smem:[#allocation2 + $0xd]]
        %s524 = sld [smem:[#allocation2 + $0xe]]
        %s525 = sld [smem:[#allocation2 + $0xf]]
        %s526 = sld [smem:[#allocation2 + $0x10]]
        %s527 = sld [smem:[#allocation2 + $0x11]]
        %s528 = sld [smem:[#allocation2 + $0x12]]
        %s529 = sld [smem:[#allocation2 + $0x13]]
        %s530 = sld [smem:[#allocation2 + $0x14]]
        %s531 = sld [smem:[#allocation2 + $0x15]]
        %s532 = sld [smem:[#allocation2 + $0x16]]
        %s533 = sld [smem:[#allocation2 + $0x17]]
        %s534 = sld [smem:[#allocation2 + $0x18]]
        %s535 = sld [smem:[#allocation2 + $0x19]]
        %s536 = sld [smem:[#allocation2 + $0x1a]]
        %s537 = sld [smem:[#allocation2 + $0x1b]]
        %s538 = sld [smem:[#allocation2 + $0x1c]]
        %s539 = sld [smem:[#allocation2 + $0x1d]]
        %s540 = sld [smem:[#allocation2 + $0x1e]]
        %s541 = sld [smem:[#allocation2 + $0x1f]]
        %s542 = sld [smem:[#allocation2 + $0x20]]
        %s543 = sld [smem:[#allocation2 + $0x21]]
        %s544 = sld [smem:[#allocation2 + $0x22]]
        %s545 = sld [smem:[#allocation2 + $0x23]]
        %s546 = sld [smem:[#allocation2 + $0x24]]
        %s547 = sld [smem:[#allocation2 + $0x25]]
        %s548 = sld [smem:[#allocation2 + $0x26]]
        %s549 = sld [smem:[#allocation2 + $0x27]]
        %s550 = sld [smem:[#allocation2 + $0x28]]
        %s551 = sld [smem:[#allocation2 + $0x29]]
        %s552 = sld [smem:[#allocation2 + $0x2a]]
        %s553 = sld [smem:[#allocation2 + $0x2b]]
        %s554 = sld [smem:[#allocation2 + $0x2c]]
        %s555 = sld [smem:[#allocation2 + $0x2d]]
        %s556 = sld [smem:[#allocation2 + $0x2e]]
        %s557 = sld [smem:[#allocation2 + $0x2f]]
        %s558 = sld [smem:[#allocation2 + $0x30]]
        %s559 = sld [smem:[#allocation2 + $0x31]]
        %s560 = sld [smem:[#allocation2 + $0x32]]
        %s561 = sld [smem:[#allocation2 + $0x33]]
        %s562 = sld [smem:[#allocation2 + $0x34]]
        %s563 = sld [smem:[#allocation2 + $0x35]]
        %s564 = sld [smem:[#allocation2 + $0x36]]
        %s565 = sld [smem:[#allocation2 + $0x37]]
        %s566 = sld [smem:[#allocation2 + $0x38]]
        %s567 = sld [smem:[#allocation2 + $0x39]]
        %s568 = sld [smem:[#allocation2 + $0x3a]]
        %s569 = sld [smem:[#allocation2 + $0x3b]]
        %s570 = sld [smem:[#allocation2 + $0x3c]]
        %s571 = sld [smem:[#allocation2 + $0x3d]]
        %s572 = sld [smem:[#allocation2 + $0x3e]]
        %s573 = sld [smem:[#allocation2 + $0x3f]]
        %s574 = sld [smem:[#allocation2 + $0x40]]
        %s575 = sld [smem:[#allocation2 + $0x41]]
        %s576 = sld [smem:[#allocation2 + $0x42]]
        %s577 = sld [smem:[#allocation2 + $0x43]]
        %s578 = sld [smem:[#allocation2 + $0x44]]
        %s579 = sld [smem:[#allocation2 + $0x45]]
        %s580 = sld [smem:[#allocation2 + $0x46]]
        %s581 = sld [smem:[#allocation2 + $0x47]]
        %s582 = sld [smem:[#allocation2 + $0x48]]
        %s583 = sld [smem:[#allocation2 + $0x49]]
        %s584 = sld [smem:[#allocation2 + $0x4a]]
        %s585 = sld [smem:[#allocation2 + $0x4b]]
        %s586 = sld [smem:[#allocation2 + $0x4c]]
        %s587 = sld [smem:[#allocation2 + $0x4d]]
        %s588 = sld [smem:[#allocation2 + $0x4e]]
        %s589 = sld [smem:[#allocation2 + $0x4f]]
        %s590 = sld [smem:[#allocation2 + $0x50]]
        %s591 = sld [smem:[#allocation2 + $0x51]]
        %s592 = sld [smem:[#allocation2 + $0x52]]
        %s593 = sld [smem:[#allocation2 + $0x53]]
        %s594 = sld [smem:[#allocation2 + $0x54]]
        %s595 = sld [smem:[#allocation2 + $0x55]]
        %s596 = sld [smem:[#allocation2 + $0x56]]
        %s597 = sld [smem:[#allocation2 + $0x57]]
        %s598 = sld [smem:[#allocation2 + $0x58]]
        %s599 = sld [smem:[#allocation2 + $0x59]]
        %s600 = sld [smem:[#allocation2 + $0x5a]]
        %s601 = sld [smem:[#allocation2 + $0x5b]]
        %s602 = sld [smem:[#allocation2 + $0x5c]]
        %s603 = sld [smem:[#allocation2 + $0x5d]]
        %s604 = sld [smem:[#allocation2 + $0x5e]]
        %s605 = sld [smem:[#allocation2 + $0x5f]]
        %s606 = sld [smem:[#allocation2 + $0x60]]
        %s607 = sld [smem:[#allocation2 + $0x61]]
        %608 = vrot.lane.b32.xlu0 %v446, 51
        %v609 = vpop.permute.xlu0 %608
        %610 = vrot.lane.b32.xlu0 %v447, 51
        %v611 = vpop.permute.xlu0 %610
        %vm612 = vcmp.lt.s32.totalorder %v305, 51
        %v613 = vsel %vm612, %v609, %v611
        %v614 = vsel %vm612, %v611, %v609
        %615 = vrot.lane.b32.xlu0 %v456, 51
        %v616 = vpop.permute.xlu0 %615
        %617 = vrot.lane.b32.xlu0 %v465, 51
        %v618 = vpop.permute.xlu0 %617
        %v619 = vsel %vm612, %v616, %v618
        %v620 = vsel %vm612, %v618, %v616
        %v621 = vstv %s510
        %v622 = vmul.f32 %v621, %v614
        %v623 = vmul.f32 %v621, %v613
        %v624 = vstv %s559
        %v625 = vmul.f32 %v624, %v620
        %v626 = vmul.f32 %v624, %v619
        %v627 = vadd.f32 %v622, %v625
        %v628 = vadd.f32 %v623, %v626
        %v629 = vsel %vm476, 1, 0
        %v630 = vperm.slane %v629, 0
        %v631 = vperm.slane %v629, 1
        %vm632 = vcmp.ne.s32.totalorder %v630, 0
        %vm633 = vcmp.ne.s32.totalorder %v631, 0
        %vm634 = vmand %vm472, %vm632
        %vm635 = vmand %vm473, %vm633
        %v636 = vsel %vm634, %v627, 0.0
        %v637 = vsel %vm635, %v628, 0.0
        %v638 = vadd.f32 %v636, 0.0
        %v639 = vadd.f32 %v637, 0.0
        %640 = vrot.lane.b32.xlu0 %v446, 50
        %v641 = vpop.permute.xlu0 %640
        %642 = vrot.lane.b32.xlu0 %v447, 50
        %v643 = vpop.permute.xlu0 %642
        %vm644 = vcmp.lt.s32.totalorder %v305, 50
        %v645 = vsel %vm644, %v641, %v643
        %v646 = vsel %vm644, %v643, %v641
        %647 = vrot.lane.b32.xlu0 %v456, 50
        %v648 = vpop.permute.xlu0 %647
        %649 = vrot.lane.b32.xlu0 %v465, 50
        %v650 = vpop.permute.xlu0 %649
        %v651 = vsel %vm644, %v648, %v650
        %v652 = vsel %vm644, %v650, %v648
        %v653 = vstv %s511
        %v654 = vmul.f32 %v653, %v646
        %v655 = vmul.f32 %v653, %v645
        %v656 = vstv %s560
        %v657 = vmul.f32 %v656, %v652
        %v658 = vmul.f32 %v656, %v651
        %v659 = vadd.f32 %v654, %v657
        %v660 = vadd.f32 %v655, %v658
        %v661 = vsel %vm482, 1, 0
        %v662 = vperm.slane %v661, 0
        %v663 = vperm.slane %v661, 1
        %vm664 = vcmp.ne.s32.totalorder %v662, 0
        %vm665 = vcmp.ne.s32.totalorder %v663, 0
        %vm666 = vmand %vm472, %vm664
        %vm667 = vmand %vm473, %vm665
        %v668 = vsel %vm666, %v659, 0.0
        %v669 = vsel %vm667, %v660, 0.0
        %v670 = vadd.f32 %v668, 0.0
        %v671 = vadd.f32 %v669, 0.0
        %672 = vrot.lane.b32.xlu0 %v446, 49
        %v673 = vpop.permute.xlu0 %672
        %674 = vrot.lane.b32.xlu0 %v447, 49
        %v675 = vpop.permute.xlu0 %674
        %vm676 = vcmp.lt.s32.totalorder %v305, 49
        %v677 = vsel %vm676, %v673, %v675
        %v678 = vsel %vm676, %v675, %v673
        %679 = vrot.lane.b32.xlu0 %v456, 49
        %v680 = vpop.permute.xlu0 %679
        %681 = vrot.lane.b32.xlu0 %v465, 49
        %v682 = vpop.permute.xlu0 %681
        %v683 = vsel %vm676, %v680, %v682
        %v684 = vsel %vm676, %v682, %v680
        %v685 = vstv %s512
        %v686 = vmul.f32 %v685, %v678
        %v687 = vmul.f32 %v685, %v677
        %v688 = vstv %s561
        %v689 = vmul.f32 %v688, %v684
        %v690 = vmul.f32 %v688, %v683
        %v691 = vadd.f32 %v686, %v689
        %v692 = vadd.f32 %v687, %v690
        %v693 = vsel %vm488, 1, 0
        %v694 = vperm.slane %v693, 0
        %v695 = vperm.slane %v693, 1
        %vm696 = vcmp.ne.s32.totalorder %v694, 0
        %vm697 = vcmp.ne.s32.totalorder %v695, 0
        %vm698 = vmand %vm472, %vm696
        %vm699 = vmand %vm473, %vm697
        %v700 = vsel %vm698, %v691, 0.0
        %v701 = vsel %vm699, %v692, 0.0
        %v702 = vadd.f32 %v638, %v700
        %v703 = vadd.f32 %v639, %v701
        %704 = vrot.lane.b32.xlu0 %v446, 48
        %v705 = vpop.permute.xlu0 %704
        %706 = vrot.lane.b32.xlu0 %v447, 48
        %v707 = vpop.permute.xlu0 %706
        %vm708 = vcmp.lt.s32.totalorder %v305, 48
        %v709 = vsel %vm708, %v705, %v707
        %v710 = vsel %vm708, %v707, %v705
        %711 = vrot.lane.b32.xlu0 %v456, 48
        %v712 = vpop.permute.xlu0 %711
        %713 = vrot.lane.b32.xlu0 %v465, 48
        %v714 = vpop.permute.xlu0 %713
        %v715 = vsel %vm708, %v712, %v714
        %v716 = vsel %vm708, %v714, %v712
        %v717 = vstv %s513
        %v718 = vmul.f32 %v717, %v710
        %v719 = vmul.f32 %v717, %v709
        %v720 = vstv %s562
        %v721 = vmul.f32 %v720, %v716
        %v722 = vmul.f32 %v720, %v715
        %v723 = vadd.f32 %v718, %v721
        %v724 = vadd.f32 %v719, %v722
        %v725 = vsel %vm472, %v723, 0.0
        %v726 = vsel %vm473, %v724, 0.0
        %v727 = vadd.f32 %v670, %v725
        %v728 = vadd.f32 %v671, %v726
        %729 = vrot.lane.b32.xlu0 %v446, 47
        %v730 = vpop.permute.xlu0 %729
        %731 = vrot.lane.b32.xlu0 %v447, 47
        %v732 = vpop.permute.xlu0 %731
        %vm733 = vcmp.lt.s32.totalorder %v305, 47
        %v734 = vsel %vm733, %v730, %v732
        %v735 = vsel %vm733, %v732, %v730
        %736 = vrot.lane.b32.xlu0 %v456, 47
        %v737 = vpop.permute.xlu0 %736
        %738 = vrot.lane.b32.xlu0 %v465, 47
        %v739 = vpop.permute.xlu0 %738
        %v740 = vsel %vm733, %v737, %v739
        %v741 = vsel %vm733, %v739, %v737
        %v742 = vstv %s514
        %v743 = vmul.f32 %v742, %v735
        %v744 = vmul.f32 %v742, %v734
        %v745 = vstv %s563
        %v746 = vmul.f32 %v745, %v741
        %v747 = vmul.f32 %v745, %v740
        %v748 = vadd.f32 %v743, %v746
        %v749 = vadd.f32 %v744, %v747
        %v750 = vsel %vm497, 1, 0
        %v751 = vperm.slane %v750, 0
        %v752 = vperm.slane %v750, 1
        %vm753 = vcmp.ne.s32.totalorder %v751, 0
        %vm754 = vcmp.ne.s32.totalorder %v752, 0
        %vm755 = vmand %vm472, %vm753
        %vm756 = vmand %vm473, %vm754
        %v757 = vsel %vm755, %v748, 0.0
        %v758 = vsel %vm756, %v749, 0.0
        %v759 = vadd.f32 %v702, %v757
        %v760 = vadd.f32 %v703, %v758
        %761 = vrot.lane.b32.xlu0 %v446, 46
        %v762 = vpop.permute.xlu0 %761
        %763 = vrot.lane.b32.xlu0 %v447, 46
        %v764 = vpop.permute.xlu0 %763
        %vm765 = vcmp.lt.s32.totalorder %v305, 46
        %v766 = vsel %vm765, %v762, %v764
        %v767 = vsel %vm765, %v764, %v762
        %768 = vrot.lane.b32.xlu0 %v456, 46
        %v769 = vpop.permute.xlu0 %768
        %770 = vrot.lane.b32.xlu0 %v465, 46
        %v771 = vpop.permute.xlu0 %770
        %v772 = vsel %vm765, %v769, %v771
        %v773 = vsel %vm765, %v771, %v769
        %v774 = vstv %s515
        %v775 = vmul.f32 %v774, %v767
        %v776 = vmul.f32 %v774, %v766
        %v777 = vstv %s564
        %v778 = vmul.f32 %v777, %v773
        %v779 = vmul.f32 %v777, %v772
        %v780 = vadd.f32 %v775, %v778
        %v781 = vadd.f32 %v776, %v779
        %v782 = vsel %vm503, 1, 0
        %v783 = vperm.slane %v782, 0
        %v784 = vperm.slane %v782, 1
        %vm785 = vcmp.ne.s32.totalorder %v783, 0
        %vm786 = vcmp.ne.s32.totalorder %v784, 0
        %vm787 = vmand %vm472, %vm785
        %vm788 = vmand %vm473, %vm786
        %v789 = vsel %vm787, %v780, 0.0
        %v790 = vsel %vm788, %v781, 0.0
        %v791 = vadd.f32 %v727, %v789
        %v792 = vadd.f32 %v728, %v790
        %793 = vrot.lane.b32.xlu0 %v446, 45
        %v794 = vpop.permute.xlu0 %793
        %795 = vrot.lane.b32.xlu0 %v447, 45
        %v796 = vpop.permute.xlu0 %795
        %vm797 = vcmp.lt.s32.totalorder %v305, 45
        %v798 = vsel %vm797, %v794, %v796
        %v799 = vsel %vm797, %v796, %v794
        %800 = vrot.lane.b32.xlu0 %v456, 45
        %v801 = vpop.permute.xlu0 %800
        %802 = vrot.lane.b32.xlu0 %v465, 45
        %v803 = vpop.permute.xlu0 %802
        %v804 = vsel %vm797, %v801, %v803
        %v805 = vsel %vm797, %v803, %v801
        %v806 = vstv %s516
        %v807 = vmul.f32 %v806, %v799
        %v808 = vmul.f32 %v806, %v798
        %v809 = vstv %s565
        %v810 = vmul.f32 %v809, %v805
        %v811 = vmul.f32 %v809, %v804
        %v812 = vadd.f32 %v807, %v810
        %v813 = vadd.f32 %v808, %v811
        %v814 = vsel %vm509, 1, 0
        %v815 = vperm.slane %v814, 0
        %v816 = vperm.slane %v814, 1
        %vm817 = vcmp.ne.s32.totalorder %v815, 0
        %vm818 = vcmp.ne.s32.totalorder %v816, 0
        %vm819 = vmand %vm472, %vm817
        %vm820 = vmand %vm473, %vm818
        %v821 = vsel %vm819, %v812, 0.0
        %v822 = vsel %vm820, %v813, 0.0
        %v823 = vadd.f32 %v759, %v821
        %v824 = vadd.f32 %v760, %v822
        %825 = vrot.lane.b32.xlu0 %v446, 35
        %v826 = vpop.permute.xlu0 %825
        %827 = vrot.lane.b32.xlu0 %v447, 35
        %v828 = vpop.permute.xlu0 %827
        %vm829 = vcmp.lt.s32.totalorder %v305, 35
        %v830 = vsel %vm829, %v826, %v828
        %v831 = vsel %vm829, %v828, %v826
        %832 = vrot.lane.b32.xlu0 %v456, 35
        %v833 = vpop.permute.xlu0 %832
        %834 = vrot.lane.b32.xlu0 %v465, 35
        %v835 = vpop.permute.xlu0 %834
        %v836 = vsel %vm829, %v833, %v835
        %v837 = vsel %vm829, %v835, %v833
        %v838 = vstv %s517
        %v839 = vmul.f32 %v838, %v831
        %v840 = vmul.f32 %v838, %v830
        %v841 = vstv %s566
        %v842 = vmul.f32 %v841, %v837
        %v843 = vmul.f32 %v841, %v836
        %v844 = vadd.f32 %v839, %v842
        %v845 = vadd.f32 %v840, %v843
        %vm846 = vmand %vm479, %vm632
        %vm847 = vmand %vm480, %vm633
        %v848 = vsel %vm846, %v844, 0.0
        %v849 = vsel %vm847, %v845, 0.0
        %v850 = vadd.f32 %v791, %v848
        %v851 = vadd.f32 %v792, %v849
        %852 = vrot.lane.b32.xlu0 %v446, 34
        %v853 = vpop.permute.xlu0 %852
        %854 = vrot.lane.b32.xlu0 %v447, 34
        %v855 = vpop.permute.xlu0 %854
        %vm856 = vcmp.lt.s32.totalorder %v305, 34
        %v857 = vsel %vm856, %v853, %v855
        %v858 = vsel %vm856, %v855, %v853
        %859 = vrot.lane.b32.xlu0 %v456, 34
        %v860 = vpop.permute.xlu0 %859
        %861 = vrot.lane.b32.xlu0 %v465, 34
        %v862 = vpop.permute.xlu0 %861
        %v863 = vsel %vm856, %v860, %v862
        %v864 = vsel %vm856, %v862, %v860
        %v865 = vstv %s518
        %v866 = vmul.f32 %v865, %v858
        %v867 = vmul.f32 %v865, %v857
        %v868 = vstv %s567
        %v869 = vmul.f32 %v868, %v864
        %v870 = vmul.f32 %v868, %v863
        %v871 = vadd.f32 %v866, %v869
        %v872 = vadd.f32 %v867, %v870
        %vm873 = vmand %vm479, %vm664
        %vm874 = vmand %vm480, %vm665
        %v875 = vsel %vm873, %v871, 0.0
        %v876 = vsel %vm874, %v872, 0.0
        %v877 = vadd.f32 %v823, %v875
        %v878 = vadd.f32 %v824, %v876
        %879 = vrot.lane.b32.xlu0 %v446, 33
        %v880 = vpop.permute.xlu0 %879
        %881 = vrot.lane.b32.xlu0 %v447, 33
        %v882 = vpop.permute.xlu0 %881
        %vm883 = vcmp.lt.s32.totalorder %v305, 33
        %v884 = vsel %vm883, %v880, %v882
        %v885 = vsel %vm883, %v882, %v880
        %886 = vrot.lane.b32.xlu0 %v456, 33
        %v887 = vpop.permute.xlu0 %886
        %888 = vrot.lane.b32.xlu0 %v465, 33
        %v889 = vpop.permute.xlu0 %888
        %v890 = vsel %vm883, %v887, %v889
        %v891 = vsel %vm883, %v889, %v887
        %v892 = vstv %s519
        %v893 = vmul.f32 %v892, %v885
        %v894 = vmul.f32 %v892, %v884
        %v895 = vstv %s568
        %v896 = vmul.f32 %v895, %v891
        %v897 = vmul.f32 %v895, %v890
        %v898 = vadd.f32 %v893, %v896
        %v899 = vadd.f32 %v894, %v897
        %vm900 = vmand %vm479, %vm696
        %vm901 = vmand %vm480, %vm697
        %v902 = vsel %vm900, %v898, 0.0
        %v903 = vsel %vm901, %v899, 0.0
        %v904 = vadd.f32 %v850, %v902
        %v905 = vadd.f32 %v851, %v903
        %906 = vrot.lane.b32.xlu0 %v446, 32
        %v907 = vpop.permute.xlu0 %906
        %908 = vrot.lane.b32.xlu0 %v447, 32
        %v909 = vpop.permute.xlu0 %908
        %vm910 = vcmp.lt.s32.totalorder %v305, 32
        %v911 = vsel %vm910, %v907, %v909
        %v912 = vsel %vm910, %v909, %v907
        %913 = vrot.lane.b32.xlu0 %v456, 32
        %v914 = vpop.permute.xlu0 %913
        %915 = vrot.lane.b32.xlu0 %v465, 32
        %v916 = vpop.permute.xlu0 %915
        %v917 = vsel %vm910, %v914, %v916
        %v918 = vsel %vm910, %v916, %v914
        %v919 = vstv %s520
        %v920 = vmul.f32 %v919, %v912
        %v921 = vmul.f32 %v919, %v911
        %v922 = vstv %s569
        %v923 = vmul.f32 %v922, %v918
        %v924 = vmul.f32 %v922, %v917
        %v925 = vadd.f32 %v920, %v923
        %v926 = vadd.f32 %v921, %v924
        %v927 = vsel %vm479, %v925, 0.0
        %v928 = vsel %vm480, %v926, 0.0
        %v929 = vadd.f32 %v877, %v927
        %v930 = vadd.f32 %v878, %v928
        %931 = vrot.lane.b32.xlu0 %v446, 31
        %v932 = vpop.permute.xlu0 %931
        %933 = vrot.lane.b32.xlu0 %v447, 31
        %v934 = vpop.permute.xlu0 %933
        %vm935 = vcmp.lt.s32.totalorder %v305, 31
        %v936 = vsel %vm935, %v932, %v934
        %v937 = vsel %vm935, %v934, %v932
        %938 = vrot.lane.b32.xlu0 %v456, 31
        %v939 = vpop.permute.xlu0 %938
        %940 = vrot.lane.b32.xlu0 %v465, 31
        %v941 = vpop.permute.xlu0 %940
        %v942 = vsel %vm935, %v939, %v941
        %v943 = vsel %vm935, %v941, %v939
        %v944 = vstv %s521
        %v945 = vmul.f32 %v944, %v937
        %v946 = vmul.f32 %v944, %v936
        %v947 = vstv %s570
        %v948 = vmul.f32 %v947, %v943
        %v949 = vmul.f32 %v947, %v942
        %v950 = vadd.f32 %v945, %v948
        %v951 = vadd.f32 %v946, %v949
        %vm952 = vmand %vm479, %vm753
        %vm953 = vmand %vm480, %vm754
        %v954 = vsel %vm952, %v950, 0.0
        %v955 = vsel %vm953, %v951, 0.0
        %v956 = vadd.f32 %v904, %v954
        %v957 = vadd.f32 %v905, %v955
        %958 = vrot.lane.b32.xlu0 %v446, 30
        %v959 = vpop.permute.xlu0 %958
        %960 = vrot.lane.b32.xlu0 %v447, 30
        %v961 = vpop.permute.xlu0 %960
        %vm962 = vcmp.lt.s32.totalorder %v305, 30
        %v963 = vsel %vm962, %v959, %v961
        %v964 = vsel %vm962, %v961, %v959
        %965 = vrot.lane.b32.xlu0 %v456, 30
        %v966 = vpop.permute.xlu0 %965
        %967 = vrot.lane.b32.xlu0 %v465, 30
        %v968 = vpop.permute.xlu0 %967
        %v969 = vsel %vm962, %v966, %v968
        %v970 = vsel %vm962, %v968, %v966
        %v971 = vstv %s522
        %v972 = vmul.f32 %v971, %v964
        %v973 = vmul.f32 %v971, %v963
        %v974 = vstv %s571
        %v975 = vmul.f32 %v974, %v970
        %v976 = vmul.f32 %v974, %v969
        %v977 = vadd.f32 %v972, %v975
        %v978 = vadd.f32 %v973, %v976
        %vm979 = vmand %vm479, %vm785
        %vm980 = vmand %vm480, %vm786
        %v981 = vsel %vm979, %v977, 0.0
        %v982 = vsel %vm980, %v978, 0.0
        %v983 = vadd.f32 %v929, %v981
        %v984 = vadd.f32 %v930, %v982
        %985 = vrot.lane.b32.xlu0 %v446, 29
        %v986 = vpop.permute.xlu0 %985
        %987 = vrot.lane.b32.xlu0 %v447, 29
        %v988 = vpop.permute.xlu0 %987
        %vm989 = vcmp.lt.s32.totalorder %v305, 29
        %v990 = vsel %vm989, %v986, %v988
        %v991 = vsel %vm989, %v988, %v986
        %992 = vrot.lane.b32.xlu0 %v456, 29
        %v993 = vpop.permute.xlu0 %992
        %994 = vrot.lane.b32.xlu0 %v465, 29
        %v995 = vpop.permute.xlu0 %994
        %v996 = vsel %vm989, %v993, %v995
        %v997 = vsel %vm989, %v995, %v993
        %v998 = vstv %s523
        %v999 = vmul.f32 %v998, %v991
        %v1000 = vmul.f32 %v998, %v990
        %v1001 = vstv %s572
        %v1002 = vmul.f32 %v1001, %v997
        %v1003 = vmul.f32 %v1001, %v996
        %v1004 = vadd.f32 %v999, %v1002
        %v1005 = vadd.f32 %v1000, %v1003
        %vm1006 = vmand %vm479, %vm817
        %vm1007 = vmand %vm480, %vm818
        %v1008 = vsel %vm1006, %v1004, 0.0
        %v1009 = vsel %vm1007, %v1005, 0.0
        %v1010 = vadd.f32 %v956, %v1008
        %v1011 = vadd.f32 %v957, %v1009
        %1012 = vrot.lane.b32.xlu0 %v446, 19
        %v1013 = vpop.permute.xlu0 %1012
        %1014 = vrot.lane.b32.xlu0 %v447, 19
        %v1015 = vpop.permute.xlu0 %1014
        %vm1016 = vcmp.lt.s32.totalorder %v305, 19
        %v1017 = vsel %vm1016, %v1013, %v1015
        %v1018 = vsel %vm1016, %v1015, %v1013
        %1019 = vrot.lane.b32.xlu0 %v456, 19
        %v1020 = vpop.permute.xlu0 %1019
        %1021 = vrot.lane.b32.xlu0 %v465, 19
        %v1022 = vpop.permute.xlu0 %1021
        %v1023 = vsel %vm1016, %v1020, %v1022
        %v1024 = vsel %vm1016, %v1022, %v1020
        %v1025 = vstv %s524
        %v1026 = vmul.f32 %v1025, %v1018
        %v1027 = vmul.f32 %v1025, %v1017
        %v1028 = vstv %s573
        %v1029 = vmul.f32 %v1028, %v1024
        %v1030 = vmul.f32 %v1028, %v1023
        %v1031 = vadd.f32 %v1026, %v1029
        %v1032 = vadd.f32 %v1027, %v1030
        %vm1033 = vmand %vm485, %vm632
        %vm1034 = vmand %vm486, %vm633
        %v1035 = vsel %vm1033, %v1031, 0.0
        %v1036 = vsel %vm1034, %v1032, 0.0
        %v1037 = vadd.f32 %v983, %v1035
        %v1038 = vadd.f32 %v984, %v1036
        %1039 = vrot.lane.b32.xlu0 %v446, 18
        %v1040 = vpop.permute.xlu0 %1039
        %1041 = vrot.lane.b32.xlu0 %v447, 18
        %v1042 = vpop.permute.xlu0 %1041
        %vm1043 = vcmp.lt.s32.totalorder %v305, 18
        %v1044 = vsel %vm1043, %v1040, %v1042
        %v1045 = vsel %vm1043, %v1042, %v1040
        %1046 = vrot.lane.b32.xlu0 %v456, 18
        %v1047 = vpop.permute.xlu0 %1046
        %1048 = vrot.lane.b32.xlu0 %v465, 18
        %v1049 = vpop.permute.xlu0 %1048
        %v1050 = vsel %vm1043, %v1047, %v1049
        %v1051 = vsel %vm1043, %v1049, %v1047
        %v1052 = vstv %s525
        %v1053 = vmul.f32 %v1052, %v1045
        %v1054 = vmul.f32 %v1052, %v1044
        %v1055 = vstv %s574
        %v1056 = vmul.f32 %v1055, %v1051
        %v1057 = vmul.f32 %v1055, %v1050
        %v1058 = vadd.f32 %v1053, %v1056
        %v1059 = vadd.f32 %v1054, %v1057
        %vm1060 = vmand %vm485, %vm664
        %vm1061 = vmand %vm486, %vm665
        %v1062 = vsel %vm1060, %v1058, 0.0
        %v1063 = vsel %vm1061, %v1059, 0.0
        %v1064 = vadd.f32 %v1010, %v1062
        %v1065 = vadd.f32 %v1011, %v1063
        %1066 = vrot.lane.b32.xlu0 %v446, 17
        %v1067 = vpop.permute.xlu0 %1066
        %1068 = vrot.lane.b32.xlu0 %v447, 17
        %v1069 = vpop.permute.xlu0 %1068
        %vm1070 = vcmp.lt.s32.totalorder %v305, 17
        %v1071 = vsel %vm1070, %v1067, %v1069
        %v1072 = vsel %vm1070, %v1069, %v1067
        %1073 = vrot.lane.b32.xlu0 %v456, 17
        %v1074 = vpop.permute.xlu0 %1073
        %1075 = vrot.lane.b32.xlu0 %v465, 17
        %v1076 = vpop.permute.xlu0 %1075
        %v1077 = vsel %vm1070, %v1074, %v1076
        %v1078 = vsel %vm1070, %v1076, %v1074
        %v1079 = vstv %s526
        %v1080 = vmul.f32 %v1079, %v1072
        %v1081 = vmul.f32 %v1079, %v1071
        %v1082 = vstv %s575
        %v1083 = vmul.f32 %v1082, %v1078
        %v1084 = vmul.f32 %v1082, %v1077
        %v1085 = vadd.f32 %v1080, %v1083
        %v1086 = vadd.f32 %v1081, %v1084
        %vm1087 = vmand %vm485, %vm696
        %vm1088 = vmand %vm486, %vm697
        %v1089 = vsel %vm1087, %v1085, 0.0
        %v1090 = vsel %vm1088, %v1086, 0.0
        %v1091 = vadd.f32 %v1037, %v1089
        %v1092 = vadd.f32 %v1038, %v1090
        %1093 = vrot.lane.b32.xlu0 %v446, 16
        %v1094 = vpop.permute.xlu0 %1093
        %1095 = vrot.lane.b32.xlu0 %v447, 16
        %v1096 = vpop.permute.xlu0 %1095
        %vm1097 = vcmp.lt.s32.totalorder %v305, 16
        %v1098 = vsel %vm1097, %v1094, %v1096
        %v1099 = vsel %vm1097, %v1096, %v1094
        %1100 = vrot.lane.b32.xlu0 %v456, 16
        %v1101 = vpop.permute.xlu0 %1100
        %1102 = vrot.lane.b32.xlu0 %v465, 16
        %v1103 = vpop.permute.xlu0 %1102
        %v1104 = vsel %vm1097, %v1101, %v1103
        %v1105 = vsel %vm1097, %v1103, %v1101
        %v1106 = vstv %s527
        %v1107 = vmul.f32 %v1106, %v1099
        %v1108 = vmul.f32 %v1106, %v1098
        %v1109 = vstv %s576
        %v1110 = vmul.f32 %v1109, %v1105
        %v1111 = vmul.f32 %v1109, %v1104
        %v1112 = vadd.f32 %v1107, %v1110
        %v1113 = vadd.f32 %v1108, %v1111
        %v1114 = vsel %vm485, %v1112, 0.0
        %v1115 = vsel %vm486, %v1113, 0.0
        %v1116 = vadd.f32 %v1064, %v1114
        %v1117 = vadd.f32 %v1065, %v1115
        %1118 = vrot.lane.b32.xlu0 %v446, 15
        %v1119 = vpop.permute.xlu0 %1118
        %1120 = vrot.lane.b32.xlu0 %v447, 15
        %v1121 = vpop.permute.xlu0 %1120
        %vm1122 = vcmp.lt.s32.totalorder %v305, 15
        %v1123 = vsel %vm1122, %v1119, %v1121
        %v1124 = vsel %vm1122, %v1121, %v1119
        %1125 = vrot.lane.b32.xlu0 %v456, 15
        %v1126 = vpop.permute.xlu0 %1125
        %1127 = vrot.lane.b32.xlu0 %v465, 15
        %v1128 = vpop.permute.xlu0 %1127
        %v1129 = vsel %vm1122, %v1126, %v1128
        %v1130 = vsel %vm1122, %v1128, %v1126
        %v1131 = vstv %s528
        %v1132 = vmul.f32 %v1131, %v1124
        %v1133 = vmul.f32 %v1131, %v1123
        %v1134 = vstv %s577
        %v1135 = vmul.f32 %v1134, %v1130
        %v1136 = vmul.f32 %v1134, %v1129
        %v1137 = vadd.f32 %v1132, %v1135
        %v1138 = vadd.f32 %v1133, %v1136
        %vm1139 = vmand %vm485, %vm753
        %vm1140 = vmand %vm486, %vm754
        %v1141 = vsel %vm1139, %v1137, 0.0
        %v1142 = vsel %vm1140, %v1138, 0.0
        %v1143 = vadd.f32 %v1091, %v1141
        %v1144 = vadd.f32 %v1092, %v1142
        %1145 = vrot.lane.b32.xlu0 %v446, 14
        %v1146 = vpop.permute.xlu0 %1145
        %1147 = vrot.lane.b32.xlu0 %v447, 14
        %v1148 = vpop.permute.xlu0 %1147
        %vm1149 = vcmp.lt.s32.totalorder %v305, 14
        %v1150 = vsel %vm1149, %v1146, %v1148
        %v1151 = vsel %vm1149, %v1148, %v1146
        %1152 = vrot.lane.b32.xlu0 %v456, 14
        %v1153 = vpop.permute.xlu0 %1152
        %1154 = vrot.lane.b32.xlu0 %v465, 14
        %v1155 = vpop.permute.xlu0 %1154
        %v1156 = vsel %vm1149, %v1153, %v1155
        %v1157 = vsel %vm1149, %v1155, %v1153
        %v1158 = vstv %s529
        %v1159 = vmul.f32 %v1158, %v1151
        %v1160 = vmul.f32 %v1158, %v1150
        %v1161 = vstv %s578
        %v1162 = vmul.f32 %v1161, %v1157
        %v1163 = vmul.f32 %v1161, %v1156
        %v1164 = vadd.f32 %v1159, %v1162
        %v1165 = vadd.f32 %v1160, %v1163
        %vm1166 = vmand %vm485, %vm785
        %vm1167 = vmand %vm486, %vm786
        %v1168 = vsel %vm1166, %v1164, 0.0
        %v1169 = vsel %vm1167, %v1165, 0.0
        %v1170 = vadd.f32 %v1116, %v1168
        %v1171 = vadd.f32 %v1117, %v1169
        %1172 = vrot.lane.b32.xlu0 %v446, 13
        %v1173 = vpop.permute.xlu0 %1172
        %1174 = vrot.lane.b32.xlu0 %v447, 13
        %v1175 = vpop.permute.xlu0 %1174
        %vm1176 = vcmp.lt.s32.totalorder %v305, 13
        %v1177 = vsel %vm1176, %v1173, %v1175
        %v1178 = vsel %vm1176, %v1175, %v1173
        %1179 = vrot.lane.b32.xlu0 %v456, 13
        %v1180 = vpop.permute.xlu0 %1179
        %1181 = vrot.lane.b32.xlu0 %v465, 13
        %v1182 = vpop.permute.xlu0 %1181
        %v1183 = vsel %vm1176, %v1180, %v1182
        %v1184 = vsel %vm1176, %v1182, %v1180
        %v1185 = vstv %s530
        %v1186 = vmul.f32 %v1185, %v1178
        %v1187 = vmul.f32 %v1185, %v1177
        %v1188 = vstv %s579
        %v1189 = vmul.f32 %v1188, %v1184
        %v1190 = vmul.f32 %v1188, %v1183
        %v1191 = vadd.f32 %v1186, %v1189
        %v1192 = vadd.f32 %v1187, %v1190
        %vm1193 = vmand %vm485, %vm817
        %vm1194 = vmand %vm486, %vm818
        %v1195 = vsel %vm1193, %v1191, 0.0
        %v1196 = vsel %vm1194, %v1192, 0.0
        %v1197 = vadd.f32 %v1143, %v1195
        %v1198 = vadd.f32 %v1144, %v1196
        %1199 = vrot.lane.b32.xlu0 %v446, 3
        %v1200 = vpop.permute.xlu0 %1199
        %1201 = vrot.lane.b32.xlu0 %v447, 3
        %v1202 = vpop.permute.xlu0 %1201
        %vm1203 = vcmp.lt.s32.totalorder %v305, 3
        %v1204 = vsel %vm1203, %v1200, %v1202
        %v1205 = vsel %vm1203, %v1202, %v1200
        %1206 = vrot.lane.b32.xlu0 %v456, 3
        %v1207 = vpop.permute.xlu0 %1206
        %1208 = vrot.lane.b32.xlu0 %v465, 3
        %v1209 = vpop.permute.xlu0 %1208
        %v1210 = vsel %vm1203, %v1207, %v1209
        %v1211 = vsel %vm1203, %v1209, %v1207
        %v1212 = vstv %s531
        %v1213 = vmul.f32 %v1212, %v1205
        %v1214 = vmul.f32 %v1212, %v1204
        %v1215 = vstv %s580
        %v1216 = vmul.f32 %v1215, %v1211
        %v1217 = vmul.f32 %v1215, %v1210
        %v1218 = vadd.f32 %v1213, %v1216
        %v1219 = vadd.f32 %v1214, %v1217
        %v1222 = vrot.slane %v1219, 7
        %v1223 = vsel %vm332, %v1218, %v1222
        %v1225 = vsel %vm476, %v1223, 0.0
        %v1227 = vperm.slane %v1225, 0
        %v1228 = vperm.slane %v1225, 1
        %v1231 = vadd.f32 %v1170, %v1227
        %v1232 = vadd.f32 %v1171, %v1228
        %1233 = vrot.lane.b32.xlu0 %v446, 2
        %v1234 = vpop.permute.xlu0 %1233
        %1235 = vrot.lane.b32.xlu0 %v447, 2
        %v1236 = vpop.permute.xlu0 %1235
        %vm1237 = vcmp.lt.s32.totalorder %v305, 2
        %v1238 = vsel %vm1237, %v1234, %v1236
        %v1239 = vsel %vm1237, %v1236, %v1234
        %1240 = vrot.lane.b32.xlu0 %v456, 2
        %v1241 = vpop.permute.xlu0 %1240
        %1242 = vrot.lane.b32.xlu0 %v465, 2
        %v1243 = vpop.permute.xlu0 %1242
        %v1244 = vsel %vm1237, %v1241, %v1243
        %v1245 = vsel %vm1237, %v1243, %v1241
        %v1246 = vstv %s532
        %v1247 = vmul.f32 %v1246, %v1239
        %v1248 = vmul.f32 %v1246, %v1238
        %v1249 = vstv %s581
        %v1250 = vmul.f32 %v1249, %v1245
        %v1251 = vmul.f32 %v1249, %v1244
        %v1252 = vadd.f32 %v1247, %v1250
        %v1253 = vadd.f32 %v1248, %v1251
        %v1256 = vrot.slane %v1253, 7
        %v1257 = vsel %vm332, %v1252, %v1256
        %v1259 = vsel %vm482, %v1257, 0.0
        %v1261 = vperm.slane %v1259, 0
        %v1262 = vperm.slane %v1259, 1
        %v1265 = vadd.f32 %v1197, %v1261
        %v1266 = vadd.f32 %v1198, %v1262
        %1267 = vrot.lane.b32.xlu0 %v446, 1
        %v1268 = vpop.permute.xlu0 %1267
        %1269 = vrot.lane.b32.xlu0 %v447, 1
        %v1270 = vpop.permute.xlu0 %1269
        %vm1271 = vcmp.lt.s32.totalorder %v305, 1
        %v1272 = vsel %vm1271, %v1268, %v1270
        %v1273 = vsel %vm1271, %v1270, %v1268
        %1274 = vrot.lane.b32.xlu0 %v456, 1
        %v1275 = vpop.permute.xlu0 %1274
        %1276 = vrot.lane.b32.xlu0 %v465, 1
        %v1277 = vpop.permute.xlu0 %1276
        %v1278 = vsel %vm1271, %v1275, %v1277
        %v1279 = vsel %vm1271, %v1277, %v1275
        %v1280 = vstv %s533
        %v1281 = vmul.f32 %v1280, %v1273
        %v1282 = vmul.f32 %v1280, %v1272
        %v1283 = vstv %s582
        %v1284 = vmul.f32 %v1283, %v1279
        %v1285 = vmul.f32 %v1283, %v1278
        %v1286 = vadd.f32 %v1281, %v1284
        %v1287 = vadd.f32 %v1282, %v1285
        %v1290 = vrot.slane %v1287, 7
        %v1291 = vsel %vm332, %v1286, %v1290
        %v1293 = vsel %vm488, %v1291, 0.0
        %v1295 = vperm.slane %v1293, 0
        %v1296 = vperm.slane %v1293, 1
        %v1299 = vadd.f32 %v1231, %v1295
        %v1300 = vadd.f32 %v1232, %v1296
        %v1301 = vstv %s534
        %v1302 = vmul.f32 %v1301, %v446
        %v1303 = vmul.f32 %v1301, %v447
        %v1304 = vstv %s583
        %v1305 = vmul.f32 %v1304, %v456
        %v1306 = vmul.f32 %v1304, %v465
        %v1307 = vadd.f32 %v1302, %v1305
        %v1308 = vadd.f32 %v1303, %v1306
        %v1309 = vadd.f32 %v1265, %v1307
        %v1310 = vadd.f32 %v1266, %v1308
        %1311 = vrot.lane.b32.xlu0 %v446, 127
        %v1312 = vpop.permute.xlu0 %1311
        %1313 = vrot.lane.b32.xlu0 %v447, 127
        %v1314 = vpop.permute.xlu0 %1313
        %vm1315 = vcmp.lt.s32.totalorder %v305, 127
        %v1316 = vsel %vm1315, %v1312, %v1314
        %v1317 = vsel %vm1315, %v1314, %v1312
        %1318 = vrot.lane.b32.xlu0 %v456, 127
        %v1319 = vpop.permute.xlu0 %1318
        %1320 = vrot.lane.b32.xlu0 %v465, 127
        %v1321 = vpop.permute.xlu0 %1320
        %v1322 = vsel %vm1315, %v1319, %v1321
        %v1323 = vsel %vm1315, %v1321, %v1319
        %v1324 = vstv %s535
        %v1325 = vmul.f32 %v1324, %v1316
        %v1326 = vmul.f32 %v1324, %v1317
        %v1327 = vstv %s584
        %v1328 = vmul.f32 %v1327, %v1322
        %v1329 = vmul.f32 %v1327, %v1323
        %v1330 = vadd.f32 %v1325, %v1328
        %v1331 = vadd.f32 %v1326, %v1329
        %v1334 = vrot.slane %v1331, 7
        %v1335 = vsel %vm332, %v1330, %v1334
        %v1337 = vsel %vm497, %v1335, 0.0
        %v1339 = vperm.slane %v1337, 0
        %v1340 = vperm.slane %v1337, 1
        %v1343 = vadd.f32 %v1299, %v1339
        %v1344 = vadd.f32 %v1300, %v1340
        %1345 = vrot.lane.b32.xlu0 %v446, 126
        %v1346 = vpop.permute.xlu0 %1345
        %1347 = vrot.lane.b32.xlu0 %v447, 126
        %v1348 = vpop.permute.xlu0 %1347
        %vm1349 = vcmp.lt.s32.totalorder %v305, 126
        %v1350 = vsel %vm1349, %v1346, %v1348
        %v1351 = vsel %vm1349, %v1348, %v1346
        %1352 = vrot.lane.b32.xlu0 %v456, 126
        %v1353 = vpop.permute.xlu0 %1352
        %1354 = vrot.lane.b32.xlu0 %v465, 126
        %v1355 = vpop.permute.xlu0 %1354
        %v1356 = vsel %vm1349, %v1353, %v1355
        %v1357 = vsel %vm1349, %v1355, %v1353
        %v1358 = vstv %s536
        %v1359 = vmul.f32 %v1358, %v1350
        %v1360 = vmul.f32 %v1358, %v1351
        %v1361 = vstv %s585
        %v1362 = vmul.f32 %v1361, %v1356
        %v1363 = vmul.f32 %v1361, %v1357
        %v1364 = vadd.f32 %v1359, %v1362
        %v1365 = vadd.f32 %v1360, %v1363
        %v1368 = vrot.slane %v1365, 7
        %v1369 = vsel %vm332, %v1364, %v1368
        %v1371 = vsel %vm503, %v1369, 0.0
        %v1373 = vperm.slane %v1371, 0
        %v1374 = vperm.slane %v1371, 1
        %v1377 = vadd.f32 %v1309, %v1373
        %v1378 = vadd.f32 %v1310, %v1374
        %1379 = vrot.lane.b32.xlu0 %v446, 125
        %v1380 = vpop.permute.xlu0 %1379
        %1381 = vrot.lane.b32.xlu0 %v447, 125
        %v1382 = vpop.permute.xlu0 %1381
        %vm1383 = vcmp.lt.s32.totalorder %v305, 125
        %v1384 = vsel %vm1383, %v1380, %v1382
        %v1385 = vsel %vm1383, %v1382, %v1380
        %1386 = vrot.lane.b32.xlu0 %v456, 125
        %v1387 = vpop.permute.xlu0 %1386
        %1388 = vrot.lane.b32.xlu0 %v465, 125
        %v1389 = vpop.permute.xlu0 %1388
        %v1390 = vsel %vm1383, %v1387, %v1389
        %v1391 = vsel %vm1383, %v1389, %v1387
        %v1392 = vstv %s537
        %v1393 = vmul.f32 %v1392, %v1384
        %v1394 = vmul.f32 %v1392, %v1385
        %v1395 = vstv %s586
        %v1396 = vmul.f32 %v1395, %v1390
        %v1397 = vmul.f32 %v1395, %v1391
        %v1398 = vadd.f32 %v1393, %v1396
        %v1399 = vadd.f32 %v1394, %v1397
        %v1402 = vrot.slane %v1399, 7
        %v1403 = vsel %vm332, %v1398, %v1402
        %v1405 = vsel %vm509, %v1403, 0.0
        %v1407 = vperm.slane %v1405, 0
        %v1408 = vperm.slane %v1405, 1
        %v1411 = vadd.f32 %v1343, %v1407
        %v1412 = vadd.f32 %v1344, %v1408
        %1413 = vrot.lane.b32.xlu0 %v446, 115
        %v1414 = vpop.permute.xlu0 %1413
        %1415 = vrot.lane.b32.xlu0 %v447, 115
        %v1416 = vpop.permute.xlu0 %1415
        %vm1417 = vcmp.lt.s32.totalorder %v305, 115
        %v1418 = vsel %vm1417, %v1414, %v1416
        %v1419 = vsel %vm1417, %v1416, %v1414
        %1420 = vrot.lane.b32.xlu0 %v456, 115
        %v1421 = vpop.permute.xlu0 %1420
        %1422 = vrot.lane.b32.xlu0 %v465, 115
        %v1423 = vpop.permute.xlu0 %1422
        %v1424 = vsel %vm1417, %v1421, %v1423
        %v1425 = vsel %vm1417, %v1423, %v1421
        %v1426 = vstv %s538
        %v1427 = vmul.f32 %v1426, %v1418
        %v1428 = vmul.f32 %v1426, %v1419
        %v1429 = vstv %s587
        %v1430 = vmul.f32 %v1429, %v1424
        %v1431 = vmul.f32 %v1429, %v1425
        %v1432 = vadd.f32 %v1427, %v1430
        %v1433 = vadd.f32 %v1428, %v1431
        %vm1434 = vmand %vm493, %vm632
        %vm1435 = vmand %vm494, %vm633
        %v1436 = vsel %vm1434, %v1432, 0.0
        %v1437 = vsel %vm1435, %v1433, 0.0
        %v1438 = vadd.f32 %v1377, %v1436
        %v1439 = vadd.f32 %v1378, %v1437
        %1440 = vrot.lane.b32.xlu0 %v446, 114
        %v1441 = vpop.permute.xlu0 %1440
        %1442 = vrot.lane.b32.xlu0 %v447, 114
        %v1443 = vpop.permute.xlu0 %1442
        %vm1444 = vcmp.lt.s32.totalorder %v305, 114
        %v1445 = vsel %vm1444, %v1441, %v1443
        %v1446 = vsel %vm1444, %v1443, %v1441
        %1447 = vrot.lane.b32.xlu0 %v456, 114
        %v1448 = vpop.permute.xlu0 %1447
        %1449 = vrot.lane.b32.xlu0 %v465, 114
        %v1450 = vpop.permute.xlu0 %1449
        %v1451 = vsel %vm1444, %v1448, %v1450
        %v1452 = vsel %vm1444, %v1450, %v1448
        %v1453 = vstv %s539
        %v1454 = vmul.f32 %v1453, %v1445
        %v1455 = vmul.f32 %v1453, %v1446
        %v1456 = vstv %s588
        %v1457 = vmul.f32 %v1456, %v1451
        %v1458 = vmul.f32 %v1456, %v1452
        %v1459 = vadd.f32 %v1454, %v1457
        %v1460 = vadd.f32 %v1455, %v1458
        %vm1461 = vmand %vm493, %vm664
        %vm1462 = vmand %vm494, %vm665
        %v1463 = vsel %vm1461, %v1459, 0.0
        %v1464 = vsel %vm1462, %v1460, 0.0
        %v1465 = vadd.f32 %v1411, %v1463
        %v1466 = vadd.f32 %v1412, %v1464
        %1467 = vrot.lane.b32.xlu0 %v446, 113
        %v1468 = vpop.permute.xlu0 %1467
        %1469 = vrot.lane.b32.xlu0 %v447, 113
        %v1470 = vpop.permute.xlu0 %1469
        %vm1471 = vcmp.lt.s32.totalorder %v305, 113
        %v1472 = vsel %vm1471, %v1468, %v1470
        %v1473 = vsel %vm1471, %v1470, %v1468
        %1474 = vrot.lane.b32.xlu0 %v456, 113
        %v1475 = vpop.permute.xlu0 %1474
        %1476 = vrot.lane.b32.xlu0 %v465, 113
        %v1477 = vpop.permute.xlu0 %1476
        %v1478 = vsel %vm1471, %v1475, %v1477
        %v1479 = vsel %vm1471, %v1477, %v1475
        %v1480 = vstv %s540
        %v1481 = vmul.f32 %v1480, %v1472
        %v1482 = vmul.f32 %v1480, %v1473
        %v1483 = vstv %s589
        %v1484 = vmul.f32 %v1483, %v1478
        %v1485 = vmul.f32 %v1483, %v1479
        %v1486 = vadd.f32 %v1481, %v1484
        %v1487 = vadd.f32 %v1482, %v1485
        %vm1488 = vmand %vm493, %vm696
        %vm1489 = vmand %vm494, %vm697
        %v1490 = vsel %vm1488, %v1486, 0.0
        %v1491 = vsel %vm1489, %v1487, 0.0
        %v1492 = vadd.f32 %v1438, %v1490
        %v1493 = vadd.f32 %v1439, %v1491
        %1494 = vrot.lane.b32.xlu0 %v446, 112
        %v1495 = vpop.permute.xlu0 %1494
        %1496 = vrot.lane.b32.xlu0 %v447, 112
        %v1497 = vpop.permute.xlu0 %1496
        %vm1498 = vcmp.lt.s32.totalorder %v305, 112
        %v1499 = vsel %vm1498, %v1495, %v1497
        %v1500 = vsel %vm1498, %v1497, %v1495
        %1501 = vrot.lane.b32.xlu0 %v456, 112
        %v1502 = vpop.permute.xlu0 %1501
        %1503 = vrot.lane.b32.xlu0 %v465, 112
        %v1504 = vpop.permute.xlu0 %1503
        %v1505 = vsel %vm1498, %v1502, %v1504
        %v1506 = vsel %vm1498, %v1504, %v1502
        %v1507 = vstv %s541
        %v1508 = vmul.f32 %v1507, %v1499
        %v1509 = vmul.f32 %v1507, %v1500
        %v1510 = vstv %s590
        %v1511 = vmul.f32 %v1510, %v1505
        %v1512 = vmul.f32 %v1510, %v1506
        %v1513 = vadd.f32 %v1508, %v1511
        %v1514 = vadd.f32 %v1509, %v1512
        %v1515 = vsel %vm493, %v1513, 0.0
        %v1516 = vsel %vm494, %v1514, 0.0
        %v1517 = vadd.f32 %v1465, %v1515
        %v1518 = vadd.f32 %v1466, %v1516
        %1519 = vrot.lane.b32.xlu0 %v446, 111
        %v1520 = vpop.permute.xlu0 %1519
        %1521 = vrot.lane.b32.xlu0 %v447, 111
        %v1522 = vpop.permute.xlu0 %1521
        %vm1523 = vcmp.lt.s32.totalorder %v305, 111
        %v1524 = vsel %vm1523, %v1520, %v1522
        %v1525 = vsel %vm1523, %v1522, %v1520
        %1526 = vrot.lane.b32.xlu0 %v456, 111
        %v1527 = vpop.permute.xlu0 %1526
        %1528 = vrot.lane.b32.xlu0 %v465, 111
        %v1529 = vpop.permute.xlu0 %1528
        %v1530 = vsel %vm1523, %v1527, %v1529
        %v1531 = vsel %vm1523, %v1529, %v1527
        %v1532 = vstv %s542
        %v1533 = vmul.f32 %v1532, %v1524
        %v1534 = vmul.f32 %v1532, %v1525
        %v1535 = vstv %s591
        %v1536 = vmul.f32 %v1535, %v1530
        %v1537 = vmul.f32 %v1535, %v1531
        %v1538 = vadd.f32 %v1533, %v1536
        %v1539 = vadd.f32 %v1534, %v1537
        %vm1540 = vmand %vm493, %vm753
        %vm1541 = vmand %vm494, %vm754
        %v1542 = vsel %vm1540, %v1538, 0.0
        %v1543 = vsel %vm1541, %v1539, 0.0
        %v1544 = vadd.f32 %v1492, %v1542
        %v1545 = vadd.f32 %v1493, %v1543
        %1546 = vrot.lane.b32.xlu0 %v446, 110
        %v1547 = vpop.permute.xlu0 %1546
        %1548 = vrot.lane.b32.xlu0 %v447, 110
        %v1549 = vpop.permute.xlu0 %1548
        %vm1550 = vcmp.lt.s32.totalorder %v305, 110
        %v1551 = vsel %vm1550, %v1547, %v1549
        %v1552 = vsel %vm1550, %v1549, %v1547
        %1553 = vrot.lane.b32.xlu0 %v456, 110
        %v1554 = vpop.permute.xlu0 %1553
        %1555 = vrot.lane.b32.xlu0 %v465, 110
        %v1556 = vpop.permute.xlu0 %1555
        %v1557 = vsel %vm1550, %v1554, %v1556
        %v1558 = vsel %vm1550, %v1556, %v1554
        %v1559 = vstv %s543
        %v1560 = vmul.f32 %v1559, %v1551
        %v1561 = vmul.f32 %v1559, %v1552
        %v1562 = vstv %s592
        %v1563 = vmul.f32 %v1562, %v1557
        %v1564 = vmul.f32 %v1562, %v1558
        %v1565 = vadd.f32 %v1560, %v1563
        %v1566 = vadd.f32 %v1561, %v1564
        %vm1567 = vmand %vm493, %vm785
        %vm1568 = vmand %vm494, %vm786
        %v1569 = vsel %vm1567, %v1565, 0.0
        %v1570 = vsel %vm1568, %v1566, 0.0
        %v1571 = vadd.f32 %v1517, %v1569
        %v1572 = vadd.f32 %v1518, %v1570
        %1573 = vrot.lane.b32.xlu0 %v446, 109
        %v1574 = vpop.permute.xlu0 %1573
        %1575 = vrot.lane.b32.xlu0 %v447, 109
        %v1576 = vpop.permute.xlu0 %1575
        %vm1577 = vcmp.lt.s32.totalorder %v305, 109
        %v1578 = vsel %vm1577, %v1574, %v1576
        %v1579 = vsel %vm1577, %v1576, %v1574
        %1580 = vrot.lane.b32.xlu0 %v456, 109
        %v1581 = vpop.permute.xlu0 %1580
        %1582 = vrot.lane.b32.xlu0 %v465, 109
        %v1583 = vpop.permute.xlu0 %1582
        %v1584 = vsel %vm1577, %v1581, %v1583
        %v1585 = vsel %vm1577, %v1583, %v1581
        %v1586 = vstv %s544
        %v1587 = vmul.f32 %v1586, %v1578
        %v1588 = vmul.f32 %v1586, %v1579
        %v1589 = vstv %s593
        %v1590 = vmul.f32 %v1589, %v1584
        %v1591 = vmul.f32 %v1589, %v1585
        %v1592 = vadd.f32 %v1587, %v1590
        %v1593 = vadd.f32 %v1588, %v1591
        %vm1594 = vmand %vm493, %vm817
        %vm1595 = vmand %vm494, %vm818
        %v1596 = vsel %vm1594, %v1592, 0.0
        %v1597 = vsel %vm1595, %v1593, 0.0
        %v1598 = vadd.f32 %v1544, %v1596
        %v1599 = vadd.f32 %v1545, %v1597
        %1600 = vrot.lane.b32.xlu0 %v446, 99
        %v1601 = vpop.permute.xlu0 %1600
        %1602 = vrot.lane.b32.xlu0 %v447, 99
        %v1603 = vpop.permute.xlu0 %1602
        %vm1604 = vcmp.lt.s32.totalorder %v305, 99
        %v1605 = vsel %vm1604, %v1601, %v1603
        %v1606 = vsel %vm1604, %v1603, %v1601
        %1607 = vrot.lane.b32.xlu0 %v456, 99
        %v1608 = vpop.permute.xlu0 %1607
        %1609 = vrot.lane.b32.xlu0 %v465, 99
        %v1610 = vpop.permute.xlu0 %1609
        %v1611 = vsel %vm1604, %v1608, %v1610
        %v1612 = vsel %vm1604, %v1610, %v1608
        %v1613 = vstv %s545
        %v1614 = vmul.f32 %v1613, %v1605
        %v1615 = vmul.f32 %v1613, %v1606
        %v1616 = vstv %s594
        %v1617 = vmul.f32 %v1616, %v1611
        %v1618 = vmul.f32 %v1616, %v1612
        %v1619 = vadd.f32 %v1614, %v1617
        %v1620 = vadd.f32 %v1615, %v1618
        %vm1621 = vmand %vm500, %vm632
        %vm1622 = vmand %vm501, %vm633
        %v1623 = vsel %vm1621, %v1619, 0.0
        %v1624 = vsel %vm1622, %v1620, 0.0
        %v1625 = vadd.f32 %v1571, %v1623
        %v1626 = vadd.f32 %v1572, %v1624
        %1627 = vrot.lane.b32.xlu0 %v446, 98
        %v1628 = vpop.permute.xlu0 %1627
        %1629 = vrot.lane.b32.xlu0 %v447, 98
        %v1630 = vpop.permute.xlu0 %1629
        %vm1631 = vcmp.lt.s32.totalorder %v305, 98
        %v1632 = vsel %vm1631, %v1628, %v1630
        %v1633 = vsel %vm1631, %v1630, %v1628
        %1634 = vrot.lane.b32.xlu0 %v456, 98
        %v1635 = vpop.permute.xlu0 %1634
        %1636 = vrot.lane.b32.xlu0 %v465, 98
        %v1637 = vpop.permute.xlu0 %1636
        %v1638 = vsel %vm1631, %v1635, %v1637
        %v1639 = vsel %vm1631, %v1637, %v1635
        %v1640 = vstv %s546
        %v1641 = vmul.f32 %v1640, %v1632
        %v1642 = vmul.f32 %v1640, %v1633
        %v1643 = vstv %s595
        %v1644 = vmul.f32 %v1643, %v1638
        %v1645 = vmul.f32 %v1643, %v1639
        %v1646 = vadd.f32 %v1641, %v1644
        %v1647 = vadd.f32 %v1642, %v1645
        %vm1648 = vmand %vm500, %vm664
        %vm1649 = vmand %vm501, %vm665
        %v1650 = vsel %vm1648, %v1646, 0.0
        %v1651 = vsel %vm1649, %v1647, 0.0
        %v1652 = vadd.f32 %v1598, %v1650
        %v1653 = vadd.f32 %v1599, %v1651
        %1654 = vrot.lane.b32.xlu0 %v446, 97
        %v1655 = vpop.permute.xlu0 %1654
        %1656 = vrot.lane.b32.xlu0 %v447, 97
        %v1657 = vpop.permute.xlu0 %1656
        %vm1658 = vcmp.lt.s32.totalorder %v305, 97
        %v1659 = vsel %vm1658, %v1655, %v1657
        %v1660 = vsel %vm1658, %v1657, %v1655
        %1661 = vrot.lane.b32.xlu0 %v456, 97
        %v1662 = vpop.permute.xlu0 %1661
        %1663 = vrot.lane.b32.xlu0 %v465, 97
        %v1664 = vpop.permute.xlu0 %1663
        %v1665 = vsel %vm1658, %v1662, %v1664
        %v1666 = vsel %vm1658, %v1664, %v1662
        %v1667 = vstv %s547
        %v1668 = vmul.f32 %v1667, %v1659
        %v1669 = vmul.f32 %v1667, %v1660
        %v1670 = vstv %s596
        %v1671 = vmul.f32 %v1670, %v1665
        %v1672 = vmul.f32 %v1670, %v1666
        %v1673 = vadd.f32 %v1668, %v1671
        %v1674 = vadd.f32 %v1669, %v1672
        %vm1675 = vmand %vm500, %vm696
        %vm1676 = vmand %vm501, %vm697
        %v1677 = vsel %vm1675, %v1673, 0.0
        %v1678 = vsel %vm1676, %v1674, 0.0
        %v1679 = vadd.f32 %v1625, %v1677
        %v1680 = vadd.f32 %v1626, %v1678
        %1681 = vrot.lane.b32.xlu0 %v446, 96
        %v1682 = vpop.permute.xlu0 %1681
        %1683 = vrot.lane.b32.xlu0 %v447, 96
        %v1684 = vpop.permute.xlu0 %1683
        %vm1685 = vcmp.lt.s32.totalorder %v305, 96
        %v1686 = vsel %vm1685, %v1682, %v1684
        %v1687 = vsel %vm1685, %v1684, %v1682
        %1688 = vrot.lane.b32.xlu0 %v456, 96
        %v1689 = vpop.permute.xlu0 %1688
        %1690 = vrot.lane.b32.xlu0 %v465, 96
        %v1691 = vpop.permute.xlu0 %1690
        %v1692 = vsel %vm1685, %v1689, %v1691
        %v1693 = vsel %vm1685, %v1691, %v1689
        %v1694 = vstv %s548
        %v1695 = vmul.f32 %v1694, %v1686
        %v1696 = vmul.f32 %v1694, %v1687
        %v1697 = vstv %s597
        %v1698 = vmul.f32 %v1697, %v1692
        %v1699 = vmul.f32 %v1697, %v1693
        %v1700 = vadd.f32 %v1695, %v1698
        %v1701 = vadd.f32 %v1696, %v1699
        %v1702 = vsel %vm500, %v1700, 0.0
        %v1703 = vsel %vm501, %v1701, 0.0
        %v1704 = vadd.f32 %v1652, %v1702
        %v1705 = vadd.f32 %v1653, %v1703
        %1706 = vrot.lane.b32.xlu0 %v446, 95
        %v1707 = vpop.permute.xlu0 %1706
        %1708 = vrot.lane.b32.xlu0 %v447, 95
        %v1709 = vpop.permute.xlu0 %1708
        %vm1710 = vcmp.lt.s32.totalorder %v305, 95
        %v1711 = vsel %vm1710, %v1707, %v1709
        %v1712 = vsel %vm1710, %v1709, %v1707
        %1713 = vrot.lane.b32.xlu0 %v456, 95
        %v1714 = vpop.permute.xlu0 %1713
        %1715 = vrot.lane.b32.xlu0 %v465, 95
        %v1716 = vpop.permute.xlu0 %1715
        %v1717 = vsel %vm1710, %v1714, %v1716
        %v1718 = vsel %vm1710, %v1716, %v1714
        %v1719 = vstv %s549
        %v1720 = vmul.f32 %v1719, %v1711
        %v1721 = vmul.f32 %v1719, %v1712
        %v1722 = vstv %s598
        %v1723 = vmul.f32 %v1722, %v1717
        %v1724 = vmul.f32 %v1722, %v1718
        %v1725 = vadd.f32 %v1720, %v1723
        %v1726 = vadd.f32 %v1721, %v1724
        %vm1727 = vmand %vm500, %vm753
        %vm1728 = vmand %vm501, %vm754
        %v1729 = vsel %vm1727, %v1725, 0.0
        %v1730 = vsel %vm1728, %v1726, 0.0
        %v1731 = vadd.f32 %v1679, %v1729
        %v1732 = vadd.f32 %v1680, %v1730
        %1733 = vrot.lane.b32.xlu0 %v446, 94
        %v1734 = vpop.permute.xlu0 %1733
        %1735 = vrot.lane.b32.xlu0 %v447, 94
        %v1736 = vpop.permute.xlu0 %1735
        %vm1737 = vcmp.lt.s32.totalorder %v305, 94
        %v1738 = vsel %vm1737, %v1734, %v1736
        %v1739 = vsel %vm1737, %v1736, %v1734
        %1740 = vrot.lane.b32.xlu0 %v456, 94
        %v1741 = vpop.permute.xlu0 %1740
        %1742 = vrot.lane.b32.xlu0 %v465, 94
        %v1743 = vpop.permute.xlu0 %1742
        %v1744 = vsel %vm1737, %v1741, %v1743
        %v1745 = vsel %vm1737, %v1743, %v1741
        %v1746 = vstv %s550
        %v1747 = vmul.f32 %v1746, %v1738
        %v1748 = vmul.f32 %v1746, %v1739
        %v1749 = vstv %s599
        %v1750 = vmul.f32 %v1749, %v1744
        %v1751 = vmul.f32 %v1749, %v1745
        %v1752 = vadd.f32 %v1747, %v1750
        %v1753 = vadd.f32 %v1748, %v1751
        %vm1754 = vmand %vm500, %vm785
        %vm1755 = vmand %vm501, %vm786
        %v1756 = vsel %vm1754, %v1752, 0.0
        %v1757 = vsel %vm1755, %v1753, 0.0
        %v1758 = vadd.f32 %v1704, %v1756
        %v1759 = vadd.f32 %v1705, %v1757
        %1760 = vrot.lane.b32.xlu0 %v446, 93
        %v1761 = vpop.permute.xlu0 %1760
        %1762 = vrot.lane.b32.xlu0 %v447, 93
        %v1763 = vpop.permute.xlu0 %1762
        %vm1764 = vcmp.lt.s32.totalorder %v305, 93
        %v1765 = vsel %vm1764, %v1761, %v1763
        %v1766 = vsel %vm1764, %v1763, %v1761
        %1767 = vrot.lane.b32.xlu0 %v456, 93
        %v1768 = vpop.permute.xlu0 %1767
        %1769 = vrot.lane.b32.xlu0 %v465, 93
        %v1770 = vpop.permute.xlu0 %1769
        %v1771 = vsel %vm1764, %v1768, %v1770
        %v1772 = vsel %vm1764, %v1770, %v1768
        %v1773 = vstv %s551
        %v1774 = vmul.f32 %v1773, %v1765
        %v1775 = vmul.f32 %v1773, %v1766
        %v1776 = vstv %s600
        %v1777 = vmul.f32 %v1776, %v1771
        %v1778 = vmul.f32 %v1776, %v1772
        %v1779 = vadd.f32 %v1774, %v1777
        %v1780 = vadd.f32 %v1775, %v1778
        %vm1781 = vmand %vm500, %vm817
        %vm1782 = vmand %vm501, %vm818
        %v1783 = vsel %vm1781, %v1779, 0.0
        %v1784 = vsel %vm1782, %v1780, 0.0
        %v1785 = vadd.f32 %v1731, %v1783
        %v1786 = vadd.f32 %v1732, %v1784
        %1787 = vrot.lane.b32.xlu0 %v446, 83
        %v1788 = vpop.permute.xlu0 %1787
        %1789 = vrot.lane.b32.xlu0 %v447, 83
        %v1790 = vpop.permute.xlu0 %1789
        %vm1791 = vcmp.lt.s32.totalorder %v305, 83
        %v1792 = vsel %vm1791, %v1788, %v1790
        %v1793 = vsel %vm1791, %v1790, %v1788
        %1794 = vrot.lane.b32.xlu0 %v456, 83
        %v1795 = vpop.permute.xlu0 %1794
        %1796 = vrot.lane.b32.xlu0 %v465, 83
        %v1797 = vpop.permute.xlu0 %1796
        %v1798 = vsel %vm1791, %v1795, %v1797
        %v1799 = vsel %vm1791, %v1797, %v1795
        %v1800 = vstv %s552
        %v1801 = vmul.f32 %v1800, %v1792
        %v1802 = vmul.f32 %v1800, %v1793
        %v1803 = vstv %s601
        %v1804 = vmul.f32 %v1803, %v1798
        %v1805 = vmul.f32 %v1803, %v1799
        %v1806 = vadd.f32 %v1801, %v1804
        %v1807 = vadd.f32 %v1802, %v1805
        %vm1808 = vmand %vm506, %vm632
        %vm1809 = vmand %vm507, %vm633
        %v1810 = vsel %vm1808, %v1806, 0.0
        %v1811 = vsel %vm1809, %v1807, 0.0
        %v1812 = vadd.f32 %v1758, %v1810
        %v1813 = vadd.f32 %v1759, %v1811
        %1814 = vrot.lane.b32.xlu0 %v446, 82
        %v1815 = vpop.permute.xlu0 %1814
        %1816 = vrot.lane.b32.xlu0 %v447, 82
        %v1817 = vpop.permute.xlu0 %1816
        %vm1818 = vcmp.lt.s32.totalorder %v305, 82
        %v1819 = vsel %vm1818, %v1815, %v1817
        %v1820 = vsel %vm1818, %v1817, %v1815
        %1821 = vrot.lane.b32.xlu0 %v456, 82
        %v1822 = vpop.permute.xlu0 %1821
        %1823 = vrot.lane.b32.xlu0 %v465, 82
        %v1824 = vpop.permute.xlu0 %1823
        %v1825 = vsel %vm1818, %v1822, %v1824
        %v1826 = vsel %vm1818, %v1824, %v1822
        %v1827 = vstv %s553
        %v1828 = vmul.f32 %v1827, %v1819
        %v1829 = vmul.f32 %v1827, %v1820
        %v1830 = vstv %s602
        %v1831 = vmul.f32 %v1830, %v1825
        %v1832 = vmul.f32 %v1830, %v1826
        %v1833 = vadd.f32 %v1828, %v1831
        %v1834 = vadd.f32 %v1829, %v1832
        %vm1835 = vmand %vm506, %vm664
        %vm1836 = vmand %vm507, %vm665
        %v1837 = vsel %vm1835, %v1833, 0.0
        %v1838 = vsel %vm1836, %v1834, 0.0
        %v1839 = vadd.f32 %v1785, %v1837
        %v1840 = vadd.f32 %v1786, %v1838
        %1841 = vrot.lane.b32.xlu0 %v446, 81
        %v1842 = vpop.permute.xlu0 %1841
        %1843 = vrot.lane.b32.xlu0 %v447, 81
        %v1844 = vpop.permute.xlu0 %1843
        %vm1845 = vcmp.lt.s32.totalorder %v305, 81
        %v1846 = vsel %vm1845, %v1842, %v1844
        %v1847 = vsel %vm1845, %v1844, %v1842
        %1848 = vrot.lane.b32.xlu0 %v456, 81
        %v1849 = vpop.permute.xlu0 %1848
        %1850 = vrot.lane.b32.xlu0 %v465, 81
        %v1851 = vpop.permute.xlu0 %1850
        %v1852 = vsel %vm1845, %v1849, %v1851
        %v1853 = vsel %vm1845, %v1851, %v1849
        %v1854 = vstv %s554
        %v1855 = vmul.f32 %v1854, %v1846
        %v1856 = vmul.f32 %v1854, %v1847
        %v1857 = vstv %s603
        %v1858 = vmul.f32 %v1857, %v1852
        %v1859 = vmul.f32 %v1857, %v1853
        %v1860 = vadd.f32 %v1855, %v1858
        %v1861 = vadd.f32 %v1856, %v1859
        %vm1862 = vmand %vm506, %vm696
        %vm1863 = vmand %vm507, %vm697
        %v1864 = vsel %vm1862, %v1860, 0.0
        %v1865 = vsel %vm1863, %v1861, 0.0
        %v1866 = vadd.f32 %v1812, %v1864
        %v1867 = vadd.f32 %v1813, %v1865
        %1868 = vrot.lane.b32.xlu0 %v446, 80
        %v1869 = vpop.permute.xlu0 %1868
        %1870 = vrot.lane.b32.xlu0 %v447, 80
        %v1871 = vpop.permute.xlu0 %1870
        %vm1872 = vcmp.lt.s32.totalorder %v305, 80
        %v1873 = vsel %vm1872, %v1869, %v1871
        %v1874 = vsel %vm1872, %v1871, %v1869
        %1875 = vrot.lane.b32.xlu0 %v456, 80
        %v1876 = vpop.permute.xlu0 %1875
        %1877 = vrot.lane.b32.xlu0 %v465, 80
        %v1878 = vpop.permute.xlu0 %1877
        %v1879 = vsel %vm1872, %v1876, %v1878
        %v1880 = vsel %vm1872, %v1878, %v1876
        %v1881 = vstv %s555
        %v1882 = vmul.f32 %v1881, %v1873
        %v1883 = vmul.f32 %v1881, %v1874
        %v1884 = vstv %s604
        %v1885 = vmul.f32 %v1884, %v1879
        %v1886 = vmul.f32 %v1884, %v1880
        %v1887 = vadd.f32 %v1882, %v1885
        %v1888 = vadd.f32 %v1883, %v1886
        %v1889 = vsel %vm506, %v1887, 0.0
        %v1890 = vsel %vm507, %v1888, 0.0
        %v1891 = vadd.f32 %v1839, %v1889
        %v1892 = vadd.f32 %v1840, %v1890
        %1893 = vrot.lane.b32.xlu0 %v446, 79
        %v1894 = vpop.permute.xlu0 %1893
        %1895 = vrot.lane.b32.xlu0 %v447, 79
        %v1896 = vpop.permute.xlu0 %1895
        %vm1897 = vcmp.lt.s32.totalorder %v305, 79
        %v1898 = vsel %vm1897, %v1894, %v1896
        %v1899 = vsel %vm1897, %v1896, %v1894
        %1900 = vrot.lane.b32.xlu0 %v456, 79
        %v1901 = vpop.permute.xlu0 %1900
        %1902 = vrot.lane.b32.xlu0 %v465, 79
        %v1903 = vpop.permute.xlu0 %1902
        %v1904 = vsel %vm1897, %v1901, %v1903
        %v1905 = vsel %vm1897, %v1903, %v1901
        %v1906 = vstv %s556
        %v1907 = vmul.f32 %v1906, %v1898
        %v1908 = vmul.f32 %v1906, %v1899
        %v1909 = vstv %s605
        %v1910 = vmul.f32 %v1909, %v1904
        %v1911 = vmul.f32 %v1909, %v1905
        %v1912 = vadd.f32 %v1907, %v1910
        %v1913 = vadd.f32 %v1908, %v1911
        %vm1914 = vmand %vm506, %vm753
        %vm1915 = vmand %vm507, %vm754
        %v1916 = vsel %vm1914, %v1912, 0.0
        %v1917 = vsel %vm1915, %v1913, 0.0
        %v1918 = vadd.f32 %v1866, %v1916
        %v1919 = vadd.f32 %v1867, %v1917
        %1920 = vrot.lane.b32.xlu0 %v446, 78
        %v1921 = vpop.permute.xlu0 %1920
        %1922 = vrot.lane.b32.xlu0 %v447, 78
        %v1923 = vpop.permute.xlu0 %1922
        %vm1924 = vcmp.lt.s32.totalorder %v305, 78
        %v1925 = vsel %vm1924, %v1921, %v1923
        %v1926 = vsel %vm1924, %v1923, %v1921
        %1927 = vrot.lane.b32.xlu0 %v456, 78
        %v1928 = vpop.permute.xlu0 %1927
        %1929 = vrot.lane.b32.xlu0 %v465, 78
        %v1930 = vpop.permute.xlu0 %1929
        %v1931 = vsel %vm1924, %v1928, %v1930
        %v1932 = vsel %vm1924, %v1930, %v1928
        %v1933 = vstv %s557
        %v1934 = vmul.f32 %v1933, %v1925
        %v1935 = vmul.f32 %v1933, %v1926
        %v1936 = vstv %s606
        %v1937 = vmul.f32 %v1936, %v1931
        %v1938 = vmul.f32 %v1936, %v1932
        %v1939 = vadd.f32 %v1934, %v1937
        %v1940 = vadd.f32 %v1935, %v1938
        %vm1941 = vmand %vm506, %vm785
        %vm1942 = vmand %vm507, %vm786
        %v1943 = vsel %vm1941, %v1939, 0.0
        %v1944 = vsel %vm1942, %v1940, 0.0
        %v1945 = vadd.f32 %v1891, %v1943
        %v1946 = vadd.f32 %v1892, %v1944
        %1947 = vrot.lane.b32.xlu0 %v446, 77
        %v1948 = vpop.permute.xlu0 %1947
        %1949 = vrot.lane.b32.xlu0 %v447, 77
        %v1950 = vpop.permute.xlu0 %1949
        %vm1951 = vcmp.lt.s32.totalorder %v305, 77
        %v1952 = vsel %vm1951, %v1948, %v1950
        %v1953 = vsel %vm1951, %v1950, %v1948
        %1954 = vrot.lane.b32.xlu0 %v456, 77
        %v1955 = vpop.permute.xlu0 %1954
        %1956 = vrot.lane.b32.xlu0 %v465, 77
        %v1957 = vpop.permute.xlu0 %1956
        %v1958 = vsel %vm1951, %v1955, %v1957
        %v1959 = vsel %vm1951, %v1957, %v1955
        %v1960 = vstv %s558
        %v1961 = vmul.f32 %v1960, %v1952
        %v1962 = vmul.f32 %v1960, %v1953
        %v1963 = vstv %s607
        %v1964 = vmul.f32 %v1963, %v1958
        %v1965 = vmul.f32 %v1963, %v1959
        %v1966 = vadd.f32 %v1961, %v1964
        %v1967 = vadd.f32 %v1962, %v1965
        %vm1968 = vmand %vm506, %vm817
        %vm1969 = vmand %vm507, %vm818
        %v1970 = vsel %vm1968, %v1966, 0.0
        %v1971 = vsel %vm1969, %v1967, 0.0
        %v1972 = vadd.f32 %v1918, %v1970
        %v1973 = vadd.f32 %v1919, %v1971
        %v1974 = vadd.f32 %v1972, %v1945
        %v1975 = vadd.f32 %v1973, %v1946
        %v1976 = vmul.f32 %v1974, 0.5
        %v1977 = vmul.f32 %v1975, 0.5
        %v1978 = vtanh.pop %v1976
        %v1979 = vtanh.pop %v1977
        %v1980 = vadd.f32 %v1978, 1.0
        %v1981 = vadd.f32 %v1979, 1.0
        %v1982 = vmul.f32 %v1980, 0.5
        %v1983 = vmul.f32 %v1981, 0.5
        %v1984 = vperm.slane %v1982, 0
        %v1985 = vperm.slane %v1983, 0
        %v1986 = vmul.f32 %v420, %v1984
        %v1987 = vmul.f32 %v421, %v1985
        %v1988 = vmul.f32 %v422, %v1984
        %v1989 = vmul.f32 %v423, %v1985
        %v1990 = vmul.f32 %v424, %v1984
        %v1991 = vmul.f32 %v425, %v1985
        %v1992 = vmul.f32 %v426, %v1984
        %v1993 = vmul.f32 %v427, %v1985
        %1994 = vst [vmem:[%s258] sm:$0xff] %v1986
        %1995 = vst [vmem:[%s258 + $0x8] sm:$0xff] %v1987
        %1996 = vst [vmem:[%s258 + $0x10] sm:$0xff] %v1988
        %1997 = vst [vmem:[%s258 + $0x18] sm:$0xff] %v1989
        %1998 = vst [vmem:[%s258 + $0x20] sm:$0xff] %v1990
        %1999 = vst [vmem:[%s258 + $0x28] sm:$0xff] %v1991
        %2000 = vst [vmem:[%s258 + $0x30] sm:$0xff] %v1992
        %2001 = vst [vmem:[%s258 + $0x38] sm:$0xff] %v1993
        %s2002 = sand.u32 %s141, 1
        %s2003 = scalar_lea.sflag [#allocation4], %s2002
        %s2004 = sand.u32 %s141, 1
        %s2005 = smul.addr %s2004, 64
        %s2006 = scalar_lea.vmem [#allocation7], %s2005
        // Predicated region
        $region49: #{tpu_custom_call.1} parent=39 // pred_check
          %p2007 = pneg %p151
        $region50: #{tpu_custom_call.1} parent=39 // pred_check_branch
          %2009 = sbr.rel (%p2007) target = $region52
        $region51: #{tpu_custom_call.1} parent=39 // pred_region
          %2011 = vsyncadd %s2003, 0
          %s2012 = smul.addr %s23, 8
          %s2013 = smul.addr %s2012, 8
          %s2014 = scalar_lea.hbm %s5, %s2013
          %s2015 = sshll.u32 %s2006, 4
          %s2016 = int_to_ptr.vmem [resolvable:$true] %s2015
          %s2017 = sshll.u32 %s2014, 4
          %s2018 = int_to_ptr.hbm [resolvable:$true] %s2017
          %2023 = dma.vmem_to_hbm [thread:$0]  %s2016, 1024, %s2018, %s2003, 256, 256, 16
        $region52: #{tpu_custom_call.1} parent=39 // pred_fallthru
          _
      $region40: #{tpu_custom_call.1} parent=5 // pred_fallthru
        _
      %p2024 = scmp.le.s32.totalorder 2, %s18
      // Predicated region
      $region53: #{tpu_custom_call.1} parent=5 // pred_check
        %p2025 = pneg %p2024
      $region54: #{tpu_custom_call.1} parent=5 // pred_check_branch
        %2027 = sbr.rel (%p2025) target = $region56
      $region55: #{tpu_custom_call.1} parent=5 // pred_region
        %s2028 = ssub.s32 %s18, 2
        // Predicated region
        $region57: #{tpu_custom_call.1} parent=55 // pred_check
          %p2029 = pneg %p157
        $region58: #{tpu_custom_call.1} parent=55 // pred_check_branch
          %2031 = sbr.rel (%p2029) target = $region60
        $region59: #{tpu_custom_call.1} parent=55 // pred_region
          %s2032 = sand.u32 %s142, 1
          %s2033 = scalar_lea.sflag [#allocation4], %s2032
          %s2034 = sand.u32 %s142, 1
          %s2035 = smul.addr %s2034, 64
          %s2036 = scalar_lea.vmem [#allocation7], %s2035
          %2038 = dma.done %s2033, 1024
        $region60: #{tpu_custom_call.1} parent=55 // pred_fallthru
          _
      $region56: #{tpu_custom_call.1} parent=5 // pred_fallthru
        _
    $region6: #{tpu_custom_call.1} parent=1 // loop_footer
      %s22 = sadd.s32 1, %s18
    $region7: #{tpu_custom_call.1} parent=1 // loop_footer_branch
      %17 = sbr.rel target = $region3
    $region8: #{tpu_custom_call.1} parent=1 // loop_exit
      _
    %2039 = vsyncpa [#allocation3], 1
    %s2040 = scalar_lea.sflag [#allocation3], 1
    %2041 = vsyncpa %s2040, 1
    %2042 = vsyncpa [#allocation4], 1
    %s2043 = scalar_lea.sflag [#allocation4], 1
    %2044 = vsyncpa %s2043, 1
    %2045 = vsyncpa [#allocation5], 1
    %s2046 = scalar_lea.sflag [#allocation5], 1
    %2047 = vsyncpa %s2046, 1

</llo_original>
